<compile_context>
chip_gen: v6e
topology: v6e:2x2x1
jax: 0.10.0
libtpu: 0.0.40
codegen_flags: <defaults>
</compile_context>

<pallas_src>
import functools

import numpy as np
import jax
import jax.numpy as jnp
from jax import lax
from jax.experimental import pallas as pl
from jax.experimental.pallas import tpu as pltpu

_ROW_PAD = -1.0e30   # padded rows  (preds & labels) -> per-element loss exactly 0
_COL_PAD = +1.0e30   # padded cols  (preds & labels) -> per-element loss exactly 0


def _ranknet_loss_kernel(order_ref, cstart_ref, cdiag_ref,          # scalar prefetch (SMEM)
                         pc_ref, lc_ref, pr_ref, lr_ref,            # inputs (VMEM)
                         out_ref,                                   # output (VMEM)
                         acc_ref,                                   # scratch (VMEM)
                         *, tile_m, tile_n):
    n_chunks = pr_ref.shape[0]

    g = pl.program_id(0)
    t = order_ref[g]                 # actual row-tile index (permuted for megacore balance)
    r0 = t * tile_m                  # first global row of this tile
    c_start = cstart_ref[g]          # first column chunk with any element above the diagonal
    c_diag_end = cdiag_ref[g]        # first column chunk fully above the diagonal for all rows

    pc = pc_ref[...]                 # (tile_m, 1)  preds[i]
    lc = lc_ref[...]                 # (tile_m, 1)  labels[i]

    acc_ref[...] = jnp.zeros_like(acc_ref)

    def chunk_partial(c, with_mask):
        pr = pr_ref[c]               # (1, tile_n)  preds[j]  (resident, chunk c)
        lr = lr_ref[c]               # (1, tile_n)  labels[j]
        # Stable BCE-with-logits: p_ij = sigmoid(d), d = preds[i] - preds[j].
        d = pc - pr                                       # (tile_m, tile_n)
        yd = jnp.where(lc > lr, d, 0.0)                   # y*d with y in {0,1}
        loss = jnp.maximum(d, 0.0) - yd + jnp.log(1.0 + jnp.exp(-jnp.abs(d)))
        # PyTorch's -100 log clamp caps each element's loss at 100.
        loss = jnp.minimum(loss, 100.0)
        if with_mask:
            # Strict upper triangle (j > i) — only needed on diagonal-straddling chunks.
            row = r0 + lax.broadcasted_iota(jnp.int32, (tile_m, tile_n), 0)
            col = c * tile_n + lax.broadcasted_iota(jnp.int32, (tile_m, tile_n), 1)
            loss = jnp.where(col > row, loss, 0.0)        # keep the where AFTER the min
        return jnp.sum(loss, axis=1, keepdims=True)       # (tile_m, 1)

    def diag_body(c, carry):                              # chunks straddling the diagonal
        acc_ref[...] += chunk_partial(c, True)
        return carry

    def upper_body(c, carry):                             # chunks fully above the diagonal
        acc_ref[...] += chunk_partial(c, False)
        return carry

    lax.fori_loop(c_start, c_diag_end, diag_body, 0)
    lax.fori_loop(c_diag_end, n_chunks, upper_body, 0)

    # Lane-dense, unmasked store of the per-tile partial sum.
    total = jnp.sum(acc_ref[...])
    out_ref[...] = jnp.full(out_ref.shape, total, dtype=jnp.float32)


def ranknet_loss(preds, labels, *, tile_m=256, tile_n=512):
    """preds, labels: 1-D float arrays of shape (N,). Returns scalar float32 loss."""
    n = int(preds.shape[0])
    preds = preds.astype(jnp.float32).reshape(n)
    labels = labels.astype(jnp.float32).reshape(n)

    # Row tile: fixed (sublane-aligned), independent of N; the inner column-chunk loop keeps
    # live temporaries at O(tile_m * tile_n) regardless of N.
    tile_m = int(min(tile_m, -(-n // 8) * 8))
    tile_m = max(8, (tile_m // 8) * 8)
    num_tiles = -(-n // tile_m)
    rows_pad = num_tiles * tile_m

    # Column chunk: lane-aligned; N is padded up to a whole number of chunks so no tail mask is
    # ever needed (padded rows/cols contribute exactly zero loss by construction).
    tile_n = int(min(tile_n, -(-n // 128) * 128))
    tile_n = max(128, (tile_n // 128) * 128)
    n_chunks = -(-n // tile_n)
    cols_pad = n_chunks * tile_n

    pc = jnp.full((rows_pad, 1), _ROW_PAD, jnp.float32).at[:n, 0].set(preds)
    lc = jnp.full((rows_pad, 1), _ROW_PAD, jnp.float32).at[:n, 0].set(labels)
    pr = jnp.full((cols_pad,), _COL_PAD, jnp.float32).at[:n].set(preds).reshape(n_chunks, 1, tile_n)
    lr = jnp.full((cols_pad,), _COL_PAD, jnp.float32).at[:n].set(labels).reshape(n_chunks, 1, tile_n)

    # Megacore (v7x) load balance: per-tile work shrinks with the tile index (upper triangle),
    # so interleave even/odd tiles across the two contiguous halves of the "parallel" grid axis.
    order_np = np.concatenate([np.arange(0, num_tiles, 2),
                               np.arange(1, num_tiles, 2)]).astype(np.int32)
    r0_np = order_np.astype(np.int64) * tile_m
    cstart_np = (r0_np // tile_n).astype(np.int32)
    cdiag_np = np.minimum(-(-(r0_np + tile_m) // tile_n), n_chunks).astype(np.int32)

    order = jnp.asarray(order_np)
    cstart = jnp.asarray(cstart_np)
    cdiag = jnp.asarray(cdiag_np)

    kernel = functools.partial(_ranknet_loss_kernel, tile_m=tile_m, tile_n=tile_n)

    partials = pl.pallas_call(
        kernel,
        out_shape=jax.ShapeDtypeStruct((num_tiles, 8, 128), jnp.float32),
        grid_spec=pltpu.PrefetchScalarGridSpec(
            num_scalar_prefetch=3,
            grid=(num_tiles,),
            in_specs=[
                pl.BlockSpec((tile_m, 1), lambda g, o, cs, cd: (o[g], 0)),        # preds[i]
                pl.BlockSpec((tile_m, 1), lambda g, o, cs, cd: (o[g], 0)),        # labels[i]
                pl.BlockSpec((n_chunks, 1, tile_n), lambda g, o, cs, cd: (0, 0, 0)),  # preds[j]
                pl.BlockSpec((n_chunks, 1, tile_n), lambda g, o, cs, cd: (0, 0, 0)),  # labels[j]
            ],
            out_specs=pl.BlockSpec((1, 8, 128), lambda g, o, cs, cd: (g, 0, 0)),
            scratch_shapes=[pltpu.VMEM((tile_m, 1), jnp.float32)],
        ),
        compiler_params=pltpu.CompilerParams(
            dimension_semantics=("parallel",),   # independent row tiles (megacore on v7x)
            vmem_limit_bytes=32 * 1024 * 1024,   # safe on v5e/v6e/v7x; ample for these tiles
        ),
    )(order, cstart, cdiag, pc, lc, pr, lr)

    # Tiny final reduction + normalization in plain JAX; float denominator avoids int32
    # overflow of n*n for large N.
    return jnp.sum(partials[:, 0, 0]) / jnp.float32(float(n) * float(n))


def _ranknet_loss_ref(preds, labels):
    """Pure-JAX reference mirroring the PyTorch forward (sigmoid + clamped logs)."""
    preds = preds.astype(jnp.float32)
    labels = labels.astype(jnp.float32)
    n = preds.shape[0]
    s_ij = preds[None, :] - preds[:, None]
    p_ij = 1.0 / (jnp.exp(s_ij) + 1.0)
    triu = jnp.triu(jnp.ones((n, n), bool), k=1)
    preds_prob = jnp.where(triu, p_ij, 0.0)
    labels_prob = jnp.where(triu & (labels[:, None] > labels[None, :]), 1.0, 0.0)
    log_p = jnp.maximum(jnp.log(preds_prob), -100.0)
    log_1mp = jnp.maximum(jnp.log(1.0 - preds_prob), -100.0)
    return jnp.mean(-(labels_prob * log_p + (1.0 - labels_prob) * log_1mp))


if __name__ == "__main__":
    # Two small sizes: one exercising padding of both rows and columns within a single diagonal
    # chunk, one exercising multiple row tiles plus mask-free above-diagonal chunks.
    for n in (300, 1200):
        key = jax.random.PRNGKey(0)
        k1, k2 = jax.random.split(key)
        preds = jax.random.normal(k1, (n,), dtype=jnp.float32)
        labels = jax.random.normal(k2, (n,), dtype=jnp.float32)

        loss = ranknet_loss(preds, labels)
        jax.block_until_ready(loss)

        ref = _ranknet_loss_ref(preds, labels)
        assert jnp.allclose(loss, ref, atol=1e-5, rtol=1e-5), (n, loss, ref)

    print("KERNEL_OK")
</pallas_src>

<mosaic_0001>
module attributes {stable_mosaic.version = 11 : i64} {
  func.func @_ranknet_loss_kernel(%arg0: i32, %arg1: memref<2xi32, #tpu.memory_space<smem>>, %arg2: memref<2xi32, #tpu.memory_space<smem>>, %arg3: memref<2xi32, #tpu.memory_space<smem>>, %arg4: memref<256x1xf32, #tpu.memory_space<vmem>>, %arg5: memref<256x1xf32, #tpu.memory_space<vmem>>, %arg6: memref<1x1x384xf32, #tpu.memory_space<vmem>>, %arg7: memref<1x1x384xf32, #tpu.memory_space<vmem>>, %arg8: memref<1x8x128xf32, #tpu.memory_space<vmem>>, %arg9: memref<256x1xf32, #tpu.memory_space<vmem>>) attributes {dimension_semantics = [#tpu.dimension_semantics<parallel>], iteration_bounds = array<i64: 2>, scalar_prefetch = 3 : i64, scratch_operands = 1 : i64, tpu.core_type = #tpu.core_type<tc>, window_params = [{transform_indices = @transform_0, window_bounds = array<i64: 256, 1>}, {transform_indices = @transform_1, window_bounds = array<i64: 256, 1>}, {pipeline_mode = #tpu.pipeline_mode<synchronous>, transform_indices = @transform_2, window_bounds = array<i64: 1, 1, 384>}, {pipeline_mode = #tpu.pipeline_mode<synchronous>, transform_indices = @transform_3, window_bounds = array<i64: 1, 1, 384>}, {transform_indices = @transform_4, window_bounds = array<i64: 1, 8, 128>}]} {
    %0 = arith.index_cast %arg0 : i32 to index
    %1 = memref.load %arg1[%0] : memref<2xi32, #tpu.memory_space<smem>>
    %c256_i32 = arith.constant 256 : i32
    %2 = arith.muli %1, %c256_i32 : i32
    %3 = arith.index_cast %arg0 : i32 to index
    %4 = memref.load %arg2[%3] : memref<2xi32, #tpu.memory_space<smem>>
    %5 = arith.index_cast %arg0 : i32 to index
    %6 = memref.load %arg3[%5] : memref<2xi32, #tpu.memory_space<smem>>
    %c0 = arith.constant 0 : index
    %c0_0 = arith.constant 0 : index
    %7 = vector.load %arg4[%c0, %c0_0] : memref<256x1xf32, #tpu.memory_space<vmem>>, vector<256x1xf32>
    %c0_1 = arith.constant 0 : index
    %c0_2 = arith.constant 0 : index
    %8 = vector.load %arg5[%c0_1, %c0_2] : memref<256x1xf32, #tpu.memory_space<vmem>>, vector<256x1xf32>
    %cst = arith.constant 0.000000e+00 : f32
    %9 = vector.broadcast %cst : f32 to vector<256x1xf32>
    %c0_3 = arith.constant 0 : index
    %c0_4 = arith.constant 0 : index
    %10 = vector.load %arg9[%c0_3, %c0_4] : memref<256x1xf32, #tpu.memory_space<vmem>>, vector<256x1xf32>
    tpu.vector_store %arg9[%c0_3, %c0_4], %9 {strides = array<i32>} : memref<256x1xf32, #tpu.memory_space<vmem>>, vector<256x1xf32>,
    %c0_i32 = arith.constant 0 : i32
    %11 = arith.subi %6, %4 : i32
    %12 = arith.addi %4, %11 : i32
    %c1_i32 = arith.constant 1 : i32
    scf.for %arg10 = %4 to %12 step %c1_i32  : i32 {
      %c0_14 = arith.constant 0 : index
      %c0_15 = arith.constant 0 : index
      %22 = vector.load %arg9[%c0_14, %c0_15] : memref<256x1xf32, #tpu.memory_space<vmem>>, vector<256x1xf32>
      %23 = arith.index_cast %arg10 : i32 to index
      %c0_16 = arith.constant 0 : index
      %c0_17 = arith.constant 0 : index
      %24 = vector.load %arg6[%23, %c0_16, %c0_17] : memref<1x1x384xf32, #tpu.memory_space<vmem>>, vector<1x1x384xf32>
      %25 = vector.shape_cast %24 : vector<1x1x384xf32> to vector<1x384xf32>
      %26 = arith.index_cast %arg10 : i32 to index
      %c0_18 = arith.constant 0 : index
      %c0_19 = arith.constant 0 : index
      %27 = vector.load %arg7[%26, %c0_18, %c0_19] : memref<1x1x384xf32, #tpu.memory_space<vmem>>, vector<1x1x384xf32>
      %28 = vector.shape_cast %27 : vector<1x1x384xf32> to vector<1x384xf32>
      %29 = vector.broadcast %7 : vector<256x1xf32> to vector<256x384xf32>
      %30 = vector.broadcast %25 : vector<1x384xf32> to vector<256x384xf32>
      %31 = arith.subf %29, %30 : vector<256x384xf32>
      %32 = vector.broadcast %8 : vector<256x1xf32> to vector<256x384xf32>
      %33 = vector.broadcast %28 : vector<1x384xf32> to vector<256x384xf32>
      %34 = arith.cmpf ogt, %32, %33 : vector<256x384xf32>
      %cst_20 = arith.constant 0.000000e+00 : f32
      %35 = vector.broadcast %cst_20 : f32 to vector<256x384xf32>
      %36 = arith.select %34, %31, %35 : vector<256x384xi1>, vector<256x384xf32>
      %cst_21 = arith.constant 0.000000e+00 : f32
      %37 = vector.broadcast %cst_21 : f32 to vector<256x384xf32>
      %38 = arith.maximumf %31, %37 : vector<256x384xf32>
      %39 = arith.subf %38, %36 : vector<256x384xf32>
      %40 = math.absf %31 : vector<256x384xf32>
      %cst_22 = arith.constant 0.000000e+00 : f32
      %41 = vector.broadcast %cst_22 : f32 to vector<256x384xf32>
      %42 = arith.subf %41, %40 : vector<256x384xf32>
      %43 = math.exp %42 : vector<256x384xf32>
      %cst_23 = arith.constant 1.000000e+00 : f32
      %44 = vector.broadcast %cst_23 : f32 to vector<256x384xf32>
      %45 = arith.addf %44, %43 : vector<256x384xf32>
      %46 = math.log %45 : vector<256x384xf32>
      %47 = arith.addf %39, %46 : vector<256x384xf32>
      %cst_24 = arith.constant 1.000000e+02 : f32
      %48 = vector.broadcast %cst_24 : f32 to vector<256x384xf32>
      %49 = arith.minimumf %47, %48 : vector<256x384xf32>
      %50 = tpu.iota {dimensions = array<i32: 0>} : vector<256x384xi32>
      %51 = vector.broadcast %2 : i32 to vector<256x384xi32>
      %52 = arith.addi %51, %50 : vector<256x384xi32>
      %c384_i32 = arith.constant 384 : i32
      %53 = arith.muli %arg10, %c384_i32 : i32
      %54 = tpu.iota {dimensions = array<i32: 1>} : vector<256x384xi32>
      %55 = vector.broadcast %53 : i32 to vector<256x384xi32>
      %56 = arith.addi %55, %54 : vector<256x384xi32>
      %57 = arith.cmpi sgt, %56, %52 : vector<256x384xi32>
      %cst_25 = arith.constant 0.000000e+00 : f32
      %58 = vector.broadcast %cst_25 : f32 to vector<256x384xf32>
      %59 = arith.select %57, %49, %58 : vector<256x384xi1>, vector<256x384xf32>
      %cst_26 = arith.constant dense<0.000000e+00> : vector<256xf32>
      %60 = vector.multi_reduction <add>, %59, %cst_26 [1] : vector<256x384xf32> to vector<256xf32>
      %61 = vector.shape_cast %60 : vector<256xf32> to vector<256x1xf32>
      %62 = arith.addf %22, %61 : vector<256x1xf32>
      %c0_27 = arith.constant 0 : index
      %c0_28 = arith.constant 0 : index
      %63 = vector.load %arg9[%c0_27, %c0_28] : memref<256x1xf32, #tpu.memory_space<vmem>>, vector<256x1xf32>
      tpu.vector_store %arg9[%c0_27, %c0_28], %62 {strides = array<i32>} : memref<256x1xf32, #tpu.memory_space<vmem>>, vector<256x1xf32>,
    }
    %c0_i32_5 = arith.constant 0 : i32
    %c1_i32_6 = arith.constant 1 : i32
    %13 = arith.subi %c1_i32_6, %6 : i32
    %14 = arith.addi %6, %13 : i32
    %c1_i32_7 = arith.constant 1 : i32
    scf.for %arg10 = %6 to %14 step %c1_i32_7  : i32 {
      %c0_14 = arith.constant 0 : index
      %c0_15 = arith.constant 0 : index
      %22 = vector.load %arg9[%c0_14, %c0_15] : memref<256x1xf32, #tpu.memory_space<vmem>>, vector<256x1xf32>
      %23 = arith.index_cast %arg10 : i32 to index
      %c0_16 = arith.constant 0 : index
      %c0_17 = arith.constant 0 : index
      %24 = vector.load %arg6[%23, %c0_16, %c0_17] : memref<1x1x384xf32, #tpu.memory_space<vmem>>, vector<1x1x384xf32>
      %25 = vector.shape_cast %24 : vector<1x1x384xf32> to vector<1x384xf32>
      %26 = arith.index_cast %arg10 : i32 to index
      %c0_18 = arith.constant 0 : index
      %c0_19 = arith.constant 0 : index
      %27 = vector.load %arg7[%26, %c0_18, %c0_19] : memref<1x1x384xf32, #tpu.memory_space<vmem>>, vector<1x1x384xf32>
      %28 = vector.shape_cast %27 : vector<1x1x384xf32> to vector<1x384xf32>
      %29 = vector.broadcast %7 : vector<256x1xf32> to vector<256x384xf32>
      %30 = vector.broadcast %25 : vector<1x384xf32> to vector<256x384xf32>
      %31 = arith.subf %29, %30 : vector<256x384xf32>
      %32 = vector.broadcast %8 : vector<256x1xf32> to vector<256x384xf32>
      %33 = vector.broadcast %28 : vector<1x384xf32> to vector<256x384xf32>
      %34 = arith.cmpf ogt, %32, %33 : vector<256x384xf32>
      %cst_20 = arith.constant 0.000000e+00 : f32
      %35 = vector.broadcast %cst_20 : f32 to vector<256x384xf32>
      %36 = arith.select %34, %31, %35 : vector<256x384xi1>, vector<256x384xf32>
      %cst_21 = arith.constant 0.000000e+00 : f32
      %37 = vector.broadcast %cst_21 : f32 to vector<256x384xf32>
      %38 = arith.maximumf %31, %37 : vector<256x384xf32>
      %39 = arith.subf %38, %36 : vector<256x384xf32>
      %40 = math.absf %31 : vector<256x384xf32>
      %cst_22 = arith.constant 0.000000e+00 : f32
      %41 = vector.broadcast %cst_22 : f32 to vector<256x384xf32>
      %42 = arith.subf %41, %40 : vector<256x384xf32>
      %43 = math.exp %42 : vector<256x384xf32>
      %cst_23 = arith.constant 1.000000e+00 : f32
      %44 = vector.broadcast %cst_23 : f32 to vector<256x384xf32>
      %45 = arith.addf %44, %43 : vector<256x384xf32>
      %46 = math.log %45 : vector<256x384xf32>
      %47 = arith.addf %39, %46 : vector<256x384xf32>
      %cst_24 = arith.constant 1.000000e+02 : f32
      %48 = vector.broadcast %cst_24 : f32 to vector<256x384xf32>
      %49 = arith.minimumf %47, %48 : vector<256x384xf32>
      %cst_25 = arith.constant dense<0.000000e+00> : vector<256xf32>
      %50 = vector.multi_reduction <add>, %49, %cst_25 [1] : vector<256x384xf32> to vector<256xf32>
      %51 = vector.shape_cast %50 : vector<256xf32> to vector<256x1xf32>
      %52 = arith.addf %22, %51 : vector<256x1xf32>
      %c0_26 = arith.constant 0 : index
      %c0_27 = arith.constant 0 : index
      %53 = vector.load %arg9[%c0_26, %c0_27] : memref<256x1xf32, #tpu.memory_space<vmem>>, vector<256x1xf32>
      tpu.vector_store %arg9[%c0_26, %c0_27], %52 {strides = array<i32>} : memref<256x1xf32, #tpu.memory_space<vmem>>, vector<256x1xf32>,
    }
    %c0_8 = arith.constant 0 : index
    %c0_9 = arith.constant 0 : index
    %15 = vector.load %arg9[%c0_8, %c0_9] : memref<256x1xf32, #tpu.memory_space<vmem>>, vector<256x1xf32>
    %16 = vector.shape_cast %15 : vector<256x1xf32> to vector<1x256x1xf32>
    %cst_10 = arith.constant dense<0.000000e+00> : vector<1xf32>
    %17 = vector.multi_reduction <add>, %16, %cst_10 [1, 2] : vector<1x256x1xf32> to vector<1xf32>
    %18 = vector.shape_cast %17 : vector<1xf32> to vector<1x1x1xf32>
    %19 = vector.extract %18[0, 0, 0] : f32 from vector<1x1x1xf32>
    %20 = vector.broadcast %19 : f32 to vector<1x8x128xf32>
    %c0_11 = arith.constant 0 : index
    %c0_12 = arith.constant 0 : index
    %c0_13 = arith.constant 0 : index
    %21 = vector.load %arg8[%c0_11, %c0_12, %c0_13] : memref<1x8x128xf32, #tpu.memory_space<vmem>>, vector<1x8x128xf32>
    tpu.vector_store %arg8[%c0_11, %c0_12, %c0_13], %20 {strides = array<i32>} : memref<1x8x128xf32, #tpu.memory_space<vmem>>, vector<1x8x128xf32>,
    return
  }
  func.func @transform_0(%arg0: i32, %arg1: memref<2xi32, #tpu.memory_space<smem>>, %arg2: memref<2xi32, #tpu.memory_space<smem>>, %arg3: memref<2xi32, #tpu.memory_space<smem>>) -> (i32, i32) {
    %0 = arith.index_cast %arg0 : i32 to index
    %1 = memref.load %arg1[%0] : memref<2xi32, #tpu.memory_space<smem>>
    %c0_i32 = arith.constant 0 : i32
    %c0_i32_0 = arith.constant 0 : i32
    return %1, %c0_i32 : i32, i32
  }
  func.func @transform_1(%arg0: i32, %arg1: memref<2xi32, #tpu.memory_space<smem>>, %arg2: memref<2xi32, #tpu.memory_space<smem>>, %arg3: memref<2xi32, #tpu.memory_space<smem>>) -> (i32, i32) {
    %0 = arith.index_cast %arg0 : i32 to index
    %1 = memref.load %arg1[%0] : memref<2xi32, #tpu.memory_space<smem>>
    %c0_i32 = arith.constant 0 : i32
    %c0_i32_0 = arith.constant 0 : i32
    return %1, %c0_i32 : i32, i32
  }
  func.func @transform_2(%arg0: i32, %arg1: memref<2xi32, #tpu.memory_space<smem>>, %arg2: memref<2xi32, #tpu.memory_space<smem>>, %arg3: memref<2xi32, #tpu.memory_space<smem>>) -> (i32, i32, i32) {
    %c0_i32 = arith.constant 0 : i32
    %c0_i32_0 = arith.constant 0 : i32
    %c0_i32_1 = arith.constant 0 : i32
    %c0_i32_2 = arith.constant 0 : i32
    return %c0_i32, %c0_i32_0, %c0_i32_1 : i32, i32, i32
  }
  func.func @transform_3(%arg0: i32, %arg1: memref<2xi32, #tpu.memory_space<smem>>, %arg2: memref<2xi32, #tpu.memory_space<smem>>, %arg3: memref<2xi32, #tpu.memory_space<smem>>) -> (i32, i32, i32) {
    %c0_i32 = arith.constant 0 : i32
    %c0_i32_0 = arith.constant 0 : i32
    %c0_i32_1 = arith.constant 0 : i32
    %c0_i32_2 = arith.constant 0 : i32
    return %c0_i32, %c0_i32_0, %c0_i32_1 : i32, i32, i32
  }
  func.func @transform_4(%arg0: i32, %arg1: memref<2xi32, #tpu.memory_space<smem>>, %arg2: memref<2xi32, #tpu.memory_space<smem>>, %arg3: memref<2xi32, #tpu.memory_space<smem>>) -> (i32, i32, i32) {
    %c0_i32 = arith.constant 0 : i32
    %c0_i32_0 = arith.constant 0 : i32
    %c0_i32_1 = arith.constant 0 : i32
    return %arg0, %c0_i32, %c0_i32_0 : i32, i32, i32
  }
}

</mosaic_0001>

<llo_original>
// kernel: tpu_custom_call.1
$region0: #{tpu_custom_call.1}
  #allocation0 [shape = 'u32[]', space=smem, size = 0x4, offset = 0x4, fixed_abs, tag = 'smem constant byte address 0x4 - core index']
  #allocation1 [shape = 'u32[144,128]{1,0:T(1,128)}', space=vmem, size = 0x12000, scoped, tag = 'internal scratch']
  #allocation2 [shape = 'f32[256,1]{1,0:T(8,128)}', space=vmem, size = 0x20000, scoped, tag = 'scratch operand']
  #allocation3 [shape = 's32[1]{0}', space=sflag, size = 0x4, scoped, tag = 'scoped memory for tpu_custom_call.1']
  #allocation4 [shape = 'u8[512]{0}', space=smem, size = 0x200, scoped, tag = 'prefetched SMEM operand 0']
  #allocation5 [shape = 'u8[512]{0}', space=smem, size = 0x200, scoped, tag = 'prefetched SMEM operand 1']
  #allocation6 [shape = 'u8[512]{0}', space=smem, size = 0x200, scoped, tag = 'prefetched SMEM operand 2']
  %s0 = inlined_call_operand.vmem [shape: s32[2], index: 0, kind: input, shape index: {}]
  %s1 = inlined_call_operand.vmem [shape: s32[2], index: 1, kind: input, shape index: {}]
  %s2 = inlined_call_operand.vmem [shape: s32[2], index: 2, kind: input, shape index: {}]
  %s3 = inlined_call_operand.vmem [shape: f32[512,1], index: 3, kind: input, shape index: {}]
  %s4 = inlined_call_operand.vmem [shape: f32[512,1], index: 4, kind: input, shape index: {}]
  %s5 = inlined_call_operand.vmem [shape: f32[1,1,384], index: 5, kind: input, shape index: {}]
  %s6 = inlined_call_operand.vmem [shape: f32[1,1,384], index: 6, kind: input, shape index: {}]
  %s7 = inlined_call_operand.hbm [shape: f32[2,8,128], index: 7, kind: output, shape index: {}]
  %s8 = sld [smem:[#allocation0]]
  $region63: #{tpu_custom_call.1} parent=0
    _
  %s10 = ssub.s32 1, %s8
  %s11 = scalar_select 0, %s10, %s8
  %s12 = sshll.u32 %s0, 4
  %s13 = int_to_ptr.vmem [resolvable:$true] %s12
  %15 = dma.vmem_to_smem %s13, 16, [#allocation4], [#allocation3]
  %s16 = sshll.u32 %s1, 4
  %s17 = int_to_ptr.vmem [resolvable:$true] %s16
  %19 = dma.vmem_to_smem %s17, 16, [#allocation5], [#allocation3]
  %s20 = sshll.u32 %s2, 4
  %s21 = int_to_ptr.vmem [resolvable:$true] %s20
  %23 = dma.vmem_to_smem %s21, 16, [#allocation6], [#allocation3]
  %24 = dma.done [#allocation3], 48
  %25 = sfence
  $region1: #{tpu_custom_call.1} parent=0
    #allocation7 [shape = 'u8[8192]{0}', space=vmem, size = 0x2000, scoped, tag = 'output window, operand 0']
    #allocation8 [shape = 's32[2]{0}', space=sflag, size = 0x8, scoped, tag = 'scoped memory for tpu_custom_call.1']
    %26 = vsyncpa [#allocation8], 0
    %s27 = scalar_lea.sflag [#allocation8], 1
    %28 = vsyncpa %s27, 0
    loop: start=0, step=1, limit=4
    $region2: #{tpu_custom_call.1} parent=1 // loop_pre_header
      _
    $region3: #{tpu_custom_call.1} parent=1 // loop_header
      %s30 = sphi 0, %s34
      %p31 = scmp.ge.s32.totalorder %s30, 4
      %s42 = sphi 0, %s44
      %s45 = sphi 0, %s42
      %s46 = sphi 0, %s45
      %s62 = sphi 0, %s46
      %s70 = sphi 0, %s72
      %s73 = sphi 0, %s70
      %s74 = sphi 0, %s73
      %s90 = sphi 0, %s74
      %s94 = sphi 0, %s94
      %s96 = sphi 0, %s94
      %s97 = sphi 0, %s96
      %s111 = sphi 0, %s97
      %s115 = sphi 0, %s115
      %s117 = sphi 0, %s115
      %s118 = sphi 0, %s117
      %s132 = sphi 0, %s118
      %s138 = sphi 0, %s140
      %s141 = sphi 0, %s138
      %s142 = sphi 0, %s141
      %s158 = sphi 0, %s142
    $region4: #{tpu_custom_call.1} parent=1 // loop_header_branch
      %33 = sbr.rel (%p31) target = $region8
    $region5: #{tpu_custom_call.1} parent=1 // loop_body
      %s35 = ssub.s32 %s30, 1
      %s36 = ssub.s32 %s30, 2
      %s37 = sadd.s32 %s30, 1
      %s38 = sld [smem:[#allocation4 + %s30]]
      %s39 = sld [smem:[#allocation4 + %s37]]
      %s40 = ssub.s32 %s38, %s39
      %p41 = scmp.eq.s32.totalorder %s40, 0
      %s43 = sadd.s32 %s42, 1
      %s44 = scalar_select %p41, %s42, %s43
      %p47 = pneg %p41
      %p48 = scmp.eq.s32.totalorder %s30, 1
      %p49 = por %p47, %p48
      %p50 = scmp.ne.s32.totalorder %s42, %s45
      %p51 = scmp.eq.s32.totalorder %s30, 0
      %p52 = por %p50, %p51
      %p53 = scmp.ne.s32.totalorder %s42, %s45
      %p54 = scmp.eq.s32.totalorder %s35, 1
      %p55 = por %p53, %p54
      %p56 = scmp.ne.s32.totalorder %s45, %s46
      %p57 = scmp.eq.s32.totalorder %s35, 0
      %p58 = por %p56, %p57
      %p59 = scmp.ne.s32.totalorder %s45, %s46
      %p60 = scmp.eq.s32.totalorder %s36, 1
      %p61 = por %p59, %p60
      %p63 = scmp.ne.s32.totalorder %s46, %s62
      %p64 = scmp.eq.s32.totalorder %s36, 0
      %p65 = por %p63, %p64
      %s66 = sld [smem:[#allocation4 + %s30]]
      %s67 = sld [smem:[#allocation4 + %s37]]
      %s68 = ssub.s32 %s66, %s67
      %p69 = scmp.eq.s32.totalorder %s68, 0
      %s71 = sadd.s32 %s70, 1
      %s72 = scalar_select %p69, %s70, %s71
      %p75 = pneg %p69
      %p76 = scmp.eq.s32.totalorder %s30, 1
      %p77 = por %p75, %p76
      %p78 = scmp.ne.s32.totalorder %s70, %s73
      %p79 = scmp.eq.s32.totalorder %s30, 0
      %p80 = por %p78, %p79
      %p81 = scmp.ne.s32.totalorder %s70, %s73
      %p82 = scmp.eq.s32.totalorder %s35, 1
      %p83 = por %p81, %p82
      %p84 = scmp.ne.s32.totalorder %s73, %s74
      %p85 = scmp.eq.s32.totalorder %s35, 0
      %p86 = por %p84, %p85
      %p87 = scmp.ne.s32.totalorder %s73, %s74
      %p88 = scmp.eq.s32.totalorder %s36, 1
      %p89 = por %p87, %p88
      %p91 = scmp.ne.s32.totalorder %s74, %s90
      %p92 = scmp.eq.s32.totalorder %s36, 0
      %p93 = por %p91, %p92
      %s95 = sadd.s32 %s94, 1
      %p98 = scmp.eq.s32.totalorder %s30, 1
      %p99 = scmp.ne.s32.totalorder %s94, %s96
      %p100 = scmp.eq.s32.totalorder %s30, 0
      %p101 = por %p99, %p100
      %p102 = scmp.ne.s32.totalorder %s94, %s96
      %p103 = scmp.eq.s32.totalorder %s35, 1
      %p104 = por %p102, %p103
      %p105 = scmp.ne.s32.totalorder %s96, %s97
      %p106 = scmp.eq.s32.totalorder %s35, 0
      %p107 = por %p105, %p106
      %p108 = scmp.ne.s32.totalorder %s96, %s97
      %p109 = scmp.eq.s32.totalorder %s36, 1
      %p110 = por %p108, %p109
      %p112 = scmp.ne.s32.totalorder %s97, %s111
      %p113 = scmp.eq.s32.totalorder %s36, 0
      %p114 = por %p112, %p113
      %s116 = sadd.s32 %s115, 1
      %p119 = scmp.eq.s32.totalorder %s30, 1
      %p120 = scmp.ne.s32.totalorder %s115, %s117
      %p121 = scmp.eq.s32.totalorder %s30, 0
      %p122 = por %p120, %p121
      %p123 = scmp.ne.s32.totalorder %s115, %s117
      %p124 = scmp.eq.s32.totalorder %s35, 1
      %p125 = por %p123, %p124
      %p126 = scmp.ne.s32.totalorder %s117, %s118
      %p127 = scmp.eq.s32.totalorder %s35, 0
      %p128 = por %p126, %p127
      %p129 = scmp.ne.s32.totalorder %s117, %s118
      %p130 = scmp.eq.s32.totalorder %s36, 1
      %p131 = por %p129, %p130
      %p133 = scmp.ne.s32.totalorder %s118, %s132
      %p134 = scmp.eq.s32.totalorder %s36, 0
      %p135 = por %p133, %p134
      %s136 = ssub.s32 %s30, %s37
      %p137 = scmp.eq.s32.totalorder %s136, 0
      %s139 = sadd.s32 %s138, 1
      %s140 = scalar_select %p137, %s138, %s139
      %p143 = pneg %p137
      %p144 = scmp.eq.s32.totalorder %s30, 1
      %p145 = por %p143, %p144
      %p146 = scmp.ne.s32.totalorder %s138, %s141
      %p147 = scmp.eq.s32.totalorder %s30, 0
      %p148 = por %p146, %p147
      %p149 = scmp.ne.s32.totalorder %s138, %s141
      %p150 = scmp.eq.s32.totalorder %s35, 1
      %p151 = por %p149, %p150
      %p152 = scmp.ne.s32.totalorder %s141, %s142
      %p153 = scmp.eq.s32.totalorder %s35, 0
      %p154 = por %p152, %p153
      %p155 = scmp.ne.s32.totalorder %s141, %s142
      %p156 = scmp.eq.s32.totalorder %s36, 1
      %p157 = por %p155, %p156
      %p159 = scmp.ne.s32.totalorder %s142, %s158
      %p160 = scmp.eq.s32.totalorder %s36, 0
      %p161 = por %p159, %p160
      %p162 = scmp.le.s32.totalorder 1, %s30
      %p163 = scmp.lt.s32.totalorder %s30, 3
      %p164 = pnand %p162, %p163
      %p165 = pneg %p164
      // Predicated region
      $region9: #{tpu_custom_call.1} parent=5 // pred_check
        _
      $region10: #{tpu_custom_call.1} parent=5 // pred_check_branch
        %167 = sbr.rel (%p164) target = $region12
      $region11: #{tpu_custom_call.1} parent=5 // pred_region
        %s168 = ssub.s32 %s30, 1
        // Predicated region
        $region13: #{tpu_custom_call.1} parent=11 // pred_check
          %p169 = pneg %p107
        $region14: #{tpu_custom_call.1} parent=11 // pred_check_branch
          %171 = sbr.rel (%p169) target = $region16
        $region15: #{tpu_custom_call.1} parent=11 // pred_region
          _
        $region16: #{tpu_custom_call.1} parent=11 // pred_fallthru
          _
        // Predicated region
        $region17: #{tpu_custom_call.1} parent=11 // pred_check
          %p172 = pneg %p128
        $region18: #{tpu_custom_call.1} parent=11 // pred_check_branch
          %174 = sbr.rel (%p172) target = $region20
        $region19: #{tpu_custom_call.1} parent=11 // pred_region
          _
        $region20: #{tpu_custom_call.1} parent=11 // pred_fallthru
          _
      $region12: #{tpu_custom_call.1} parent=5 // pred_fallthru
        _
      %p175 = scmp.lt.s32.totalorder %s30, 2
      // Predicated region
      $region21: #{tpu_custom_call.1} parent=5 // pred_check
        %p176 = pneg %p175
      $region22: #{tpu_custom_call.1} parent=5 // pred_check_branch
        %178 = sbr.rel (%p176) target = $region24
      $region23: #{tpu_custom_call.1} parent=5 // pred_region
        // Predicated region
        $region25: #{tpu_custom_call.1} parent=23 // pred_check
          %p179 = pneg %p52
        $region26: #{tpu_custom_call.1} parent=23 // pred_check_branch
          %181 = sbr.rel (%p179) target = $region28
        $region27: #{tpu_custom_call.1} parent=23 // pred_region
          %s182 = sld [smem:[#allocation4 + %s30]]
          %s183 = smul.u32 32, %s182
          %p184 = scmp.lt.s32.totalorder %s183, 63
          %s185 = scalar_select %p184, %s183, 63
          %s186 = smul.addr %s185, 8
          %s187 = scalar_lea.vmem %s3, %s186
          %s188 = sld [smem:[#allocation4 + %s30]]
          %s189 = smul.u32 32, %s188
        $region28: #{tpu_custom_call.1} parent=23 // pred_fallthru
          _
        // Predicated region
        $region29: #{tpu_custom_call.1} parent=23 // pred_check
          %p190 = pneg %p80
        $region30: #{tpu_custom_call.1} parent=23 // pred_check_branch
          %192 = sbr.rel (%p190) target = $region32
        $region31: #{tpu_custom_call.1} parent=23 // pred_region
          %s193 = sld [smem:[#allocation4 + %s30]]
          %s194 = smul.u32 32, %s193
          %p195 = scmp.lt.s32.totalorder %s194, 63
          %s196 = scalar_select %p195, %s194, 63
          %s197 = smul.addr %s196, 8
          %s198 = scalar_lea.vmem %s4, %s197
          %s199 = sld [smem:[#allocation4 + %s30]]
          %s200 = smul.u32 32, %s199
        $region32: #{tpu_custom_call.1} parent=23 // pred_fallthru
          _
      $region24: #{tpu_custom_call.1} parent=5 // pred_fallthru
        _
      %p201 = scmp.le.s32.totalorder 1, %s30
      %p202 = scmp.lt.s32.totalorder %s30, 3
      %p203 = pnand %p201, %p202
      %p204 = pneg %p203
      // Predicated region
      $region33: #{tpu_custom_call.1} parent=5 // pred_check
        _
      $region34: #{tpu_custom_call.1} parent=5 // pred_check_branch
        %206 = sbr.rel (%p203) target = $region36
      $region35: #{tpu_custom_call.1} parent=5 // pred_region
        %s207 = ssub.s32 %s30, 1
        %s208 = sld [smem:[#allocation4 + %s35]]
        %s209 = smul.u32 32, %s208
        %p210 = scmp.lt.s32.totalorder %s209, 63
        %s211 = scalar_select %p210, %s209, 63
        %s212 = smul.addr %s211, 8
        %s213 = scalar_lea.vmem %s3, %s212
        %p214 = pneg %p58
        %p215 = pneg %p55
        %s216 = sld [smem:[#allocation4 + %s35]]
        %s217 = smul.u32 32, %s216
        %p218 = scmp.lt.s32.totalorder %s217, 63
        %s219 = scalar_select %p218, %s217, 63
        %s220 = smul.addr %s219, 8
        %s221 = scalar_lea.vmem %s4, %s220
        %p222 = pneg %p86
        %p223 = pneg %p83
        %p224 = pneg %p107
        %p225 = pneg %p104
        %p226 = pneg %p128
        %p227 = pneg %p125
        %p228 = pneg %p154
        %p229 = pneg %p151
        %s230 = sand.u32 %s141, 1
        %s231 = scalar_lea.sflag [#allocation8], %s230
        %s232 = sand.u32 %s141, 1
        %s233 = smul.addr %s232, 8
        %s234 = scalar_lea.vmem [#allocation7], %s233
        %s235 = sld [smem:[#allocation4 + %s35]]
        %s236 = smul.u32 32, %s235
        %p237 = scmp.lt.s32.totalorder %s236, 63
        %s238 = scalar_select %p237, %s236, 63
        %s239 = smul.addr %s238, 8
        %s240 = scalar_lea.vmem %s3, %s239
        %s241 = sld [smem:[#allocation4 + %s35]]
        %s242 = smul.u32 32, %s241
        %s243 = sld [smem:[#allocation4 + %s35]]
        %s244 = smul.u32 32, %s243
        %p245 = scmp.lt.s32.totalorder %s244, 63
        %s246 = scalar_select %p245, %s244, 63
        %s247 = smul.addr %s246, 8
        %s248 = scalar_lea.vmem %s4, %s247
        %s249 = sld [smem:[#allocation4 + %s35]]
        %s250 = smul.u32 32, %s249
        %s251 = sld [smem:[#allocation4 + %s35]]
        %s252 = smul.u32 %s251, 256
        %s253 = sld [smem:[#allocation5 + %s35]]
        %s254 = sld [smem:[#allocation6 + %s35]]
        %v255 = vld [vmem:[%s240] sm:$0xff]
        %v256 = vld [vmem:[%s240 + $0x8] sm:$0xff]
        %v257 = vld [vmem:[%s240 + $0x10] sm:$0xff]
        %v258 = vld [vmem:[%s240 + $0x18] sm:$0xff]
        %v259 = vld [vmem:[%s240 + $0x20] sm:$0xff]
        %v260 = vld [vmem:[%s240 + $0x28] sm:$0xff]
        %v261 = vld [vmem:[%s240 + $0x30] sm:$0xff]
        %v262 = vld [vmem:[%s240 + $0x38] sm:$0xff]
        %v263 = vld [vmem:[%s240 + $0x40] sm:$0xff]
        %v264 = vld [vmem:[%s240 + $0x48] sm:$0xff]
        %v265 = vld [vmem:[%s240 + $0x50] sm:$0xff]
        %v266 = vld [vmem:[%s240 + $0x58] sm:$0xff]
        %v267 = vld [vmem:[%s240 + $0x60] sm:$0xff]
        %v268 = vld [vmem:[%s240 + $0x68] sm:$0xff]
        %v269 = vld [vmem:[%s240 + $0x70] sm:$0xff]
        %v270 = vld [vmem:[%s240 + $0x78] sm:$0xff]
        %v271 = vld [vmem:[%s240 + $0x80] sm:$0xff]
        %v272 = vld [vmem:[%s240 + $0x88] sm:$0xff]
        %v273 = vld [vmem:[%s240 + $0x90] sm:$0xff]
        %v274 = vld [vmem:[%s240 + $0x98] sm:$0xff]
        %v275 = vld [vmem:[%s240 + $0xa0] sm:$0xff]
        %v276 = vld [vmem:[%s240 + $0xa8] sm:$0xff]
        %v277 = vld [vmem:[%s240 + $0xb0] sm:$0xff]
        %v278 = vld [vmem:[%s240 + $0xb8] sm:$0xff]
        %v279 = vld [vmem:[%s240 + $0xc0] sm:$0xff]
        %v280 = vld [vmem:[%s240 + $0xc8] sm:$0xff]
        %v281 = vld [vmem:[%s240 + $0xd0] sm:$0xff]
        %v282 = vld [vmem:[%s240 + $0xd8] sm:$0xff]
        %v283 = vld [vmem:[%s240 + $0xe0] sm:$0xff]
        %v284 = vld [vmem:[%s240 + $0xe8] sm:$0xff]
        %v285 = vld [vmem:[%s240 + $0xf0] sm:$0xff]
        %v286 = vld [vmem:[%s240 + $0xf8] sm:$0xff]
        %v287 = vld [vmem:[%s248] sm:$0xff]
        %v288 = vld [vmem:[%s248 + $0x8] sm:$0xff]
        %v289 = vld [vmem:[%s248 + $0x10] sm:$0xff]
        %v290 = vld [vmem:[%s248 + $0x18] sm:$0xff]
        %v291 = vld [vmem:[%s248 + $0x20] sm:$0xff]
        %v292 = vld [vmem:[%s248 + $0x28] sm:$0xff]
        %v293 = vld [vmem:[%s248 + $0x30] sm:$0xff]
        %v294 = vld [vmem:[%s248 + $0x38] sm:$0xff]
        %v295 = vld [vmem:[%s248 + $0x40] sm:$0xff]
        %v296 = vld [vmem:[%s248 + $0x48] sm:$0xff]
        %v297 = vld [vmem:[%s248 + $0x50] sm:$0xff]
        %v298 = vld [vmem:[%s248 + $0x58] sm:$0xff]
        %v299 = vld [vmem:[%s248 + $0x60] sm:$0xff]
        %v300 = vld [vmem:[%s248 + $0x68] sm:$0xff]
        %v301 = vld [vmem:[%s248 + $0x70] sm:$0xff]
        %v302 = vld [vmem:[%s248 + $0x78] sm:$0xff]
        %v303 = vld [vmem:[%s248 + $0x80] sm:$0xff]
        %v304 = vld [vmem:[%s248 + $0x88] sm:$0xff]
        %v305 = vld [vmem:[%s248 + $0x90] sm:$0xff]
        %v306 = vld [vmem:[%s248 + $0x98] sm:$0xff]
        %v307 = vld [vmem:[%s248 + $0xa0] sm:$0xff]
        %v308 = vld [vmem:[%s248 + $0xa8] sm:$0xff]
        %v309 = vld [vmem:[%s248 + $0xb0] sm:$0xff]
        %v310 = vld [vmem:[%s248 + $0xb8] sm:$0xff]
        %v311 = vld [vmem:[%s248 + $0xc0] sm:$0xff]
        %v312 = vld [vmem:[%s248 + $0xc8] sm:$0xff]
        %v313 = vld [vmem:[%s248 + $0xd0] sm:$0xff]
        %v314 = vld [vmem:[%s248 + $0xd8] sm:$0xff]
        %v315 = vld [vmem:[%s248 + $0xe0] sm:$0xff]
        %v316 = vld [vmem:[%s248 + $0xe8] sm:$0xff]
        %v317 = vld [vmem:[%s248 + $0xf0] sm:$0xff]
        %v318 = vld [vmem:[%s248 + $0xf8] sm:$0xff]
        %vm319 = vcmask 7168
        %320 = vst.msk [vmem:[#allocation2] sm:$0xff] %vm319, 0.0
        %321 = vst.msk [vmem:[#allocation2 + $0x8] sm:$0xff] %vm319, 0.0
        %322 = vst.msk [vmem:[#allocation2 + $0x10] sm:$0xff] %vm319, 0.0
        %323 = vst.msk [vmem:[#allocation2 + $0x18] sm:$0xff] %vm319, 0.0
        %324 = vst.msk [vmem:[#allocation2 + $0x20] sm:$0xff] %vm319, 0.0
        %325 = vst.msk [vmem:[#allocation2 + $0x28] sm:$0xff] %vm319, 0.0
        %326 = vst.msk [vmem:[#allocation2 + $0x30] sm:$0xff] %vm319, 0.0
        %327 = vst.msk [vmem:[#allocation2 + $0x38] sm:$0xff] %vm319, 0.0
        %328 = vst.msk [vmem:[#allocation2 + $0x40] sm:$0xff] %vm319, 0.0
        %329 = vst.msk [vmem:[#allocation2 + $0x48] sm:$0xff] %vm319, 0.0
        %330 = vst.msk [vmem:[#allocation2 + $0x50] sm:$0xff] %vm319, 0.0
        %331 = vst.msk [vmem:[#allocation2 + $0x58] sm:$0xff] %vm319, 0.0
        %332 = vst.msk [vmem:[#allocation2 + $0x60] sm:$0xff] %vm319, 0.0
        %333 = vst.msk [vmem:[#allocation2 + $0x68] sm:$0xff] %vm319, 0.0
        %334 = vst.msk [vmem:[#allocation2 + $0x70] sm:$0xff] %vm319, 0.0
        %335 = vst.msk [vmem:[#allocation2 + $0x78] sm:$0xff] %vm319, 0.0
        %336 = vst.msk [vmem:[#allocation2 + $0x80] sm:$0xff] %vm319, 0.0
        %337 = vst.msk [vmem:[#allocation2 + $0x88] sm:$0xff] %vm319, 0.0
        %338 = vst.msk [vmem:[#allocation2 + $0x90] sm:$0xff] %vm319, 0.0
        %339 = vst.msk [vmem:[#allocation2 + $0x98] sm:$0xff] %vm319, 0.0
        %340 = vst.msk [vmem:[#allocation2 + $0xa0] sm:$0xff] %vm319, 0.0
        %341 = vst.msk [vmem:[#allocation2 + $0xa8] sm:$0xff] %vm319, 0.0
        %342 = vst.msk [vmem:[#allocation2 + $0xb0] sm:$0xff] %vm319, 0.0
        %343 = vst.msk [vmem:[#allocation2 + $0xb8] sm:$0xff] %vm319, 0.0
        %344 = vst.msk [vmem:[#allocation2 + $0xc0] sm:$0xff] %vm319, 0.0
        %345 = vst.msk [vmem:[#allocation2 + $0xc8] sm:$0xff] %vm319, 0.0
        %346 = vst.msk [vmem:[#allocation2 + $0xd0] sm:$0xff] %vm319, 0.0
        %347 = vst.msk [vmem:[#allocation2 + $0xd8] sm:$0xff] %vm319, 0.0
        %348 = vst.msk [vmem:[#allocation2 + $0xe0] sm:$0xff] %vm319, 0.0
        %349 = vst.msk [vmem:[#allocation2 + $0xe8] sm:$0xff] %vm319, 0.0
        %350 = vst.msk [vmem:[#allocation2 + $0xf0] sm:$0xff] %vm319, 0.0
        %351 = vst.msk [vmem:[#allocation2 + $0xf8] sm:$0xff] %vm319, 0.0
        // While loop
        $region37: #{tpu_custom_call.1} parent=35 // loop_pre_header
          _
        $region38: #{tpu_custom_call.1} parent=35 // loop_header
          %s353 = sphi %s253, %s355
          %p354 = scmp.ge.s32.totalorder %s353, %s254
        $region39: #{tpu_custom_call.1} parent=35 // loop_header_branch
          %357 = sbr.rel (%p354) target = $region43
        $region40: #{tpu_custom_call.1} parent=35 // loop_body
          %v358 = vld [vmem:[#allocation2] sm:$0xff]
          %v359 = vld [vmem:[#allocation2 + $0x8] sm:$0xff]
          %v360 = vld [vmem:[#allocation2 + $0x10] sm:$0xff]
          %v361 = vld [vmem:[#allocation2 + $0x18] sm:$0xff]
          %v362 = vld [vmem:[#allocation2 + $0x20] sm:$0xff]
          %v363 = vld [vmem:[#allocation2 + $0x28] sm:$0xff]
          %v364 = vld [vmem:[#allocation2 + $0x30] sm:$0xff]
          %v365 = vld [vmem:[#allocation2 + $0x38] sm:$0xff]
          %v366 = vld [vmem:[#allocation2 + $0x40] sm:$0xff]
          %v367 = vld [vmem:[#allocation2 + $0x48] sm:$0xff]
          %v368 = vld [vmem:[#allocation2 + $0x50] sm:$0xff]
          %v369 = vld [vmem:[#allocation2 + $0x58] sm:$0xff]
          %v370 = vld [vmem:[#allocation2 + $0x60] sm:$0xff]
          %v371 = vld [vmem:[#allocation2 + $0x68] sm:$0xff]
          %v372 = vld [vmem:[#allocation2 + $0x70] sm:$0xff]
          %v373 = vld [vmem:[#allocation2 + $0x78] sm:$0xff]
          %v374 = vld [vmem:[#allocation2 + $0x80] sm:$0xff]
          %v375 = vld [vmem:[#allocation2 + $0x88] sm:$0xff]
          %v376 = vld [vmem:[#allocation2 + $0x90] sm:$0xff]
          %v377 = vld [vmem:[#allocation2 + $0x98] sm:$0xff]
          %v378 = vld [vmem:[#allocation2 + $0xa0] sm:$0xff]
          %v379 = vld [vmem:[#allocation2 + $0xa8] sm:$0xff]
          %v380 = vld [vmem:[#allocation2 + $0xb0] sm:$0xff]
          %v381 = vld [vmem:[#allocation2 + $0xb8] sm:$0xff]
          %v382 = vld [vmem:[#allocation2 + $0xc0] sm:$0xff]
          %v383 = vld [vmem:[#allocation2 + $0xc8] sm:$0xff]
          %v384 = vld [vmem:[#allocation2 + $0xd0] sm:$0xff]
          %v385 = vld [vmem:[#allocation2 + $0xd8] sm:$0xff]
          %v386 = vld [vmem:[#allocation2 + $0xe0] sm:$0xff]
          %v387 = vld [vmem:[#allocation2 + $0xe8] sm:$0xff]
          %v388 = vld [vmem:[#allocation2 + $0xf0] sm:$0xff]
          %v389 = vld [vmem:[#allocation2 + $0xf8] sm:$0xff]
          %s390 = smul.u32 %s353, 3
          %s391 = scalar_lea.vmem %s5, %s390
          %v392 = vld [vmem:[%s391] sm:$0x7]
          %s393 = scalar_lea.vmem %s6, %s390
          %v394 = vld [vmem:[%s393] sm:$0x7]
          %396 = vset.pattern.permute.xlu0 0
          %397 = vperm.xlu0 %396, %v255
          %v398 = vpop.permute.xlu0 %397
          %401 = vset.pattern.permute.xlu0 0
          %402 = vperm.xlu0 %401, %v256
          %v403 = vpop.permute.xlu0 %402
          %406 = vset.pattern.permute.xlu0 0
          %407 = vperm.xlu0 %406, %v257
          %v408 = vpop.permute.xlu0 %407
          %411 = vset.pattern.permute.xlu0 0
          %412 = vperm.xlu0 %411, %v258
          %v413 = vpop.permute.xlu0 %412
          %416 = vset.pattern.permute.xlu0 0
          %417 = vperm.xlu0 %416, %v259
          %v418 = vpop.permute.xlu0 %417
          %421 = vset.pattern.permute.xlu0 0
          %422 = vperm.xlu0 %421, %v260
          %v423 = vpop.permute.xlu0 %422
          %426 = vset.pattern.permute.xlu0 0
          %427 = vperm.xlu0 %426, %v261
          %v428 = vpop.permute.xlu0 %427
          %431 = vset.pattern.permute.xlu0 0
          %432 = vperm.xlu0 %431, %v262
          %v433 = vpop.permute.xlu0 %432
          %436 = vset.pattern.permute.xlu0 0
          %437 = vperm.xlu0 %436, %v263
          %v438 = vpop.permute.xlu0 %437
          %441 = vset.pattern.permute.xlu0 0
          %442 = vperm.xlu0 %441, %v264
          %v443 = vpop.permute.xlu0 %442
          %446 = vset.pattern.permute.xlu0 0
          %447 = vperm.xlu0 %446, %v265
          %v448 = vpop.permute.xlu0 %447
          %451 = vset.pattern.permute.xlu0 0
          %452 = vperm.xlu0 %451, %v266
          %v453 = vpop.permute.xlu0 %452
          %456 = vset.pattern.permute.xlu0 0
          %457 = vperm.xlu0 %456, %v267
          %v458 = vpop.permute.xlu0 %457
          %461 = vset.pattern.permute.xlu0 0
          %462 = vperm.xlu0 %461, %v268
          %v463 = vpop.permute.xlu0 %462
          %466 = vset.pattern.permute.xlu0 0
          %467 = vperm.xlu0 %466, %v269
          %v468 = vpop.permute.xlu0 %467
          %471 = vset.pattern.permute.xlu0 0
          %472 = vperm.xlu0 %471, %v270
          %v473 = vpop.permute.xlu0 %472
          %476 = vset.pattern.permute.xlu0 0
          %477 = vperm.xlu0 %476, %v271
          %v478 = vpop.permute.xlu0 %477
          %481 = vset.pattern.permute.xlu0 0
          %482 = vperm.xlu0 %481, %v272
          %v483 = vpop.permute.xlu0 %482
          %486 = vset.pattern.permute.xlu0 0
          %487 = vperm.xlu0 %486, %v273
          %v488 = vpop.permute.xlu0 %487
          %491 = vset.pattern.permute.xlu0 0
          %492 = vperm.xlu0 %491, %v274
          %v493 = vpop.permute.xlu0 %492
          %496 = vset.pattern.permute.xlu0 0
          %497 = vperm.xlu0 %496, %v275
          %v498 = vpop.permute.xlu0 %497
          %501 = vset.pattern.permute.xlu0 0
          %502 = vperm.xlu0 %501, %v276
          %v503 = vpop.permute.xlu0 %502
          %506 = vset.pattern.permute.xlu0 0
          %507 = vperm.xlu0 %506, %v277
          %v508 = vpop.permute.xlu0 %507
          %511 = vset.pattern.permute.xlu0 0
          %512 = vperm.xlu0 %511, %v278
          %v513 = vpop.permute.xlu0 %512
          %516 = vset.pattern.permute.xlu0 0
          %517 = vperm.xlu0 %516, %v279
          %v518 = vpop.permute.xlu0 %517
          %521 = vset.pattern.permute.xlu0 0
          %522 = vperm.xlu0 %521, %v280
          %v523 = vpop.permute.xlu0 %522
          %526 = vset.pattern.permute.xlu0 0
          %527 = vperm.xlu0 %526, %v281
          %v528 = vpop.permute.xlu0 %527
          %531 = vset.pattern.permute.xlu0 0
          %532 = vperm.xlu0 %531, %v282
          %v533 = vpop.permute.xlu0 %532
          %536 = vset.pattern.permute.xlu0 0
          %537 = vperm.xlu0 %536, %v283
          %v538 = vpop.permute.xlu0 %537
          %541 = vset.pattern.permute.xlu0 0
          %542 = vperm.xlu0 %541, %v284
          %v543 = vpop.permute.xlu0 %542
          %546 = vset.pattern.permute.xlu0 0
          %547 = vperm.xlu0 %546, %v285
          %v548 = vpop.permute.xlu0 %547
          %551 = vset.pattern.permute.xlu0 0
          %552 = vperm.xlu0 %551, %v286
          %v553 = vpop.permute.xlu0 %552
          %v556 = vlaneseq
          %v557 = vshrl.u32 %v556, 7
          %v558 = vsub.s32 0, %v557
          %v559 = vrot.slane %v392, %v558
          %v560 = vlaneseq
          %v561 = vshrl.u32 %v560, 7
          %v562 = vsub.s32 1, %v561
          %v563 = vrot.slane %v392, %v562
          %v564 = vlaneseq
          %v565 = vshrl.u32 %v564, 7
          %v566 = vsub.s32 2, %v565
          %v567 = vrot.slane %v392, %v566
          %v571 = vsub.f32 %v398, %v559
          %v572 = vsub.f32 %v398, %v563
          %v573 = vsub.f32 %v398, %v567
          %v574 = vsub.f32 %v403, %v559
          %v575 = vsub.f32 %v403, %v563
          %v576 = vsub.f32 %v403, %v567
          %v577 = vsub.f32 %v408, %v559
          %v578 = vsub.f32 %v408, %v563
          %v579 = vsub.f32 %v408, %v567
          %v580 = vsub.f32 %v413, %v559
          %v581 = vsub.f32 %v413, %v563
          %v582 = vsub.f32 %v413, %v567
          %v583 = vsub.f32 %v418, %v559
          %v584 = vsub.f32 %v418, %v563
          %v585 = vsub.f32 %v418, %v567
          %v586 = vsub.f32 %v423, %v559
          %v587 = vsub.f32 %v423, %v563
          %v588 = vsub.f32 %v423, %v567
          %v589 = vsub.f32 %v428, %v559
          %v590 = vsub.f32 %v428, %v563
          %v591 = vsub.f32 %v428, %v567
          %v592 = vsub.f32 %v433, %v559
          %v593 = vsub.f32 %v433, %v563
          %v594 = vsub.f32 %v433, %v567
          %v595 = vsub.f32 %v438, %v559
          %v596 = vsub.f32 %v438, %v563
          %v597 = vsub.f32 %v438, %v567
          %v598 = vsub.f32 %v443, %v559
          %v599 = vsub.f32 %v443, %v563
          %v600 = vsub.f32 %v443, %v567
          %v601 = vsub.f32 %v448, %v559
          %v602 = vsub.f32 %v448, %v563
          %v603 = vsub.f32 %v448, %v567
          %v604 = vsub.f32 %v453, %v559
          %v605 = vsub.f32 %v453, %v563
          %v606 = vsub.f32 %v453, %v567
          %v607 = vsub.f32 %v458, %v559
          %v608 = vsub.f32 %v458, %v563
          %v609 = vsub.f32 %v458, %v567
          %v610 = vsub.f32 %v463, %v559
          %v611 = vsub.f32 %v463, %v563
          %v612 = vsub.f32 %v463, %v567
          %v613 = vsub.f32 %v468, %v559
          %v614 = vsub.f32 %v468, %v563
          %v615 = vsub.f32 %v468, %v567
          %v616 = vsub.f32 %v473, %v559
          %v617 = vsub.f32 %v473, %v563
          %v618 = vsub.f32 %v473, %v567
          %v619 = vsub.f32 %v478, %v559
          %v620 = vsub.f32 %v478, %v563
          %v621 = vsub.f32 %v478, %v567
          %v622 = vsub.f32 %v483, %v559
          %v623 = vsub.f32 %v483, %v563
          %v624 = vsub.f32 %v483, %v567
          %v625 = vsub.f32 %v488, %v559
          %v626 = vsub.f32 %v488, %v563
          %v627 = vsub.f32 %v488, %v567
          %v628 = vsub.f32 %v493, %v559
          %v629 = vsub.f32 %v493, %v563
          %v630 = vsub.f32 %v493, %v567
          %v631 = vsub.f32 %v498, %v559
          %v632 = vsub.f32 %v498, %v563
          %v633 = vsub.f32 %v498, %v567
          %v634 = vsub.f32 %v503, %v559
          %v635 = vsub.f32 %v503, %v563
          %v636 = vsub.f32 %v503, %v567
          %v637 = vsub.f32 %v508, %v559
          %v638 = vsub.f32 %v508, %v563
          %v639 = vsub.f32 %v508, %v567
          %v640 = vsub.f32 %v513, %v559
          %v641 = vsub.f32 %v513, %v563
          %v642 = vsub.f32 %v513, %v567
          %v643 = vsub.f32 %v518, %v559
          %v644 = vsub.f32 %v518, %v563
          %v645 = vsub.f32 %v518, %v567
          %v646 = vsub.f32 %v523, %v559
          %v647 = vsub.f32 %v523, %v563
          %v648 = vsub.f32 %v523, %v567
          %v649 = vsub.f32 %v528, %v559
          %v650 = vsub.f32 %v528, %v563
          %v651 = vsub.f32 %v528, %v567
          %v652 = vsub.f32 %v533, %v559
          %v653 = vsub.f32 %v533, %v563
          %v654 = vsub.f32 %v533, %v567
          %v655 = vsub.f32 %v538, %v559
          %v656 = vsub.f32 %v538, %v563
          %v657 = vsub.f32 %v538, %v567
          %v658 = vsub.f32 %v543, %v559
          %v659 = vsub.f32 %v543, %v563
          %v660 = vsub.f32 %v543, %v567
          %v661 = vsub.f32 %v548, %v559
          %v662 = vsub.f32 %v548, %v563
          %v663 = vsub.f32 %v548, %v567
          %v664 = vsub.f32 %v553, %v559
          %v665 = vsub.f32 %v553, %v563
          %v666 = vsub.f32 %v553, %v567
          %668 = vset.pattern.permute.xlu0 0
          %669 = vperm.xlu0 %668, %v287
          %v670 = vpop.permute.xlu0 %669
          %673 = vset.pattern.permute.xlu0 0
          %674 = vperm.xlu0 %673, %v288
          %v675 = vpop.permute.xlu0 %674
          %678 = vset.pattern.permute.xlu0 0
          %679 = vperm.xlu0 %678, %v289
          %v680 = vpop.permute.xlu0 %679
          %683 = vset.pattern.permute.xlu0 0
          %684 = vperm.xlu0 %683, %v290
          %v685 = vpop.permute.xlu0 %684
          %688 = vset.pattern.permute.xlu0 0
          %689 = vperm.xlu0 %688, %v291
          %v690 = vpop.permute.xlu0 %689
          %693 = vset.pattern.permute.xlu0 0
          %694 = vperm.xlu0 %693, %v292
          %v695 = vpop.permute.xlu0 %694
          %698 = vset.pattern.permute.xlu0 0
          %699 = vperm.xlu0 %698, %v293
          %v700 = vpop.permute.xlu0 %699
          %703 = vset.pattern.permute.xlu0 0
          %704 = vperm.xlu0 %703, %v294
          %v705 = vpop.permute.xlu0 %704
          %708 = vset.pattern.permute.xlu0 0
          %709 = vperm.xlu0 %708, %v295
          %v710 = vpop.permute.xlu0 %709
          %713 = vset.pattern.permute.xlu0 0
          %714 = vperm.xlu0 %713, %v296
          %v715 = vpop.permute.xlu0 %714
          %718 = vset.pattern.permute.xlu0 0
          %719 = vperm.xlu0 %718, %v297
          %v720 = vpop.permute.xlu0 %719
          %723 = vset.pattern.permute.xlu0 0
          %724 = vperm.xlu0 %723, %v298
          %v725 = vpop.permute.xlu0 %724
          %728 = vset.pattern.permute.xlu0 0
          %729 = vperm.xlu0 %728, %v299
          %v730 = vpop.permute.xlu0 %729
          %733 = vset.pattern.permute.xlu0 0
          %734 = vperm.xlu0 %733, %v300
          %v735 = vpop.permute.xlu0 %734
          %738 = vset.pattern.permute.xlu0 0
          %739 = vperm.xlu0 %738, %v301
          %v740 = vpop.permute.xlu0 %739
          %743 = vset.pattern.permute.xlu0 0
          %744 = vperm.xlu0 %743, %v302
          %v745 = vpop.permute.xlu0 %744
          %748 = vset.pattern.permute.xlu0 0
          %749 = vperm.xlu0 %748, %v303
          %v750 = vpop.permute.xlu0 %749
          %753 = vset.pattern.permute.xlu0 0
          %754 = vperm.xlu0 %753, %v304
          %v755 = vpop.permute.xlu0 %754
          %758 = vset.pattern.permute.xlu0 0
          %759 = vperm.xlu0 %758, %v305
          %v760 = vpop.permute.xlu0 %759
          %763 = vset.pattern.permute.xlu0 0
          %764 = vperm.xlu0 %763, %v306
          %v765 = vpop.permute.xlu0 %764
          %768 = vset.pattern.permute.xlu0 0
          %769 = vperm.xlu0 %768, %v307
          %v770 = vpop.permute.xlu0 %769
          %773 = vset.pattern.permute.xlu0 0
          %774 = vperm.xlu0 %773, %v308
          %v775 = vpop.permute.xlu0 %774
          %778 = vset.pattern.permute.xlu0 0
          %779 = vperm.xlu0 %778, %v309
          %v780 = vpop.permute.xlu0 %779
          %783 = vset.pattern.permute.xlu0 0
          %784 = vperm.xlu0 %783, %v310
          %v785 = vpop.permute.xlu0 %784
          %788 = vset.pattern.permute.xlu0 0
          %789 = vperm.xlu0 %788, %v311
          %v790 = vpop.permute.xlu0 %789
          %793 = vset.pattern.permute.xlu0 0
          %794 = vperm.xlu0 %793, %v312
          %v795 = vpop.permute.xlu0 %794
          %798 = vset.pattern.permute.xlu0 0
          %799 = vperm.xlu0 %798, %v313
          %v800 = vpop.permute.xlu0 %799
          %803 = vset.pattern.permute.xlu0 0
          %804 = vperm.xlu0 %803, %v314
          %v805 = vpop.permute.xlu0 %804
          %808 = vset.pattern.permute.xlu0 0
          %809 = vperm.xlu0 %808, %v315
          %v810 = vpop.permute.xlu0 %809
          %813 = vset.pattern.permute.xlu0 0
          %814 = vperm.xlu0 %813, %v316
          %v815 = vpop.permute.xlu0 %814
          %818 = vset.pattern.permute.xlu0 0
          %819 = vperm.xlu0 %818, %v317
          %v820 = vpop.permute.xlu0 %819
          %823 = vset.pattern.permute.xlu0 0
          %824 = vperm.xlu0 %823, %v318
          %v825 = vpop.permute.xlu0 %824
          %v828 = vlaneseq
          %v829 = vshrl.u32 %v828, 7
          %v830 = vsub.s32 0, %v829
          %v831 = vrot.slane %v394, %v830
          %v832 = vlaneseq
          %v833 = vshrl.u32 %v832, 7
          %v834 = vsub.s32 1, %v833
          %v835 = vrot.slane %v394, %v834
          %v836 = vlaneseq
          %v837 = vshrl.u32 %v836, 7
          %v838 = vsub.s32 2, %v837
          %v839 = vrot.slane %v394, %v838
          %vm843 = vcmp.gt.f32.partialorder %v670, %v831
          %vm844 = vcmp.gt.f32.partialorder %v670, %v835
          %vm845 = vcmp.gt.f32.partialorder %v670, %v839
          %vm846 = vcmp.gt.f32.partialorder %v675, %v831
          %vm847 = vcmp.gt.f32.partialorder %v675, %v835
          %vm848 = vcmp.gt.f32.partialorder %v675, %v839
          %vm849 = vcmp.gt.f32.partialorder %v680, %v831
          %vm850 = vcmp.gt.f32.partialorder %v680, %v835
          %vm851 = vcmp.gt.f32.partialorder %v680, %v839
          %vm852 = vcmp.gt.f32.partialorder %v685, %v831
          %vm853 = vcmp.gt.f32.partialorder %v685, %v835
          %vm854 = vcmp.gt.f32.partialorder %v685, %v839
          %vm855 = vcmp.gt.f32.partialorder %v690, %v831
          %vm856 = vcmp.gt.f32.partialorder %v690, %v835
          %vm857 = vcmp.gt.f32.partialorder %v690, %v839
          %vm858 = vcmp.gt.f32.partialorder %v695, %v831
          %vm859 = vcmp.gt.f32.partialorder %v695, %v835
          %vm860 = vcmp.gt.f32.partialorder %v695, %v839
          %vm861 = vcmp.gt.f32.partialorder %v700, %v831
          %vm862 = vcmp.gt.f32.partialorder %v700, %v835
          %vm863 = vcmp.gt.f32.partialorder %v700, %v839
          %vm864 = vcmp.gt.f32.partialorder %v705, %v831
          %vm865 = vcmp.gt.f32.partialorder %v705, %v835
          %vm866 = vcmp.gt.f32.partialorder %v705, %v839
          %vm867 = vcmp.gt.f32.partialorder %v710, %v831
          %vm868 = vcmp.gt.f32.partialorder %v710, %v835
          %vm869 = vcmp.gt.f32.partialorder %v710, %v839
          %vm870 = vcmp.gt.f32.partialorder %v715, %v831
          %vm871 = vcmp.gt.f32.partialorder %v715, %v835
          %vm872 = vcmp.gt.f32.partialorder %v715, %v839
          %vm873 = vcmp.gt.f32.partialorder %v720, %v831
          %vm874 = vcmp.gt.f32.partialorder %v720, %v835
          %vm875 = vcmp.gt.f32.partialorder %v720, %v839
          %vm876 = vcmp.gt.f32.partialorder %v725, %v831
          %vm877 = vcmp.gt.f32.partialorder %v725, %v835
          %vm878 = vcmp.gt.f32.partialorder %v725, %v839
          %vm879 = vcmp.gt.f32.partialorder %v730, %v831
          %vm880 = vcmp.gt.f32.partialorder %v730, %v835
          %vm881 = vcmp.gt.f32.partialorder %v730, %v839
          %vm882 = vcmp.gt.f32.partialorder %v735, %v831
          %vm883 = vcmp.gt.f32.partialorder %v735, %v835
          %vm884 = vcmp.gt.f32.partialorder %v735, %v839
          %vm885 = vcmp.gt.f32.partialorder %v740, %v831
          %vm886 = vcmp.gt.f32.partialorder %v740, %v835
          %vm887 = vcmp.gt.f32.partialorder %v740, %v839
          %vm888 = vcmp.gt.f32.partialorder %v745, %v831
          %vm889 = vcmp.gt.f32.partialorder %v745, %v835
          %vm890 = vcmp.gt.f32.partialorder %v745, %v839
          %vm891 = vcmp.gt.f32.partialorder %v750, %v831
          %vm892 = vcmp.gt.f32.partialorder %v750, %v835
          %vm893 = vcmp.gt.f32.partialorder %v750, %v839
          %vm894 = vcmp.gt.f32.partialorder %v755, %v831
          %vm895 = vcmp.gt.f32.partialorder %v755, %v835
          %vm896 = vcmp.gt.f32.partialorder %v755, %v839
          %vm897 = vcmp.gt.f32.partialorder %v760, %v831
          %vm898 = vcmp.gt.f32.partialorder %v760, %v835
          %vm899 = vcmp.gt.f32.partialorder %v760, %v839
          %vm900 = vcmp.gt.f32.partialorder %v765, %v831
          %vm901 = vcmp.gt.f32.partialorder %v765, %v835
          %vm902 = vcmp.gt.f32.partialorder %v765, %v839
          %vm903 = vcmp.gt.f32.partialorder %v770, %v831
          %vm904 = vcmp.gt.f32.partialorder %v770, %v835
          %vm905 = vcmp.gt.f32.partialorder %v770, %v839
          %vm906 = vcmp.gt.f32.partialorder %v775, %v831
          %vm907 = vcmp.gt.f32.partialorder %v775, %v835
          %vm908 = vcmp.gt.f32.partialorder %v775, %v839
          %vm909 = vcmp.gt.f32.partialorder %v780, %v831
          %vm910 = vcmp.gt.f32.partialorder %v780, %v835
          %vm911 = vcmp.gt.f32.partialorder %v780, %v839
          %vm912 = vcmp.gt.f32.partialorder %v785, %v831
          %vm913 = vcmp.gt.f32.partialorder %v785, %v835
          %vm914 = vcmp.gt.f32.partialorder %v785, %v839
          %vm915 = vcmp.gt.f32.partialorder %v790, %v831
          %vm916 = vcmp.gt.f32.partialorder %v790, %v835
          %vm917 = vcmp.gt.f32.partialorder %v790, %v839
          %vm918 = vcmp.gt.f32.partialorder %v795, %v831
          %vm919 = vcmp.gt.f32.partialorder %v795, %v835
          %vm920 = vcmp.gt.f32.partialorder %v795, %v839
          %vm921 = vcmp.gt.f32.partialorder %v800, %v831
          %vm922 = vcmp.gt.f32.partialorder %v800, %v835
          %vm923 = vcmp.gt.f32.partialorder %v800, %v839
          %vm924 = vcmp.gt.f32.partialorder %v805, %v831
          %vm925 = vcmp.gt.f32.partialorder %v805, %v835
          %vm926 = vcmp.gt.f32.partialorder %v805, %v839
          %vm927 = vcmp.gt.f32.partialorder %v810, %v831
          %vm928 = vcmp.gt.f32.partialorder %v810, %v835
          %vm929 = vcmp.gt.f32.partialorder %v810, %v839
          %vm930 = vcmp.gt.f32.partialorder %v815, %v831
          %vm931 = vcmp.gt.f32.partialorder %v815, %v835
          %vm932 = vcmp.gt.f32.partialorder %v815, %v839
          %vm933 = vcmp.gt.f32.partialorder %v820, %v831
          %vm934 = vcmp.gt.f32.partialorder %v820, %v835
          %vm935 = vcmp.gt.f32.partialorder %v820, %v839
          %vm936 = vcmp.gt.f32.partialorder %v825, %v831
          %vm937 = vcmp.gt.f32.partialorder %v825, %v835
          %vm938 = vcmp.gt.f32.partialorder %v825, %v839
          %v939 = vsel %vm843, %v571, 0.0
          %v940 = vsel %vm844, %v572, 0.0
          %v941 = vsel %vm845, %v573, 0.0
          %v942 = vsel %vm846, %v574, 0.0
          %v943 = vsel %vm847, %v575, 0.0
          %v944 = vsel %vm848, %v576, 0.0
          %v945 = vsel %vm849, %v577, 0.0
          %v946 = vsel %vm850, %v578, 0.0
          %v947 = vsel %vm851, %v579, 0.0
          %v948 = vsel %vm852, %v580, 0.0
          %v949 = vsel %vm853, %v581, 0.0
          %v950 = vsel %vm854, %v582, 0.0
          %v951 = vsel %vm855, %v583, 0.0
          %v952 = vsel %vm856, %v584, 0.0
          %v953 = vsel %vm857, %v585, 0.0
          %v954 = vsel %vm858, %v586, 0.0
          %v955 = vsel %vm859, %v587, 0.0
          %v956 = vsel %vm860, %v588, 0.0
          %v957 = vsel %vm861, %v589, 0.0
          %v958 = vsel %vm862, %v590, 0.0
          %v959 = vsel %vm863, %v591, 0.0
          %v960 = vsel %vm864, %v592, 0.0
          %v961 = vsel %vm865, %v593, 0.0
          %v962 = vsel %vm866, %v594, 0.0
          %v963 = vsel %vm867, %v595, 0.0
          %v964 = vsel %vm868, %v596, 0.0
          %v965 = vsel %vm869, %v597, 0.0
          %v966 = vsel %vm870, %v598, 0.0
          %v967 = vsel %vm871, %v599, 0.0
          %v968 = vsel %vm872, %v600, 0.0
          %v969 = vsel %vm873, %v601, 0.0
          %v970 = vsel %vm874, %v602, 0.0
          %v971 = vsel %vm875, %v603, 0.0
          %v972 = vsel %vm876, %v604, 0.0
          %v973 = vsel %vm877, %v605, 0.0
          %v974 = vsel %vm878, %v606, 0.0
          %v975 = vsel %vm879, %v607, 0.0
          %v976 = vsel %vm880, %v608, 0.0
          %v977 = vsel %vm881, %v609, 0.0
          %v978 = vsel %vm882, %v610, 0.0
          %v979 = vsel %vm883, %v611, 0.0
          %v980 = vsel %vm884, %v612, 0.0
          %v981 = vsel %vm885, %v613, 0.0
          %v982 = vsel %vm886, %v614, 0.0
          %v983 = vsel %vm887, %v615, 0.0
          %v984 = vsel %vm888, %v616, 0.0
          %v985 = vsel %vm889, %v617, 0.0
          %v986 = vsel %vm890, %v618, 0.0
          %v987 = vsel %vm891, %v619, 0.0
          %v988 = vsel %vm892, %v620, 0.0
          %v989 = vsel %vm893, %v621, 0.0
          %v990 = vsel %vm894, %v622, 0.0
          %v991 = vsel %vm895, %v623, 0.0
          %v992 = vsel %vm896, %v624, 0.0
          %v993 = vsel %vm897, %v625, 0.0
          %v994 = vsel %vm898, %v626, 0.0
          %v995 = vsel %vm899, %v627, 0.0
          %v996 = vsel %vm900, %v628, 0.0
          %v997 = vsel %vm901, %v629, 0.0
          %v998 = vsel %vm902, %v630, 0.0
          %v999 = vsel %vm903, %v631, 0.0
          %v1000 = vsel %vm904, %v632, 0.0
          %v1001 = vsel %vm905, %v633, 0.0
          %v1002 = vsel %vm906, %v634, 0.0
          %v1003 = vsel %vm907, %v635, 0.0
          %v1004 = vsel %vm908, %v636, 0.0
          %v1005 = vsel %vm909, %v637, 0.0
          %v1006 = vsel %vm910, %v638, 0.0
          %v1007 = vsel %vm911, %v639, 0.0
          %v1008 = vsel %vm912, %v640, 0.0
          %v1009 = vsel %vm913, %v641, 0.0
          %v1010 = vsel %vm914, %v642, 0.0
          %v1011 = vsel %vm915, %v643, 0.0
          %v1012 = vsel %vm916, %v644, 0.0
          %v1013 = vsel %vm917, %v645, 0.0
          %v1014 = vsel %vm918, %v646, 0.0
          %v1015 = vsel %vm919, %v647, 0.0
          %v1016 = vsel %vm920, %v648, 0.0
          %v1017 = vsel %vm921, %v649, 0.0
          %v1018 = vsel %vm922, %v650, 0.0
          %v1019 = vsel %vm923, %v651, 0.0
          %v1020 = vsel %vm924, %v652, 0.0
          %v1021 = vsel %vm925, %v653, 0.0
          %v1022 = vsel %vm926, %v654, 0.0
          %v1023 = vsel %vm927, %v655, 0.0
          %v1024 = vsel %vm928, %v656, 0.0
          %v1025 = vsel %vm929, %v657, 0.0
          %v1026 = vsel %vm930, %v658, 0.0
          %v1027 = vsel %vm931, %v659, 0.0
          %v1028 = vsel %vm932, %v660, 0.0
          %v1029 = vsel %vm933, %v661, 0.0
          %v1030 = vsel %vm934, %v662, 0.0
          %v1031 = vsel %vm935, %v663, 0.0
          %v1032 = vsel %vm936, %v664, 0.0
          %v1033 = vsel %vm937, %v665, 0.0
          %v1034 = vsel %vm938, %v666, 0.0
          %v1035 = vmax.f32 %v571, 0.0
          %v1036 = vmax.f32 %v572, 0.0
          %v1037 = vmax.f32 %v573, 0.0
          %v1038 = vmax.f32 %v574, 0.0
          %v1039 = vmax.f32 %v575, 0.0
          %v1040 = vmax.f32 %v576, 0.0
          %v1041 = vmax.f32 %v577, 0.0
          %v1042 = vmax.f32 %v578, 0.0
          %v1043 = vmax.f32 %v579, 0.0
          %v1044 = vmax.f32 %v580, 0.0
          %v1045 = vmax.f32 %v581, 0.0
          %v1046 = vmax.f32 %v582, 0.0
          %v1047 = vmax.f32 %v583, 0.0
          %v1048 = vmax.f32 %v584, 0.0
          %v1049 = vmax.f32 %v585, 0.0
          %v1050 = vmax.f32 %v586, 0.0
          %v1051 = vmax.f32 %v587, 0.0
          %v1052 = vmax.f32 %v588, 0.0
          %v1053 = vmax.f32 %v589, 0.0
          %v1054 = vmax.f32 %v590, 0.0
          %v1055 = vmax.f32 %v591, 0.0
          %v1056 = vmax.f32 %v592, 0.0
          %v1057 = vmax.f32 %v593, 0.0
          %v1058 = vmax.f32 %v594, 0.0
          %v1059 = vmax.f32 %v595, 0.0
          %v1060 = vmax.f32 %v596, 0.0
          %v1061 = vmax.f32 %v597, 0.0
          %v1062 = vmax.f32 %v598, 0.0
          %v1063 = vmax.f32 %v599, 0.0
          %v1064 = vmax.f32 %v600, 0.0
          %v1065 = vmax.f32 %v601, 0.0
          %v1066 = vmax.f32 %v602, 0.0
          %v1067 = vmax.f32 %v603, 0.0
          %v1068 = vmax.f32 %v604, 0.0
          %v1069 = vmax.f32 %v605, 0.0
          %v1070 = vmax.f32 %v606, 0.0
          %v1071 = vmax.f32 %v607, 0.0
          %v1072 = vmax.f32 %v608, 0.0
          %v1073 = vmax.f32 %v609, 0.0
          %v1074 = vmax.f32 %v610, 0.0
          %v1075 = vmax.f32 %v611, 0.0
          %v1076 = vmax.f32 %v612, 0.0
          %v1077 = vmax.f32 %v613, 0.0
          %v1078 = vmax.f32 %v614, 0.0
          %v1079 = vmax.f32 %v615, 0.0
          %v1080 = vmax.f32 %v616, 0.0
          %v1081 = vmax.f32 %v617, 0.0
          %v1082 = vmax.f32 %v618, 0.0
          %v1083 = vmax.f32 %v619, 0.0
          %v1084 = vmax.f32 %v620, 0.0
          %v1085 = vmax.f32 %v621, 0.0
          %v1086 = vmax.f32 %v622, 0.0
          %v1087 = vmax.f32 %v623, 0.0
          %v1088 = vmax.f32 %v624, 0.0
          %v1089 = vmax.f32 %v625, 0.0
          %v1090 = vmax.f32 %v626, 0.0
          %v1091 = vmax.f32 %v627, 0.0
          %v1092 = vmax.f32 %v628, 0.0
          %v1093 = vmax.f32 %v629, 0.0
          %v1094 = vmax.f32 %v630, 0.0
          %v1095 = vmax.f32 %v631, 0.0
          %v1096 = vmax.f32 %v632, 0.0
          %v1097 = vmax.f32 %v633, 0.0
          %v1098 = vmax.f32 %v634, 0.0
          %v1099 = vmax.f32 %v635, 0.0
          %v1100 = vmax.f32 %v636, 0.0
          %v1101 = vmax.f32 %v637, 0.0
          %v1102 = vmax.f32 %v638, 0.0
          %v1103 = vmax.f32 %v639, 0.0
          %v1104 = vmax.f32 %v640, 0.0
          %v1105 = vmax.f32 %v641, 0.0
          %v1106 = vmax.f32 %v642, 0.0
          %v1107 = vmax.f32 %v643, 0.0
          %v1108 = vmax.f32 %v644, 0.0
          %v1109 = vmax.f32 %v645, 0.0
          %v1110 = vmax.f32 %v646, 0.0
          %v1111 = vmax.f32 %v647, 0.0
          %v1112 = vmax.f32 %v648, 0.0
          %v1113 = vmax.f32 %v649, 0.0
          %v1114 = vmax.f32 %v650, 0.0
          %v1115 = vmax.f32 %v651, 0.0
          %v1116 = vmax.f32 %v652, 0.0
          %v1117 = vmax.f32 %v653, 0.0
          %v1118 = vmax.f32 %v654, 0.0
          %v1119 = vmax.f32 %v655, 0.0
          %v1120 = vmax.f32 %v656, 0.0
          %v1121 = vmax.f32 %v657, 0.0
          %v1122 = vmax.f32 %v658, 0.0
          %v1123 = vmax.f32 %v659, 0.0
          %v1124 = vmax.f32 %v660, 0.0
          %v1125 = vmax.f32 %v661, 0.0
          %v1126 = vmax.f32 %v662, 0.0
          %v1127 = vmax.f32 %v663, 0.0
          %v1128 = vmax.f32 %v664, 0.0
          %v1129 = vmax.f32 %v665, 0.0
          %v1130 = vmax.f32 %v666, 0.0
          %v1131 = vsub.f32 %v1035, %v939
          %v1132 = vsub.f32 %v1036, %v940
          %v1133 = vsub.f32 %v1037, %v941
          %v1134 = vsub.f32 %v1038, %v942
          %v1135 = vsub.f32 %v1039, %v943
          %v1136 = vsub.f32 %v1040, %v944
          %v1137 = vsub.f32 %v1041, %v945
          %v1138 = vsub.f32 %v1042, %v946
          %v1139 = vsub.f32 %v1043, %v947
          %v1140 = vsub.f32 %v1044, %v948
          %v1141 = vsub.f32 %v1045, %v949
          %v1142 = vsub.f32 %v1046, %v950
          %v1143 = vsub.f32 %v1047, %v951
          %v1144 = vsub.f32 %v1048, %v952
          %v1145 = vsub.f32 %v1049, %v953
          %v1146 = vsub.f32 %v1050, %v954
          %v1147 = vsub.f32 %v1051, %v955
          %v1148 = vsub.f32 %v1052, %v956
          %v1149 = vsub.f32 %v1053, %v957
          %v1150 = vsub.f32 %v1054, %v958
          %v1151 = vsub.f32 %v1055, %v959
          %v1152 = vsub.f32 %v1056, %v960
          %v1153 = vsub.f32 %v1057, %v961
          %v1154 = vsub.f32 %v1058, %v962
          %v1155 = vsub.f32 %v1059, %v963
          %v1156 = vsub.f32 %v1060, %v964
          %v1157 = vsub.f32 %v1061, %v965
          %v1158 = vsub.f32 %v1062, %v966
          %v1159 = vsub.f32 %v1063, %v967
          %v1160 = vsub.f32 %v1064, %v968
          %v1161 = vsub.f32 %v1065, %v969
          %v1162 = vsub.f32 %v1066, %v970
          %v1163 = vsub.f32 %v1067, %v971
          %v1164 = vsub.f32 %v1068, %v972
          %v1165 = vsub.f32 %v1069, %v973
          %v1166 = vsub.f32 %v1070, %v974
          %v1167 = vsub.f32 %v1071, %v975
          %v1168 = vsub.f32 %v1072, %v976
          %v1169 = vsub.f32 %v1073, %v977
          %v1170 = vsub.f32 %v1074, %v978
          %v1171 = vsub.f32 %v1075, %v979
          %v1172 = vsub.f32 %v1076, %v980
          %v1173 = vsub.f32 %v1077, %v981
          %v1174 = vsub.f32 %v1078, %v982
          %v1175 = vsub.f32 %v1079, %v983
          %v1176 = vsub.f32 %v1080, %v984
          %v1177 = vsub.f32 %v1081, %v985
          %v1178 = vsub.f32 %v1082, %v986
          %v1179 = vsub.f32 %v1083, %v987
          %v1180 = vsub.f32 %v1084, %v988
          %v1181 = vsub.f32 %v1085, %v989
          %v1182 = vsub.f32 %v1086, %v990
          %v1183 = vsub.f32 %v1087, %v991
          %v1184 = vsub.f32 %v1088, %v992
          %v1185 = vsub.f32 %v1089, %v993
          %v1186 = vsub.f32 %v1090, %v994
          %v1187 = vsub.f32 %v1091, %v995
          %v1188 = vsub.f32 %v1092, %v996
          %v1189 = vsub.f32 %v1093, %v997
          %v1190 = vsub.f32 %v1094, %v998
          %v1191 = vsub.f32 %v1095, %v999
          %v1192 = vsub.f32 %v1096, %v1000
          %v1193 = vsub.f32 %v1097, %v1001
          %v1194 = vsub.f32 %v1098, %v1002
          %v1195 = vsub.f32 %v1099, %v1003
          %v1196 = vsub.f32 %v1100, %v1004
          %v1197 = vsub.f32 %v1101, %v1005
          %v1198 = vsub.f32 %v1102, %v1006
          %v1199 = vsub.f32 %v1103, %v1007
          %v1200 = vsub.f32 %v1104, %v1008
          %v1201 = vsub.f32 %v1105, %v1009
          %v1202 = vsub.f32 %v1106, %v1010
          %v1203 = vsub.f32 %v1107, %v1011
          %v1204 = vsub.f32 %v1108, %v1012
          %v1205 = vsub.f32 %v1109, %v1013
          %v1206 = vsub.f32 %v1110, %v1014
          %v1207 = vsub.f32 %v1111, %v1015
          %v1208 = vsub.f32 %v1112, %v1016
          %v1209 = vsub.f32 %v1113, %v1017
          %v1210 = vsub.f32 %v1114, %v1018
          %v1211 = vsub.f32 %v1115, %v1019
          %v1212 = vsub.f32 %v1116, %v1020
          %v1213 = vsub.f32 %v1117, %v1021
          %v1214 = vsub.f32 %v1118, %v1022
          %v1215 = vsub.f32 %v1119, %v1023
          %v1216 = vsub.f32 %v1120, %v1024
          %v1217 = vsub.f32 %v1121, %v1025
          %v1218 = vsub.f32 %v1122, %v1026
          %v1219 = vsub.f32 %v1123, %v1027
          %v1220 = vsub.f32 %v1124, %v1028
          %v1221 = vsub.f32 %v1125, %v1029
          %v1222 = vsub.f32 %v1126, %v1030
          %v1223 = vsub.f32 %v1127, %v1031
          %v1224 = vsub.f32 %v1128, %v1032
          %v1225 = vsub.f32 %v1129, %v1033
          %v1226 = vsub.f32 %v1130, %v1034
          %v1227 = vand.u32 2147483647, %v571
          %v1228 = vand.u32 2147483647, %v572
          %v1229 = vand.u32 2147483647, %v573
          %v1230 = vand.u32 2147483647, %v574
          %v1231 = vand.u32 2147483647, %v575
          %v1232 = vand.u32 2147483647, %v576
          %v1233 = vand.u32 2147483647, %v577
          %v1234 = vand.u32 2147483647, %v578
          %v1235 = vand.u32 2147483647, %v579
          %v1236 = vand.u32 2147483647, %v580
          %v1237 = vand.u32 2147483647, %v581
          %v1238 = vand.u32 2147483647, %v582
          %v1239 = vand.u32 2147483647, %v583
          %v1240 = vand.u32 2147483647, %v584
          %v1241 = vand.u32 2147483647, %v585
          %v1242 = vand.u32 2147483647, %v586
          %v1243 = vand.u32 2147483647, %v587
          %v1244 = vand.u32 2147483647, %v588
          %v1245 = vand.u32 2147483647, %v589
          %v1246 = vand.u32 2147483647, %v590
          %v1247 = vand.u32 2147483647, %v591
          %v1248 = vand.u32 2147483647, %v592
          %v1249 = vand.u32 2147483647, %v593
          %v1250 = vand.u32 2147483647, %v594
          %v1251 = vand.u32 2147483647, %v595
          %v1252 = vand.u32 2147483647, %v596
          %v1253 = vand.u32 2147483647, %v597
          %v1254 = vand.u32 2147483647, %v598
          %v1255 = vand.u32 2147483647, %v599
          %v1256 = vand.u32 2147483647, %v600
          %v1257 = vand.u32 2147483647, %v601
          %v1258 = vand.u32 2147483647, %v602
          %v1259 = vand.u32 2147483647, %v603
          %v1260 = vand.u32 2147483647, %v604
          %v1261 = vand.u32 2147483647, %v605
          %v1262 = vand.u32 2147483647, %v606
          %v1263 = vand.u32 2147483647, %v607
          %v1264 = vand.u32 2147483647, %v608
          %v1265 = vand.u32 2147483647, %v609
          %v1266 = vand.u32 2147483647, %v610
          %v1267 = vand.u32 2147483647, %v611
          %v1268 = vand.u32 2147483647, %v612
          %v1269 = vand.u32 2147483647, %v613
          %v1270 = vand.u32 2147483647, %v614
          %v1271 = vand.u32 2147483647, %v615
          %v1272 = vand.u32 2147483647, %v616
          %v1273 = vand.u32 2147483647, %v617
          %v1274 = vand.u32 2147483647, %v618
          %v1275 = vand.u32 2147483647, %v619
          %v1276 = vand.u32 2147483647, %v620
          %v1277 = vand.u32 2147483647, %v621
          %v1278 = vand.u32 2147483647, %v622
          %v1279 = vand.u32 2147483647, %v623
          %v1280 = vand.u32 2147483647, %v624
          %v1281 = vand.u32 2147483647, %v625
          %v1282 = vand.u32 2147483647, %v626
          %v1283 = vand.u32 2147483647, %v627
          %v1284 = vand.u32 2147483647, %v628
          %v1285 = vand.u32 2147483647, %v629
          %v1286 = vand.u32 2147483647, %v630
          %v1287 = vand.u32 2147483647, %v631
          %v1288 = vand.u32 2147483647, %v632
          %v1289 = vand.u32 2147483647, %v633
          %v1290 = vand.u32 2147483647, %v634
          %v1291 = vand.u32 2147483647, %v635
          %v1292 = vand.u32 2147483647, %v636
          %v1293 = vand.u32 2147483647, %v637
          %v1294 = vand.u32 2147483647, %v638
          %v1295 = vand.u32 2147483647, %v639
          %v1296 = vand.u32 2147483647, %v640
          %v1297 = vand.u32 2147483647, %v641
          %v1298 = vand.u32 2147483647, %v642
          %v1299 = vand.u32 2147483647, %v643
          %v1300 = vand.u32 2147483647, %v644
          %v1301 = vand.u32 2147483647, %v645
          %v1302 = vand.u32 2147483647, %v646
          %v1303 = vand.u32 2147483647, %v647
          %v1304 = vand.u32 2147483647, %v648
          %v1305 = vand.u32 2147483647, %v649
          %v1306 = vand.u32 2147483647, %v650
          %v1307 = vand.u32 2147483647, %v651
          %v1308 = vand.u32 2147483647, %v652
          %v1309 = vand.u32 2147483647, %v653
          %v1310 = vand.u32 2147483647, %v654
          %v1311 = vand.u32 2147483647, %v655
          %v1312 = vand.u32 2147483647, %v656
          %v1313 = vand.u32 2147483647, %v657
          %v1314 = vand.u32 2147483647, %v658
          %v1315 = vand.u32 2147483647, %v659
          %v1316 = vand.u32 2147483647, %v660
          %v1317 = vand.u32 2147483647, %v661
          %v1318 = vand.u32 2147483647, %v662
          %v1319 = vand.u32 2147483647, %v663
          %v1320 = vand.u32 2147483647, %v664
          %v1321 = vand.u32 2147483647, %v665
          %v1322 = vand.u32 2147483647, %v666
          %v1323 = vsub.f32 0.0, %v1227
          %v1324 = vsub.f32 0.0, %v1228
          %v1325 = vsub.f32 0.0, %v1229
          %v1326 = vsub.f32 0.0, %v1230
          %v1327 = vsub.f32 0.0, %v1231
          %v1328 = vsub.f32 0.0, %v1232
          %v1329 = vsub.f32 0.0, %v1233
          %v1330 = vsub.f32 0.0, %v1234
          %v1331 = vsub.f32 0.0, %v1235
          %v1332 = vsub.f32 0.0, %v1236
          %v1333 = vsub.f32 0.0, %v1237
          %v1334 = vsub.f32 0.0, %v1238
          %v1335 = vsub.f32 0.0, %v1239
          %v1336 = vsub.f32 0.0, %v1240
          %v1337 = vsub.f32 0.0, %v1241
          %v1338 = vsub.f32 0.0, %v1242
          %v1339 = vsub.f32 0.0, %v1243
          %v1340 = vsub.f32 0.0, %v1244
          %v1341 = vsub.f32 0.0, %v1245
          %v1342 = vsub.f32 0.0, %v1246
          %v1343 = vsub.f32 0.0, %v1247
          %v1344 = vsub.f32 0.0, %v1248
          %v1345 = vsub.f32 0.0, %v1249
          %v1346 = vsub.f32 0.0, %v1250
          %v1347 = vsub.f32 0.0, %v1251
          %v1348 = vsub.f32 0.0, %v1252
          %v1349 = vsub.f32 0.0, %v1253
          %v1350 = vsub.f32 0.0, %v1254
          %v1351 = vsub.f32 0.0, %v1255
          %v1352 = vsub.f32 0.0, %v1256
          %v1353 = vsub.f32 0.0, %v1257
          %v1354 = vsub.f32 0.0, %v1258
          %v1355 = vsub.f32 0.0, %v1259
          %v1356 = vsub.f32 0.0, %v1260
          %v1357 = vsub.f32 0.0, %v1261
          %v1358 = vsub.f32 0.0, %v1262
          %v1359 = vsub.f32 0.0, %v1263
          %v1360 = vsub.f32 0.0, %v1264
          %v1361 = vsub.f32 0.0, %v1265
          %v1362 = vsub.f32 0.0, %v1266
          %v1363 = vsub.f32 0.0, %v1267
          %v1364 = vsub.f32 0.0, %v1268
          %v1365 = vsub.f32 0.0, %v1269
          %v1366 = vsub.f32 0.0, %v1270
          %v1367 = vsub.f32 0.0, %v1271
          %v1368 = vsub.f32 0.0, %v1272
          %v1369 = vsub.f32 0.0, %v1273
          %v1370 = vsub.f32 0.0, %v1274
          %v1371 = vsub.f32 0.0, %v1275
          %v1372 = vsub.f32 0.0, %v1276
          %v1373 = vsub.f32 0.0, %v1277
          %v1374 = vsub.f32 0.0, %v1278
          %v1375 = vsub.f32 0.0, %v1279
          %v1376 = vsub.f32 0.0, %v1280
          %v1377 = vsub.f32 0.0, %v1281
          %v1378 = vsub.f32 0.0, %v1282
          %v1379 = vsub.f32 0.0, %v1283
          %v1380 = vsub.f32 0.0, %v1284
          %v1381 = vsub.f32 0.0, %v1285
          %v1382 = vsub.f32 0.0, %v1286
          %v1383 = vsub.f32 0.0, %v1287
          %v1384 = vsub.f32 0.0, %v1288
          %v1385 = vsub.f32 0.0, %v1289
          %v1386 = vsub.f32 0.0, %v1290
          %v1387 = vsub.f32 0.0, %v1291
          %v1388 = vsub.f32 0.0, %v1292
          %v1389 = vsub.f32 0.0, %v1293
          %v1390 = vsub.f32 0.0, %v1294
          %v1391 = vsub.f32 0.0, %v1295
          %v1392 = vsub.f32 0.0, %v1296
          %v1393 = vsub.f32 0.0, %v1297
          %v1394 = vsub.f32 0.0, %v1298
          %v1395 = vsub.f32 0.0, %v1299
          %v1396 = vsub.f32 0.0, %v1300
          %v1397 = vsub.f32 0.0, %v1301
          %v1398 = vsub.f32 0.0, %v1302
          %v1399 = vsub.f32 0.0, %v1303
          %v1400 = vsub.f32 0.0, %v1304
          %v1401 = vsub.f32 0.0, %v1305
          %v1402 = vsub.f32 0.0, %v1306
          %v1403 = vsub.f32 0.0, %v1307
          %v1404 = vsub.f32 0.0, %v1308
          %v1405 = vsub.f32 0.0, %v1309
          %v1406 = vsub.f32 0.0, %v1310
          %v1407 = vsub.f32 0.0, %v1311
          %v1408 = vsub.f32 0.0, %v1312
          %v1409 = vsub.f32 0.0, %v1313
          %v1410 = vsub.f32 0.0, %v1314
          %v1411 = vsub.f32 0.0, %v1315
          %v1412 = vsub.f32 0.0, %v1316
          %v1413 = vsub.f32 0.0, %v1317
          %v1414 = vsub.f32 0.0, %v1318
          %v1415 = vsub.f32 0.0, %v1319
          %v1416 = vsub.f32 0.0, %v1320
          %v1417 = vsub.f32 0.0, %v1321
          %v1418 = vsub.f32 0.0, %v1322
          %v1419 = vmul.f32 %v1323, 1.442695
          %v1420 = vpow.pop %v1419
          %v1421 = vmul.f32 %v1324, 1.442695
          %v1422 = vpow.pop %v1421
          %v1423 = vmul.f32 %v1325, 1.442695
          %v1424 = vpow.pop %v1423
          %v1425 = vmul.f32 %v1326, 1.442695
          %v1426 = vpow.pop %v1425
          %v1427 = vmul.f32 %v1327, 1.442695
          %v1428 = vpow.pop %v1427
          %v1429 = vmul.f32 %v1328, 1.442695
          %v1430 = vpow.pop %v1429
          %v1431 = vmul.f32 %v1329, 1.442695
          %v1432 = vpow.pop %v1431
          %v1433 = vmul.f32 %v1330, 1.442695
          %v1434 = vpow.pop %v1433
          %v1435 = vmul.f32 %v1331, 1.442695
          %v1436 = vpow.pop %v1435
          %v1437 = vmul.f32 %v1332, 1.442695
          %v1438 = vpow.pop %v1437
          %v1439 = vmul.f32 %v1333, 1.442695
          %v1440 = vpow.pop %v1439
          %v1441 = vmul.f32 %v1334, 1.442695
          %v1442 = vpow.pop %v1441
          %v1443 = vmul.f32 %v1335, 1.442695
          %v1444 = vpow.pop %v1443
          %v1445 = vmul.f32 %v1336, 1.442695
          %v1446 = vpow.pop %v1445
          %v1447 = vmul.f32 %v1337, 1.442695
          %v1448 = vpow.pop %v1447
          %v1449 = vmul.f32 %v1338, 1.442695
          %v1450 = vpow.pop %v1449
          %v1451 = vmul.f32 %v1339, 1.442695
          %v1452 = vpow.pop %v1451
          %v1453 = vmul.f32 %v1340, 1.442695
          %v1454 = vpow.pop %v1453
          %v1455 = vmul.f32 %v1341, 1.442695
          %v1456 = vpow.pop %v1455
          %v1457 = vmul.f32 %v1342, 1.442695
          %v1458 = vpow.pop %v1457
          %v1459 = vmul.f32 %v1343, 1.442695
          %v1460 = vpow.pop %v1459
          %v1461 = vmul.f32 %v1344, 1.442695
          %v1462 = vpow.pop %v1461
          %v1463 = vmul.f32 %v1345, 1.442695
          %v1464 = vpow.pop %v1463
          %v1465 = vmul.f32 %v1346, 1.442695
          %v1466 = vpow.pop %v1465
          %v1467 = vmul.f32 %v1347, 1.442695
          %v1468 = vpow.pop %v1467
          %v1469 = vmul.f32 %v1348, 1.442695
          %v1470 = vpow.pop %v1469
          %v1471 = vmul.f32 %v1349, 1.442695
          %v1472 = vpow.pop %v1471
          %v1473 = vmul.f32 %v1350, 1.442695
          %v1474 = vpow.pop %v1473
          %v1475 = vmul.f32 %v1351, 1.442695
          %v1476 = vpow.pop %v1475
          %v1477 = vmul.f32 %v1352, 1.442695
          %v1478 = vpow.pop %v1477
          %v1479 = vmul.f32 %v1353, 1.442695
          %v1480 = vpow.pop %v1479
          %v1481 = vmul.f32 %v1354, 1.442695
          %v1482 = vpow.pop %v1481
          %v1483 = vmul.f32 %v1355, 1.442695
          %v1484 = vpow.pop %v1483
          %v1485 = vmul.f32 %v1356, 1.442695
          %v1486 = vpow.pop %v1485
          %v1487 = vmul.f32 %v1357, 1.442695
          %v1488 = vpow.pop %v1487
          %v1489 = vmul.f32 %v1358, 1.442695
          %v1490 = vpow.pop %v1489
          %v1491 = vmul.f32 %v1359, 1.442695
          %v1492 = vpow.pop %v1491
          %v1493 = vmul.f32 %v1360, 1.442695
          %v1494 = vpow.pop %v1493
          %v1495 = vmul.f32 %v1361, 1.442695
          %v1496 = vpow.pop %v1495
          %v1497 = vmul.f32 %v1362, 1.442695
          %v1498 = vpow.pop %v1497
          %v1499 = vmul.f32 %v1363, 1.442695
          %v1500 = vpow.pop %v1499
          %v1501 = vmul.f32 %v1364, 1.442695
          %v1502 = vpow.pop %v1501
          %v1503 = vmul.f32 %v1365, 1.442695
          %v1504 = vpow.pop %v1503
          %v1505 = vmul.f32 %v1366, 1.442695
          %v1506 = vpow.pop %v1505
          %v1507 = vmul.f32 %v1367, 1.442695
          %v1508 = vpow.pop %v1507
          %v1509 = vmul.f32 %v1368, 1.442695
          %v1510 = vpow.pop %v1509
          %v1511 = vmul.f32 %v1369, 1.442695
          %v1512 = vpow.pop %v1511
          %v1513 = vmul.f32 %v1370, 1.442695
          %v1514 = vpow.pop %v1513
          %v1515 = vmul.f32 %v1371, 1.442695
          %v1516 = vpow.pop %v1515
          %v1517 = vmul.f32 %v1372, 1.442695
          %v1518 = vpow.pop %v1517
          %v1519 = vmul.f32 %v1373, 1.442695
          %v1520 = vpow.pop %v1519
          %v1521 = vmul.f32 %v1374, 1.442695
          %v1522 = vpow.pop %v1521
          %v1523 = vmul.f32 %v1375, 1.442695
          %v1524 = vpow.pop %v1523
          %v1525 = vmul.f32 %v1376, 1.442695
          %v1526 = vpow.pop %v1525
          %v1527 = vmul.f32 %v1377, 1.442695
          %v1528 = vpow.pop %v1527
          %v1529 = vmul.f32 %v1378, 1.442695
          %v1530 = vpow.pop %v1529
          %v1531 = vmul.f32 %v1379, 1.442695
          %v1532 = vpow.pop %v1531
          %v1533 = vmul.f32 %v1380, 1.442695
          %v1534 = vpow.pop %v1533
          %v1535 = vmul.f32 %v1381, 1.442695
          %v1536 = vpow.pop %v1535
          %v1537 = vmul.f32 %v1382, 1.442695
          %v1538 = vpow.pop %v1537
          %v1539 = vmul.f32 %v1383, 1.442695
          %v1540 = vpow.pop %v1539
          %v1541 = vmul.f32 %v1384, 1.442695
          %v1542 = vpow.pop %v1541
          %v1543 = vmul.f32 %v1385, 1.442695
          %v1544 = vpow.pop %v1543
          %v1545 = vmul.f32 %v1386, 1.442695
          %v1546 = vpow.pop %v1545
          %v1547 = vmul.f32 %v1387, 1.442695
          %v1548 = vpow.pop %v1547
          %v1549 = vmul.f32 %v1388, 1.442695
          %v1550 = vpow.pop %v1549
          %v1551 = vmul.f32 %v1389, 1.442695
          %v1552 = vpow.pop %v1551
          %v1553 = vmul.f32 %v1390, 1.442695
          %v1554 = vpow.pop %v1553
          %v1555 = vmul.f32 %v1391, 1.442695
          %v1556 = vpow.pop %v1555
          %v1557 = vmul.f32 %v1392, 1.442695
          %v1558 = vpow.pop %v1557
          %v1559 = vmul.f32 %v1393, 1.442695
          %v1560 = vpow.pop %v1559
          %v1561 = vmul.f32 %v1394, 1.442695
          %v1562 = vpow.pop %v1561
          %v1563 = vmul.f32 %v1395, 1.442695
          %v1564 = vpow.pop %v1563
          %v1565 = vmul.f32 %v1396, 1.442695
          %v1566 = vpow.pop %v1565
          %v1567 = vmul.f32 %v1397, 1.442695
          %v1568 = vpow.pop %v1567
          %v1569 = vmul.f32 %v1398, 1.442695
          %v1570 = vpow.pop %v1569
          %v1571 = vmul.f32 %v1399, 1.442695
          %v1572 = vpow.pop %v1571
          %v1573 = vmul.f32 %v1400, 1.442695
          %v1574 = vpow.pop %v1573
          %v1575 = vmul.f32 %v1401, 1.442695
          %v1576 = vpow.pop %v1575
          %v1577 = vmul.f32 %v1402, 1.442695
          %v1578 = vpow.pop %v1577
          %v1579 = vmul.f32 %v1403, 1.442695
          %v1580 = vpow.pop %v1579
          %v1581 = vmul.f32 %v1404, 1.442695
          %v1582 = vpow.pop %v1581
          %v1583 = vmul.f32 %v1405, 1.442695
          %v1584 = vpow.pop %v1583
          %v1585 = vmul.f32 %v1406, 1.442695
          %v1586 = vpow.pop %v1585
          %v1587 = vmul.f32 %v1407, 1.442695
          %v1588 = vpow.pop %v1587
          %v1589 = vmul.f32 %v1408, 1.442695
          %v1590 = vpow.pop %v1589
          %v1591 = vmul.f32 %v1409, 1.442695
          %v1592 = vpow.pop %v1591
          %v1593 = vmul.f32 %v1410, 1.442695
          %v1594 = vpow.pop %v1593
          %v1595 = vmul.f32 %v1411, 1.442695
          %v1596 = vpow.pop %v1595
          %v1597 = vmul.f32 %v1412, 1.442695
          %v1598 = vpow.pop %v1597
          %v1599 = vmul.f32 %v1413, 1.442695
          %v1600 = vpow.pop %v1599
          %v1601 = vmul.f32 %v1414, 1.442695
          %v1602 = vpow.pop %v1601
          %v1603 = vmul.f32 %v1415, 1.442695
          %v1604 = vpow.pop %v1603
          %v1605 = vmul.f32 %v1416, 1.442695
          %v1606 = vpow.pop %v1605
          %v1607 = vmul.f32 %v1417, 1.442695
          %v1608 = vpow.pop %v1607
          %v1609 = vmul.f32 %v1418, 1.442695
          %v1610 = vpow.pop %v1609
          %v1611 = vadd.f32 %v1420, 1.0
          %v1612 = vadd.f32 %v1422, 1.0
          %v1613 = vadd.f32 %v1424, 1.0
          %v1614 = vadd.f32 %v1426, 1.0
          %v1615 = vadd.f32 %v1428, 1.0
          %v1616 = vadd.f32 %v1430, 1.0
          %v1617 = vadd.f32 %v1432, 1.0
          %v1618 = vadd.f32 %v1434, 1.0
          %v1619 = vadd.f32 %v1436, 1.0
          %v1620 = vadd.f32 %v1438, 1.0
          %v1621 = vadd.f32 %v1440, 1.0
          %v1622 = vadd.f32 %v1442, 1.0
          %v1623 = vadd.f32 %v1444, 1.0
          %v1624 = vadd.f32 %v1446, 1.0
          %v1625 = vadd.f32 %v1448, 1.0
          %v1626 = vadd.f32 %v1450, 1.0
          %v1627 = vadd.f32 %v1452, 1.0
          %v1628 = vadd.f32 %v1454, 1.0
          %v1629 = vadd.f32 %v1456, 1.0
          %v1630 = vadd.f32 %v1458, 1.0
          %v1631 = vadd.f32 %v1460, 1.0
          %v1632 = vadd.f32 %v1462, 1.0
          %v1633 = vadd.f32 %v1464, 1.0
          %v1634 = vadd.f32 %v1466, 1.0
          %v1635 = vadd.f32 %v1468, 1.0
          %v1636 = vadd.f32 %v1470, 1.0
          %v1637 = vadd.f32 %v1472, 1.0
          %v1638 = vadd.f32 %v1474, 1.0
          %v1639 = vadd.f32 %v1476, 1.0
          %v1640 = vadd.f32 %v1478, 1.0
          %v1641 = vadd.f32 %v1480, 1.0
          %v1642 = vadd.f32 %v1482, 1.0
          %v1643 = vadd.f32 %v1484, 1.0
          %v1644 = vadd.f32 %v1486, 1.0
          %v1645 = vadd.f32 %v1488, 1.0
          %v1646 = vadd.f32 %v1490, 1.0
          %v1647 = vadd.f32 %v1492, 1.0
          %v1648 = vadd.f32 %v1494, 1.0
          %v1649 = vadd.f32 %v1496, 1.0
          %v1650 = vadd.f32 %v1498, 1.0
          %v1651 = vadd.f32 %v1500, 1.0
          %v1652 = vadd.f32 %v1502, 1.0
          %v1653 = vadd.f32 %v1504, 1.0
          %v1654 = vadd.f32 %v1506, 1.0
          %v1655 = vadd.f32 %v1508, 1.0
          %v1656 = vadd.f32 %v1510, 1.0
          %v1657 = vadd.f32 %v1512, 1.0
          %v1658 = vadd.f32 %v1514, 1.0
          %v1659 = vadd.f32 %v1516, 1.0
          %v1660 = vadd.f32 %v1518, 1.0
          %v1661 = vadd.f32 %v1520, 1.0
          %v1662 = vadd.f32 %v1522, 1.0
          %v1663 = vadd.f32 %v1524, 1.0
          %v1664 = vadd.f32 %v1526, 1.0
          %v1665 = vadd.f32 %v1528, 1.0
          %v1666 = vadd.f32 %v1530, 1.0
          %v1667 = vadd.f32 %v1532, 1.0
          %v1668 = vadd.f32 %v1534, 1.0
          %v1669 = vadd.f32 %v1536, 1.0
          %v1670 = vadd.f32 %v1538, 1.0
          %v1671 = vadd.f32 %v1540, 1.0
          %v1672 = vadd.f32 %v1542, 1.0
          %v1673 = vadd.f32 %v1544, 1.0
          %v1674 = vadd.f32 %v1546, 1.0
          %v1675 = vadd.f32 %v1548, 1.0
          %v1676 = vadd.f32 %v1550, 1.0
          %v1677 = vadd.f32 %v1552, 1.0
          %v1678 = vadd.f32 %v1554, 1.0
          %v1679 = vadd.f32 %v1556, 1.0
          %v1680 = vadd.f32 %v1558, 1.0
          %v1681 = vadd.f32 %v1560, 1.0
          %v1682 = vadd.f32 %v1562, 1.0
          %v1683 = vadd.f32 %v1564, 1.0
          %v1684 = vadd.f32 %v1566, 1.0
          %v1685 = vadd.f32 %v1568, 1.0
          %v1686 = vadd.f32 %v1570, 1.0
          %v1687 = vadd.f32 %v1572, 1.0
          %v1688 = vadd.f32 %v1574, 1.0
          %v1689 = vadd.f32 %v1576, 1.0
          %v1690 = vadd.f32 %v1578, 1.0
          %v1691 = vadd.f32 %v1580, 1.0
          %v1692 = vadd.f32 %v1582, 1.0
          %v1693 = vadd.f32 %v1584, 1.0
          %v1694 = vadd.f32 %v1586, 1.0
          %v1695 = vadd.f32 %v1588, 1.0
          %v1696 = vadd.f32 %v1590, 1.0
          %v1697 = vadd.f32 %v1592, 1.0
          %v1698 = vadd.f32 %v1594, 1.0
          %v1699 = vadd.f32 %v1596, 1.0
          %v1700 = vadd.f32 %v1598, 1.0
          %v1701 = vadd.f32 %v1600, 1.0
          %v1702 = vadd.f32 %v1602, 1.0
          %v1703 = vadd.f32 %v1604, 1.0
          %v1704 = vadd.f32 %v1606, 1.0
          %v1705 = vadd.f32 %v1608, 1.0
          %v1706 = vadd.f32 %v1610, 1.0
          %v1707 = vlog2.pop %v1611
          %v1708 = vmul.f32 %v1707, 0.6931472
          %v1709 = vlog2.pop %v1612
          %v1710 = vmul.f32 %v1709, 0.6931472
          %v1711 = vlog2.pop %v1613
          %v1712 = vmul.f32 %v1711, 0.6931472
          %v1713 = vlog2.pop %v1614
          %v1714 = vmul.f32 %v1713, 0.6931472
          %v1715 = vlog2.pop %v1615
          %v1716 = vmul.f32 %v1715, 0.6931472
          %v1717 = vlog2.pop %v1616
          %v1718 = vmul.f32 %v1717, 0.6931472
          %v1719 = vlog2.pop %v1617
          %v1720 = vmul.f32 %v1719, 0.6931472
          %v1721 = vlog2.pop %v1618
          %v1722 = vmul.f32 %v1721, 0.6931472
          %v1723 = vlog2.pop %v1619
          %v1724 = vmul.f32 %v1723, 0.6931472
          %v1725 = vlog2.pop %v1620
          %v1726 = vmul.f32 %v1725, 0.6931472
          %v1727 = vlog2.pop %v1621
          %v1728 = vmul.f32 %v1727, 0.6931472
          %v1729 = vlog2.pop %v1622
          %v1730 = vmul.f32 %v1729, 0.6931472
          %v1731 = vlog2.pop %v1623
          %v1732 = vmul.f32 %v1731, 0.6931472
          %v1733 = vlog2.pop %v1624
          %v1734 = vmul.f32 %v1733, 0.6931472
          %v1735 = vlog2.pop %v1625
          %v1736 = vmul.f32 %v1735, 0.6931472
          %v1737 = vlog2.pop %v1626
          %v1738 = vmul.f32 %v1737, 0.6931472
          %v1739 = vlog2.pop %v1627
          %v1740 = vmul.f32 %v1739, 0.6931472
          %v1741 = vlog2.pop %v1628
          %v1742 = vmul.f32 %v1741, 0.6931472
          %v1743 = vlog2.pop %v1629
          %v1744 = vmul.f32 %v1743, 0.6931472
          %v1745 = vlog2.pop %v1630
          %v1746 = vmul.f32 %v1745, 0.6931472
          %v1747 = vlog2.pop %v1631
          %v1748 = vmul.f32 %v1747, 0.6931472
          %v1749 = vlog2.pop %v1632
          %v1750 = vmul.f32 %v1749, 0.6931472
          %v1751 = vlog2.pop %v1633
          %v1752 = vmul.f32 %v1751, 0.6931472
          %v1753 = vlog2.pop %v1634
          %v1754 = vmul.f32 %v1753, 0.6931472
          %v1755 = vlog2.pop %v1635
          %v1756 = vmul.f32 %v1755, 0.6931472
          %v1757 = vlog2.pop %v1636
          %v1758 = vmul.f32 %v1757, 0.6931472
          %v1759 = vlog2.pop %v1637
          %v1760 = vmul.f32 %v1759, 0.6931472
          %v1761 = vlog2.pop %v1638
          %v1762 = vmul.f32 %v1761, 0.6931472
          %v1763 = vlog2.pop %v1639
          %v1764 = vmul.f32 %v1763, 0.6931472
          %v1765 = vlog2.pop %v1640
          %v1766 = vmul.f32 %v1765, 0.6931472
          %v1767 = vlog2.pop %v1641
          %v1768 = vmul.f32 %v1767, 0.6931472
          %v1769 = vlog2.pop %v1642
          %v1770 = vmul.f32 %v1769, 0.6931472
          %v1771 = vlog2.pop %v1643
          %v1772 = vmul.f32 %v1771, 0.6931472
          %v1773 = vlog2.pop %v1644
          %v1774 = vmul.f32 %v1773, 0.6931472
          %v1775 = vlog2.pop %v1645
          %v1776 = vmul.f32 %v1775, 0.6931472
          %v1777 = vlog2.pop %v1646
          %v1778 = vmul.f32 %v1777, 0.6931472
          %v1779 = vlog2.pop %v1647
          %v1780 = vmul.f32 %v1779, 0.6931472
          %v1781 = vlog2.pop %v1648
          %v1782 = vmul.f32 %v1781, 0.6931472
          %v1783 = vlog2.pop %v1649
          %v1784 = vmul.f32 %v1783, 0.6931472
          %v1785 = vlog2.pop %v1650
          %v1786 = vmul.f32 %v1785, 0.6931472
          %v1787 = vlog2.pop %v1651
          %v1788 = vmul.f32 %v1787, 0.6931472
          %v1789 = vlog2.pop %v1652
          %v1790 = vmul.f32 %v1789, 0.6931472
          %v1791 = vlog2.pop %v1653
          %v1792 = vmul.f32 %v1791, 0.6931472
          %v1793 = vlog2.pop %v1654
          %v1794 = vmul.f32 %v1793, 0.6931472
          %v1795 = vlog2.pop %v1655
          %v1796 = vmul.f32 %v1795, 0.6931472
          %v1797 = vlog2.pop %v1656
          %v1798 = vmul.f32 %v1797, 0.6931472
          %v1799 = vlog2.pop %v1657
          %v1800 = vmul.f32 %v1799, 0.6931472
          %v1801 = vlog2.pop %v1658
          %v1802 = vmul.f32 %v1801, 0.6931472
          %v1803 = vlog2.pop %v1659
          %v1804 = vmul.f32 %v1803, 0.6931472
          %v1805 = vlog2.pop %v1660
          %v1806 = vmul.f32 %v1805, 0.6931472
          %v1807 = vlog2.pop %v1661
          %v1808 = vmul.f32 %v1807, 0.6931472
          %v1809 = vlog2.pop %v1662
          %v1810 = vmul.f32 %v1809, 0.6931472
          %v1811 = vlog2.pop %v1663
          %v1812 = vmul.f32 %v1811, 0.6931472
          %v1813 = vlog2.pop %v1664
          %v1814 = vmul.f32 %v1813, 0.6931472
          %v1815 = vlog2.pop %v1665
          %v1816 = vmul.f32 %v1815, 0.6931472
          %v1817 = vlog2.pop %v1666
          %v1818 = vmul.f32 %v1817, 0.6931472
          %v1819 = vlog2.pop %v1667
          %v1820 = vmul.f32 %v1819, 0.6931472
          %v1821 = vlog2.pop %v1668
          %v1822 = vmul.f32 %v1821, 0.6931472
          %v1823 = vlog2.pop %v1669
          %v1824 = vmul.f32 %v1823, 0.6931472
          %v1825 = vlog2.pop %v1670
          %v1826 = vmul.f32 %v1825, 0.6931472
          %v1827 = vlog2.pop %v1671
          %v1828 = vmul.f32 %v1827, 0.6931472
          %v1829 = vlog2.pop %v1672
          %v1830 = vmul.f32 %v1829, 0.6931472
          %v1831 = vlog2.pop %v1673
          %v1832 = vmul.f32 %v1831, 0.6931472
          %v1833 = vlog2.pop %v1674
          %v1834 = vmul.f32 %v1833, 0.6931472
          %v1835 = vlog2.pop %v1675
          %v1836 = vmul.f32 %v1835, 0.6931472
          %v1837 = vlog2.pop %v1676
          %v1838 = vmul.f32 %v1837, 0.6931472
          %v1839 = vlog2.pop %v1677
          %v1840 = vmul.f32 %v1839, 0.6931472
          %v1841 = vlog2.pop %v1678
          %v1842 = vmul.f32 %v1841, 0.6931472
          %v1843 = vlog2.pop %v1679
          %v1844 = vmul.f32 %v1843, 0.6931472
          %v1845 = vlog2.pop %v1680
          %v1846 = vmul.f32 %v1845, 0.6931472
          %v1847 = vlog2.pop %v1681
          %v1848 = vmul.f32 %v1847, 0.6931472
          %v1849 = vlog2.pop %v1682
          %v1850 = vmul.f32 %v1849, 0.6931472
          %v1851 = vlog2.pop %v1683
          %v1852 = vmul.f32 %v1851, 0.6931472
          %v1853 = vlog2.pop %v1684
          %v1854 = vmul.f32 %v1853, 0.6931472
          %v1855 = vlog2.pop %v1685
          %v1856 = vmul.f32 %v1855, 0.6931472
          %v1857 = vlog2.pop %v1686
          %v1858 = vmul.f32 %v1857, 0.6931472
          %v1859 = vlog2.pop %v1687
          %v1860 = vmul.f32 %v1859, 0.6931472
          %v1861 = vlog2.pop %v1688
          %v1862 = vmul.f32 %v1861, 0.6931472
          %v1863 = vlog2.pop %v1689
          %v1864 = vmul.f32 %v1863, 0.6931472
          %v1865 = vlog2.pop %v1690
          %v1866 = vmul.f32 %v1865, 0.6931472
          %v1867 = vlog2.pop %v1691
          %v1868 = vmul.f32 %v1867, 0.6931472
          %v1869 = vlog2.pop %v1692
          %v1870 = vmul.f32 %v1869, 0.6931472
          %v1871 = vlog2.pop %v1693
          %v1872 = vmul.f32 %v1871, 0.6931472
          %v1873 = vlog2.pop %v1694
          %v1874 = vmul.f32 %v1873, 0.6931472
          %v1875 = vlog2.pop %v1695
          %v1876 = vmul.f32 %v1875, 0.6931472
          %v1877 = vlog2.pop %v1696
          %v1878 = vmul.f32 %v1877, 0.6931472
          %v1879 = vlog2.pop %v1697
          %v1880 = vmul.f32 %v1879, 0.6931472
          %v1881 = vlog2.pop %v1698
          %v1882 = vmul.f32 %v1881, 0.6931472
          %v1883 = vlog2.pop %v1699
          %v1884 = vmul.f32 %v1883, 0.6931472
          %v1885 = vlog2.pop %v1700
          %v1886 = vmul.f32 %v1885, 0.6931472
          %v1887 = vlog2.pop %v1701
          %v1888 = vmul.f32 %v1887, 0.6931472
          %v1889 = vlog2.pop %v1702
          %v1890 = vmul.f32 %v1889, 0.6931472
          %v1891 = vlog2.pop %v1703
          %v1892 = vmul.f32 %v1891, 0.6931472
          %v1893 = vlog2.pop %v1704
          %v1894 = vmul.f32 %v1893, 0.6931472
          %v1895 = vlog2.pop %v1705
          %v1896 = vmul.f32 %v1895, 0.6931472
          %v1897 = vlog2.pop %v1706
          %v1898 = vmul.f32 %v1897, 0.6931472
          %v1899 = vadd.f32 %v1131, %v1708
          %v1900 = vadd.f32 %v1132, %v1710
          %v1901 = vadd.f32 %v1133, %v1712
          %v1902 = vadd.f32 %v1134, %v1714
          %v1903 = vadd.f32 %v1135, %v1716
          %v1904 = vadd.f32 %v1136, %v1718
          %v1905 = vadd.f32 %v1137, %v1720
          %v1906 = vadd.f32 %v1138, %v1722
          %v1907 = vadd.f32 %v1139, %v1724
          %v1908 = vadd.f32 %v1140, %v1726
          %v1909 = vadd.f32 %v1141, %v1728
          %v1910 = vadd.f32 %v1142, %v1730
          %v1911 = vadd.f32 %v1143, %v1732
          %v1912 = vadd.f32 %v1144, %v1734
          %v1913 = vadd.f32 %v1145, %v1736
          %v1914 = vadd.f32 %v1146, %v1738
          %v1915 = vadd.f32 %v1147, %v1740
          %v1916 = vadd.f32 %v1148, %v1742
          %v1917 = vadd.f32 %v1149, %v1744
          %v1918 = vadd.f32 %v1150, %v1746
          %v1919 = vadd.f32 %v1151, %v1748
          %v1920 = vadd.f32 %v1152, %v1750
          %v1921 = vadd.f32 %v1153, %v1752
          %v1922 = vadd.f32 %v1154, %v1754
          %v1923 = vadd.f32 %v1155, %v1756
          %v1924 = vadd.f32 %v1156, %v1758
          %v1925 = vadd.f32 %v1157, %v1760
          %v1926 = vadd.f32 %v1158, %v1762
          %v1927 = vadd.f32 %v1159, %v1764
          %v1928 = vadd.f32 %v1160, %v1766
          %v1929 = vadd.f32 %v1161, %v1768
          %v1930 = vadd.f32 %v1162, %v1770
          %v1931 = vadd.f32 %v1163, %v1772
          %v1932 = vadd.f32 %v1164, %v1774
          %v1933 = vadd.f32 %v1165, %v1776
          %v1934 = vadd.f32 %v1166, %v1778
          %v1935 = vadd.f32 %v1167, %v1780
          %v1936 = vadd.f32 %v1168, %v1782
          %v1937 = vadd.f32 %v1169, %v1784
          %v1938 = vadd.f32 %v1170, %v1786
          %v1939 = vadd.f32 %v1171, %v1788
          %v1940 = vadd.f32 %v1172, %v1790
          %v1941 = vadd.f32 %v1173, %v1792
          %v1942 = vadd.f32 %v1174, %v1794
          %v1943 = vadd.f32 %v1175, %v1796
          %v1944 = vadd.f32 %v1176, %v1798
          %v1945 = vadd.f32 %v1177, %v1800
          %v1946 = vadd.f32 %v1178, %v1802
          %v1947 = vadd.f32 %v1179, %v1804
          %v1948 = vadd.f32 %v1180, %v1806
          %v1949 = vadd.f32 %v1181, %v1808
          %v1950 = vadd.f32 %v1182, %v1810
          %v1951 = vadd.f32 %v1183, %v1812
          %v1952 = vadd.f32 %v1184, %v1814
          %v1953 = vadd.f32 %v1185, %v1816
          %v1954 = vadd.f32 %v1186, %v1818
          %v1955 = vadd.f32 %v1187, %v1820
          %v1956 = vadd.f32 %v1188, %v1822
          %v1957 = vadd.f32 %v1189, %v1824
          %v1958 = vadd.f32 %v1190, %v1826
          %v1959 = vadd.f32 %v1191, %v1828
          %v1960 = vadd.f32 %v1192, %v1830
          %v1961 = vadd.f32 %v1193, %v1832
          %v1962 = vadd.f32 %v1194, %v1834
          %v1963 = vadd.f32 %v1195, %v1836
          %v1964 = vadd.f32 %v1196, %v1838
          %v1965 = vadd.f32 %v1197, %v1840
          %v1966 = vadd.f32 %v1198, %v1842
          %v1967 = vadd.f32 %v1199, %v1844
          %v1968 = vadd.f32 %v1200, %v1846
          %v1969 = vadd.f32 %v1201, %v1848
          %v1970 = vadd.f32 %v1202, %v1850
          %v1971 = vadd.f32 %v1203, %v1852
          %v1972 = vadd.f32 %v1204, %v1854
          %v1973 = vadd.f32 %v1205, %v1856
          %v1974 = vadd.f32 %v1206, %v1858
          %v1975 = vadd.f32 %v1207, %v1860
          %v1976 = vadd.f32 %v1208, %v1862
          %v1977 = vadd.f32 %v1209, %v1864
          %v1978 = vadd.f32 %v1210, %v1866
          %v1979 = vadd.f32 %v1211, %v1868
          %v1980 = vadd.f32 %v1212, %v1870
          %v1981 = vadd.f32 %v1213, %v1872
          %v1982 = vadd.f32 %v1214, %v1874
          %v1983 = vadd.f32 %v1215, %v1876
          %v1984 = vadd.f32 %v1216, %v1878
          %v1985 = vadd.f32 %v1217, %v1880
          %v1986 = vadd.f32 %v1218, %v1882
          %v1987 = vadd.f32 %v1219, %v1884
          %v1988 = vadd.f32 %v1220, %v1886
          %v1989 = vadd.f32 %v1221, %v1888
          %v1990 = vadd.f32 %v1222, %v1890
          %v1991 = vadd.f32 %v1223, %v1892
          %v1992 = vadd.f32 %v1224, %v1894
          %v1993 = vadd.f32 %v1225, %v1896
          %v1994 = vadd.f32 %v1226, %v1898
          %v1995 = vmin.f32 %v1899, 100.0
          %v1996 = vmin.f32 %v1900, 100.0
          %v1997 = vmin.f32 %v1901, 100.0
          %v1998 = vmin.f32 %v1902, 100.0
          %v1999 = vmin.f32 %v1903, 100.0
          %v2000 = vmin.f32 %v1904, 100.0
          %v2001 = vmin.f32 %v1905, 100.0
          %v2002 = vmin.f32 %v1906, 100.0
          %v2003 = vmin.f32 %v1907, 100.0
          %v2004 = vmin.f32 %v1908, 100.0
          %v2005 = vmin.f32 %v1909, 100.0
          %v2006 = vmin.f32 %v1910, 100.0
          %v2007 = vmin.f32 %v1911, 100.0
          %v2008 = vmin.f32 %v1912, 100.0
          %v2009 = vmin.f32 %v1913, 100.0
          %v2010 = vmin.f32 %v1914, 100.0
          %v2011 = vmin.f32 %v1915, 100.0
          %v2012 = vmin.f32 %v1916, 100.0
          %v2013 = vmin.f32 %v1917, 100.0
          %v2014 = vmin.f32 %v1918, 100.0
          %v2015 = vmin.f32 %v1919, 100.0
          %v2016 = vmin.f32 %v1920, 100.0
          %v2017 = vmin.f32 %v1921, 100.0
          %v2018 = vmin.f32 %v1922, 100.0
          %v2019 = vmin.f32 %v1923, 100.0
          %v2020 = vmin.f32 %v1924, 100.0
          %v2021 = vmin.f32 %v1925, 100.0
          %v2022 = vmin.f32 %v1926, 100.0
          %v2023 = vmin.f32 %v1927, 100.0
          %v2024 = vmin.f32 %v1928, 100.0
          %v2025 = vmin.f32 %v1929, 100.0
          %v2026 = vmin.f32 %v1930, 100.0
          %v2027 = vmin.f32 %v1931, 100.0
          %v2028 = vmin.f32 %v1932, 100.0
          %v2029 = vmin.f32 %v1933, 100.0
          %v2030 = vmin.f32 %v1934, 100.0
          %v2031 = vmin.f32 %v1935, 100.0
          %v2032 = vmin.f32 %v1936, 100.0
          %v2033 = vmin.f32 %v1937, 100.0
          %v2034 = vmin.f32 %v1938, 100.0
          %v2035 = vmin.f32 %v1939, 100.0
          %v2036 = vmin.f32 %v1940, 100.0
          %v2037 = vmin.f32 %v1941, 100.0
          %v2038 = vmin.f32 %v1942, 100.0
          %v2039 = vmin.f32 %v1943, 100.0
          %v2040 = vmin.f32 %v1944, 100.0
          %v2041 = vmin.f32 %v1945, 100.0
          %v2042 = vmin.f32 %v1946, 100.0
          %v2043 = vmin.f32 %v1947, 100.0
          %v2044 = vmin.f32 %v1948, 100.0
          %v2045 = vmin.f32 %v1949, 100.0
          %v2046 = vmin.f32 %v1950, 100.0
          %v2047 = vmin.f32 %v1951, 100.0
          %v2048 = vmin.f32 %v1952, 100.0
          %v2049 = vmin.f32 %v1953, 100.0
          %v2050 = vmin.f32 %v1954, 100.0
          %v2051 = vmin.f32 %v1955, 100.0
          %v2052 = vmin.f32 %v1956, 100.0
          %v2053 = vmin.f32 %v1957, 100.0
          %v2054 = vmin.f32 %v1958, 100.0
          %v2055 = vmin.f32 %v1959, 100.0
          %v2056 = vmin.f32 %v1960, 100.0
          %v2057 = vmin.f32 %v1961, 100.0
          %v2058 = vmin.f32 %v1962, 100.0
          %v2059 = vmin.f32 %v1963, 100.0
          %v2060 = vmin.f32 %v1964, 100.0
          %v2061 = vmin.f32 %v1965, 100.0
          %v2062 = vmin.f32 %v1966, 100.0
          %v2063 = vmin.f32 %v1967, 100.0
          %v2064 = vmin.f32 %v1968, 100.0
          %v2065 = vmin.f32 %v1969, 100.0
          %v2066 = vmin.f32 %v1970, 100.0
          %v2067 = vmin.f32 %v1971, 100.0
          %v2068 = vmin.f32 %v1972, 100.0
          %v2069 = vmin.f32 %v1973, 100.0
          %v2070 = vmin.f32 %v1974, 100.0
          %v2071 = vmin.f32 %v1975, 100.0
          %v2072 = vmin.f32 %v1976, 100.0
          %v2073 = vmin.f32 %v1977, 100.0
          %v2074 = vmin.f32 %v1978, 100.0
          %v2075 = vmin.f32 %v1979, 100.0
          %v2076 = vmin.f32 %v1980, 100.0
          %v2077 = vmin.f32 %v1981, 100.0
          %v2078 = vmin.f32 %v1982, 100.0
          %v2079 = vmin.f32 %v1983, 100.0
          %v2080 = vmin.f32 %v1984, 100.0
          %v2081 = vmin.f32 %v1985, 100.0
          %v2082 = vmin.f32 %v1986, 100.0
          %v2083 = vmin.f32 %v1987, 100.0
          %v2084 = vmin.f32 %v1988, 100.0
          %v2085 = vmin.f32 %v1989, 100.0
          %v2086 = vmin.f32 %v1990, 100.0
          %v2087 = vmin.f32 %v1991, 100.0
          %v2088 = vmin.f32 %v1992, 100.0
          %v2089 = vmin.f32 %v1993, 100.0
          %v2090 = vmin.f32 %v1994, 100.0
          %v2091 = vlaneseq
          %v2092 = vshrl.u32 %v2091, 7
          %v2093 = vadd.s32 %v2092, 8
          %v2094 = vadd.s32 %v2092, 16
          %v2095 = vadd.s32 %v2092, 24
          %v2096 = vadd.s32 %v2092, 32
          %v2097 = vadd.s32 %v2092, 40
          %v2098 = vadd.s32 %v2092, 48
          %v2099 = vadd.s32 %v2092, 56
          %v2100 = vadd.s32 %v2092, 64
          %v2101 = vadd.s32 %v2092, 72
          %v2102 = vadd.s32 %v2092, 80
          %v2103 = vadd.s32 %v2092, 88
          %v2104 = vadd.s32 %v2092, 96
          %v2105 = vadd.s32 %v2092, 104
          %v2106 = vadd.s32 %v2092, 112
          %v2107 = vadd.s32 %v2092, 120
          %v2108 = vadd.s32 %v2092, 128
          %v2109 = vadd.s32 %v2092, 136
          %v2110 = vadd.s32 %v2092, 144
          %v2111 = vadd.s32 %v2092, 152
          %v2112 = vadd.s32 %v2092, 160
          %v2113 = vadd.s32 %v2092, 168
          %v2114 = vadd.s32 %v2092, 176
          %v2115 = vadd.s32 %v2092, 184
          %v2116 = vadd.s32 %v2092, 192
          %v2117 = vadd.s32 %v2092, 200
          %v2118 = vadd.s32 %v2092, 208
          %v2119 = vadd.s32 %v2092, 216
          %v2120 = vadd.s32 %v2092, 224
          %v2121 = vadd.s32 %v2092, 232
          %v2122 = vadd.s32 %v2092, 240
          %v2123 = vadd.s32 %v2092, 248
          %v2124 = vstv %s252
          %v2125 = vadd.s32 %v2124, %v2092
          %v2126 = vadd.s32 %v2124, %v2093
          %v2127 = vadd.s32 %v2124, %v2094
          %v2128 = vadd.s32 %v2124, %v2095
          %v2129 = vadd.s32 %v2124, %v2096
          %v2130 = vadd.s32 %v2124, %v2097
          %v2131 = vadd.s32 %v2124, %v2098
          %v2132 = vadd.s32 %v2124, %v2099
          %v2133 = vadd.s32 %v2124, %v2100
          %v2134 = vadd.s32 %v2124, %v2101
          %v2135 = vadd.s32 %v2124, %v2102
          %v2136 = vadd.s32 %v2124, %v2103
          %v2137 = vadd.s32 %v2124, %v2104
          %v2138 = vadd.s32 %v2124, %v2105
          %v2139 = vadd.s32 %v2124, %v2106
          %v2140 = vadd.s32 %v2124, %v2107
          %v2141 = vadd.s32 %v2124, %v2108
          %v2142 = vadd.s32 %v2124, %v2109
          %v2143 = vadd.s32 %v2124, %v2110
          %v2144 = vadd.s32 %v2124, %v2111
          %v2145 = vadd.s32 %v2124, %v2112
          %v2146 = vadd.s32 %v2124, %v2113
          %v2147 = vadd.s32 %v2124, %v2114
          %v2148 = vadd.s32 %v2124, %v2115
          %v2149 = vadd.s32 %v2124, %v2116
          %v2150 = vadd.s32 %v2124, %v2117
          %v2151 = vadd.s32 %v2124, %v2118
          %v2152 = vadd.s32 %v2124, %v2119
          %v2153 = vadd.s32 %v2124, %v2120
          %v2154 = vadd.s32 %v2124, %v2121
          %v2155 = vadd.s32 %v2124, %v2122
          %v2156 = vadd.s32 %v2124, %v2123
          %s2157 = smul.u32 %s353, 384
          %v2158 = vlaneseq
          %v2159 = vand.u32 %v2158, 127
          %v2160 = vadd.s32 %v2159, 128
          %v2161 = vadd.s32 %v2159, 256
          %v2162 = vstv %s2157
          %v2163 = vadd.s32 %v2162, %v2159
          %v2164 = vadd.s32 %v2162, %v2160
          %v2165 = vadd.s32 %v2162, %v2161
          %vm2166 = vcmp.gt.s32.totalorder %v2163, %v2125
          %vm2167 = vcmp.gt.s32.totalorder %v2164, %v2125
          %vm2168 = vcmp.gt.s32.totalorder %v2165, %v2125
          %vm2169 = vcmp.gt.s32.totalorder %v2163, %v2126
          %vm2170 = vcmp.gt.s32.totalorder %v2164, %v2126
          %vm2171 = vcmp.gt.s32.totalorder %v2165, %v2126
          %vm2172 = vcmp.gt.s32.totalorder %v2163, %v2127
          %vm2173 = vcmp.gt.s32.totalorder %v2164, %v2127
          %vm2174 = vcmp.gt.s32.totalorder %v2165, %v2127
          %vm2175 = vcmp.gt.s32.totalorder %v2163, %v2128
          %vm2176 = vcmp.gt.s32.totalorder %v2164, %v2128
          %vm2177 = vcmp.gt.s32.totalorder %v2165, %v2128
          %vm2178 = vcmp.gt.s32.totalorder %v2163, %v2129
          %vm2179 = vcmp.gt.s32.totalorder %v2164, %v2129
          %vm2180 = vcmp.gt.s32.totalorder %v2165, %v2129
          %vm2181 = vcmp.gt.s32.totalorder %v2163, %v2130
          %vm2182 = vcmp.gt.s32.totalorder %v2164, %v2130
          %vm2183 = vcmp.gt.s32.totalorder %v2165, %v2130
          %vm2184 = vcmp.gt.s32.totalorder %v2163, %v2131
          %vm2185 = vcmp.gt.s32.totalorder %v2164, %v2131
          %vm2186 = vcmp.gt.s32.totalorder %v2165, %v2131
          %vm2187 = vcmp.gt.s32.totalorder %v2163, %v2132
          %vm2188 = vcmp.gt.s32.totalorder %v2164, %v2132
          %vm2189 = vcmp.gt.s32.totalorder %v2165, %v2132
          %vm2190 = vcmp.gt.s32.totalorder %v2163, %v2133
          %vm2191 = vcmp.gt.s32.totalorder %v2164, %v2133
          %vm2192 = vcmp.gt.s32.totalorder %v2165, %v2133
          %vm2193 = vcmp.gt.s32.totalorder %v2163, %v2134
          %vm2194 = vcmp.gt.s32.totalorder %v2164, %v2134
          %vm2195 = vcmp.gt.s32.totalorder %v2165, %v2134
          %vm2196 = vcmp.gt.s32.totalorder %v2163, %v2135
          %vm2197 = vcmp.gt.s32.totalorder %v2164, %v2135
          %vm2198 = vcmp.gt.s32.totalorder %v2165, %v2135
          %vm2199 = vcmp.gt.s32.totalorder %v2163, %v2136
          %vm2200 = vcmp.gt.s32.totalorder %v2164, %v2136
          %vm2201 = vcmp.gt.s32.totalorder %v2165, %v2136
          %vm2202 = vcmp.gt.s32.totalorder %v2163, %v2137
          %vm2203 = vcmp.gt.s32.totalorder %v2164, %v2137
          %vm2204 = vcmp.gt.s32.totalorder %v2165, %v2137
          %vm2205 = vcmp.gt.s32.totalorder %v2163, %v2138
          %vm2206 = vcmp.gt.s32.totalorder %v2164, %v2138
          %vm2207 = vcmp.gt.s32.totalorder %v2165, %v2138
          %vm2208 = vcmp.gt.s32.totalorder %v2163, %v2139
          %vm2209 = vcmp.gt.s32.totalorder %v2164, %v2139
          %vm2210 = vcmp.gt.s32.totalorder %v2165, %v2139
          %vm2211 = vcmp.gt.s32.totalorder %v2163, %v2140
          %vm2212 = vcmp.gt.s32.totalorder %v2164, %v2140
          %vm2213 = vcmp.gt.s32.totalorder %v2165, %v2140
          %vm2214 = vcmp.gt.s32.totalorder %v2163, %v2141
          %vm2215 = vcmp.gt.s32.totalorder %v2164, %v2141
          %vm2216 = vcmp.gt.s32.totalorder %v2165, %v2141
          %vm2217 = vcmp.gt.s32.totalorder %v2163, %v2142
          %vm2218 = vcmp.gt.s32.totalorder %v2164, %v2142
          %vm2219 = vcmp.gt.s32.totalorder %v2165, %v2142
          %vm2220 = vcmp.gt.s32.totalorder %v2163, %v2143
          %vm2221 = vcmp.gt.s32.totalorder %v2164, %v2143
          %vm2222 = vcmp.gt.s32.totalorder %v2165, %v2143
          %vm2223 = vcmp.gt.s32.totalorder %v2163, %v2144
          %vm2224 = vcmp.gt.s32.totalorder %v2164, %v2144
          %vm2225 = vcmp.gt.s32.totalorder %v2165, %v2144
          %vm2226 = vcmp.gt.s32.totalorder %v2163, %v2145
          %vm2227 = vcmp.gt.s32.totalorder %v2164, %v2145
          %vm2228 = vcmp.gt.s32.totalorder %v2165, %v2145
          %vm2229 = vcmp.gt.s32.totalorder %v2163, %v2146
          %vm2230 = vcmp.gt.s32.totalorder %v2164, %v2146
          %vm2231 = vcmp.gt.s32.totalorder %v2165, %v2146
          %vm2232 = vcmp.gt.s32.totalorder %v2163, %v2147
          %vm2233 = vcmp.gt.s32.totalorder %v2164, %v2147
          %vm2234 = vcmp.gt.s32.totalorder %v2165, %v2147
          %vm2235 = vcmp.gt.s32.totalorder %v2163, %v2148
          %vm2236 = vcmp.gt.s32.totalorder %v2164, %v2148
          %vm2237 = vcmp.gt.s32.totalorder %v2165, %v2148
          %vm2238 = vcmp.gt.s32.totalorder %v2163, %v2149
          %vm2239 = vcmp.gt.s32.totalorder %v2164, %v2149
          %vm2240 = vcmp.gt.s32.totalorder %v2165, %v2149
          %vm2241 = vcmp.gt.s32.totalorder %v2163, %v2150
          %vm2242 = vcmp.gt.s32.totalorder %v2164, %v2150
          %vm2243 = vcmp.gt.s32.totalorder %v2165, %v2150
          %vm2244 = vcmp.gt.s32.totalorder %v2163, %v2151
          %vm2245 = vcmp.gt.s32.totalorder %v2164, %v2151
          %vm2246 = vcmp.gt.s32.totalorder %v2165, %v2151
          %vm2247 = vcmp.gt.s32.totalorder %v2163, %v2152
          %vm2248 = vcmp.gt.s32.totalorder %v2164, %v2152
          %vm2249 = vcmp.gt.s32.totalorder %v2165, %v2152
          %vm2250 = vcmp.gt.s32.totalorder %v2163, %v2153
          %vm2251 = vcmp.gt.s32.totalorder %v2164, %v2153
          %vm2252 = vcmp.gt.s32.totalorder %v2165, %v2153
          %vm2253 = vcmp.gt.s32.totalorder %v2163, %v2154
          %vm2254 = vcmp.gt.s32.totalorder %v2164, %v2154
          %vm2255 = vcmp.gt.s32.totalorder %v2165, %v2154
          %vm2256 = vcmp.gt.s32.totalorder %v2163, %v2155
          %vm2257 = vcmp.gt.s32.totalorder %v2164, %v2155
          %vm2258 = vcmp.gt.s32.totalorder %v2165, %v2155
          %vm2259 = vcmp.gt.s32.totalorder %v2163, %v2156
          %vm2260 = vcmp.gt.s32.totalorder %v2164, %v2156
          %vm2261 = vcmp.gt.s32.totalorder %v2165, %v2156
          %v2262 = vsel %vm2166, %v1995, 0.0
          %v2263 = vsel %vm2167, %v1996, 0.0
          %v2264 = vsel %vm2168, %v1997, 0.0
          %v2265 = vsel %vm2169, %v1998, 0.0
          %v2266 = vsel %vm2170, %v1999, 0.0
          %v2267 = vsel %vm2171, %v2000, 0.0
          %v2268 = vsel %vm2172, %v2001, 0.0
          %v2269 = vsel %vm2173, %v2002, 0.0
          %v2270 = vsel %vm2174, %v2003, 0.0
          %v2271 = vsel %vm2175, %v2004, 0.0
          %v2272 = vsel %vm2176, %v2005, 0.0
          %v2273 = vsel %vm2177, %v2006, 0.0
          %v2274 = vsel %vm2178, %v2007, 0.0
          %v2275 = vsel %vm2179, %v2008, 0.0
          %v2276 = vsel %vm2180, %v2009, 0.0
          %v2277 = vsel %vm2181, %v2010, 0.0
          %v2278 = vsel %vm2182, %v2011, 0.0
          %v2279 = vsel %vm2183, %v2012, 0.0
          %v2280 = vsel %vm2184, %v2013, 0.0
          %v2281 = vsel %vm2185, %v2014, 0.0
          %v2282 = vsel %vm2186, %v2015, 0.0
          %v2283 = vsel %vm2187, %v2016, 0.0
          %v2284 = vsel %vm2188, %v2017, 0.0
          %v2285 = vsel %vm2189, %v2018, 0.0
          %v2286 = vsel %vm2190, %v2019, 0.0
          %v2287 = vsel %vm2191, %v2020, 0.0
          %v2288 = vsel %vm2192, %v2021, 0.0
          %v2289 = vsel %vm2193, %v2022, 0.0
          %v2290 = vsel %vm2194, %v2023, 0.0
          %v2291 = vsel %vm2195, %v2024, 0.0
          %v2292 = vsel %vm2196, %v2025, 0.0
          %v2293 = vsel %vm2197, %v2026, 0.0
          %v2294 = vsel %vm2198, %v2027, 0.0
          %v2295 = vsel %vm2199, %v2028, 0.0
          %v2296 = vsel %vm2200, %v2029, 0.0
          %v2297 = vsel %vm2201, %v2030, 0.0
          %v2298 = vsel %vm2202, %v2031, 0.0
          %v2299 = vsel %vm2203, %v2032, 0.0
          %v2300 = vsel %vm2204, %v2033, 0.0
          %v2301 = vsel %vm2205, %v2034, 0.0
          %v2302 = vsel %vm2206, %v2035, 0.0
          %v2303 = vsel %vm2207, %v2036, 0.0
          %v2304 = vsel %vm2208, %v2037, 0.0
          %v2305 = vsel %vm2209, %v2038, 0.0
          %v2306 = vsel %vm2210, %v2039, 0.0
          %v2307 = vsel %vm2211, %v2040, 0.0
          %v2308 = vsel %vm2212, %v2041, 0.0
          %v2309 = vsel %vm2213, %v2042, 0.0
          %v2310 = vsel %vm2214, %v2043, 0.0
          %v2311 = vsel %vm2215, %v2044, 0.0
          %v2312 = vsel %vm2216, %v2045, 0.0
          %v2313 = vsel %vm2217, %v2046, 0.0
          %v2314 = vsel %vm2218, %v2047, 0.0
          %v2315 = vsel %vm2219, %v2048, 0.0
          %v2316 = vsel %vm2220, %v2049, 0.0
          %v2317 = vsel %vm2221, %v2050, 0.0
          %v2318 = vsel %vm2222, %v2051, 0.0
          %v2319 = vsel %vm2223, %v2052, 0.0
          %v2320 = vsel %vm2224, %v2053, 0.0
          %v2321 = vsel %vm2225, %v2054, 0.0
          %v2322 = vsel %vm2226, %v2055, 0.0
          %v2323 = vsel %vm2227, %v2056, 0.0
          %v2324 = vsel %vm2228, %v2057, 0.0
          %v2325 = vsel %vm2229, %v2058, 0.0
          %v2326 = vsel %vm2230, %v2059, 0.0
          %v2327 = vsel %vm2231, %v2060, 0.0
          %v2328 = vsel %vm2232, %v2061, 0.0
          %v2329 = vsel %vm2233, %v2062, 0.0
          %v2330 = vsel %vm2234, %v2063, 0.0
          %v2331 = vsel %vm2235, %v2064, 0.0
          %v2332 = vsel %vm2236, %v2065, 0.0
          %v2333 = vsel %vm2237, %v2066, 0.0
          %v2334 = vsel %vm2238, %v2067, 0.0
          %v2335 = vsel %vm2239, %v2068, 0.0
          %v2336 = vsel %vm2240, %v2069, 0.0
          %v2337 = vsel %vm2241, %v2070, 0.0
          %v2338 = vsel %vm2242, %v2071, 0.0
          %v2339 = vsel %vm2243, %v2072, 0.0
          %v2340 = vsel %vm2244, %v2073, 0.0
          %v2341 = vsel %vm2245, %v2074, 0.0
          %v2342 = vsel %vm2246, %v2075, 0.0
          %v2343 = vsel %vm2247, %v2076, 0.0
          %v2344 = vsel %vm2248, %v2077, 0.0
          %v2345 = vsel %vm2249, %v2078, 0.0
          %v2346 = vsel %vm2250, %v2079, 0.0
          %v2347 = vsel %vm2251, %v2080, 0.0
          %v2348 = vsel %vm2252, %v2081, 0.0
          %v2349 = vsel %vm2253, %v2082, 0.0
          %v2350 = vsel %vm2254, %v2083, 0.0
          %v2351 = vsel %vm2255, %v2084, 0.0
          %v2352 = vsel %vm2256, %v2085, 0.0
          %v2353 = vsel %vm2257, %v2086, 0.0
          %v2354 = vsel %vm2258, %v2087, 0.0
          %v2355 = vsel %vm2259, %v2088, 0.0
          %v2356 = vsel %vm2260, %v2089, 0.0
          %v2357 = vsel %vm2261, %v2090, 0.0
          %v2358 = vadd.f32 %v2262, %v2263
          %v2359 = vadd.f32 %v2358, %v2264
          %2360 = vadd.xlane.f32.xlu0 %v2359
          %v2361 = vpop.xlane.xlu0 %2360
          %v2362 = vadd.f32 %v2265, %v2266
          %v2363 = vadd.f32 %v2362, %v2267
          %2364 = vadd.xlane.f32.xlu0 %v2363
          %v2365 = vpop.xlane.xlu0 %2364
          %v2366 = vadd.f32 %v2268, %v2269
          %v2367 = vadd.f32 %v2366, %v2270
          %2368 = vadd.xlane.f32.xlu0 %v2367
          %v2369 = vpop.xlane.xlu0 %2368
          %v2370 = vadd.f32 %v2271, %v2272
          %v2371 = vadd.f32 %v2370, %v2273
          %2372 = vadd.xlane.f32.xlu0 %v2371
          %v2373 = vpop.xlane.xlu0 %2372
          %v2374 = vadd.f32 %v2274, %v2275
          %v2375 = vadd.f32 %v2374, %v2276
          %2376 = vadd.xlane.f32.xlu0 %v2375
          %v2377 = vpop.xlane.xlu0 %2376
          %v2378 = vadd.f32 %v2277, %v2278
          %v2379 = vadd.f32 %v2378, %v2279
          %2380 = vadd.xlane.f32.xlu0 %v2379
          %v2381 = vpop.xlane.xlu0 %2380
          %v2382 = vadd.f32 %v2280, %v2281
          %v2383 = vadd.f32 %v2382, %v2282
          %2384 = vadd.xlane.f32.xlu0 %v2383
          %v2385 = vpop.xlane.xlu0 %2384
          %v2386 = vadd.f32 %v2283, %v2284
          %v2387 = vadd.f32 %v2386, %v2285
          %2388 = vadd.xlane.f32.xlu0 %v2387
          %v2389 = vpop.xlane.xlu0 %2388
          %v2390 = vadd.f32 %v2286, %v2287
          %v2391 = vadd.f32 %v2390, %v2288
          %2392 = vadd.xlane.f32.xlu0 %v2391
          %v2393 = vpop.xlane.xlu0 %2392
          %v2394 = vadd.f32 %v2289, %v2290
          %v2395 = vadd.f32 %v2394, %v2291
          %2396 = vadd.xlane.f32.xlu0 %v2395
          %v2397 = vpop.xlane.xlu0 %2396
          %v2398 = vadd.f32 %v2292, %v2293
          %v2399 = vadd.f32 %v2398, %v2294
          %2400 = vadd.xlane.f32.xlu0 %v2399
          %v2401 = vpop.xlane.xlu0 %2400
          %v2402 = vadd.f32 %v2295, %v2296
          %v2403 = vadd.f32 %v2402, %v2297
          %2404 = vadd.xlane.f32.xlu0 %v2403
          %v2405 = vpop.xlane.xlu0 %2404
          %v2406 = vadd.f32 %v2298, %v2299
          %v2407 = vadd.f32 %v2406, %v2300
          %2408 = vadd.xlane.f32.xlu0 %v2407
          %v2409 = vpop.xlane.xlu0 %2408
          %v2410 = vadd.f32 %v2301, %v2302
          %v2411 = vadd.f32 %v2410, %v2303
          %2412 = vadd.xlane.f32.xlu0 %v2411
          %v2413 = vpop.xlane.xlu0 %2412
          %v2414 = vadd.f32 %v2304, %v2305
          %v2415 = vadd.f32 %v2414, %v2306
          %2416 = vadd.xlane.f32.xlu0 %v2415
          %v2417 = vpop.xlane.xlu0 %2416
          %v2418 = vadd.f32 %v2307, %v2308
          %v2419 = vadd.f32 %v2418, %v2309
          %2420 = vadd.xlane.f32.xlu0 %v2419
          %v2421 = vpop.xlane.xlu0 %2420
          %v2422 = vadd.f32 %v2310, %v2311
          %v2423 = vadd.f32 %v2422, %v2312
          %2424 = vadd.xlane.f32.xlu0 %v2423
          %v2425 = vpop.xlane.xlu0 %2424
          %v2426 = vadd.f32 %v2313, %v2314
          %v2427 = vadd.f32 %v2426, %v2315
          %2428 = vadd.xlane.f32.xlu0 %v2427
          %v2429 = vpop.xlane.xlu0 %2428
          %v2430 = vadd.f32 %v2316, %v2317
          %v2431 = vadd.f32 %v2430, %v2318
          %2432 = vadd.xlane.f32.xlu0 %v2431
          %v2433 = vpop.xlane.xlu0 %2432
          %v2434 = vadd.f32 %v2319, %v2320
          %v2435 = vadd.f32 %v2434, %v2321
          %2436 = vadd.xlane.f32.xlu0 %v2435
          %v2437 = vpop.xlane.xlu0 %2436
          %v2438 = vadd.f32 %v2322, %v2323
          %v2439 = vadd.f32 %v2438, %v2324
          %2440 = vadd.xlane.f32.xlu0 %v2439
          %v2441 = vpop.xlane.xlu0 %2440
          %v2442 = vadd.f32 %v2325, %v2326
          %v2443 = vadd.f32 %v2442, %v2327
          %2444 = vadd.xlane.f32.xlu0 %v2443
          %v2445 = vpop.xlane.xlu0 %2444
          %v2446 = vadd.f32 %v2328, %v2329
          %v2447 = vadd.f32 %v2446, %v2330
          %2448 = vadd.xlane.f32.xlu0 %v2447
          %v2449 = vpop.xlane.xlu0 %2448
          %v2450 = vadd.f32 %v2331, %v2332
          %v2451 = vadd.f32 %v2450, %v2333
          %2452 = vadd.xlane.f32.xlu0 %v2451
          %v2453 = vpop.xlane.xlu0 %2452
          %v2454 = vadd.f32 %v2334, %v2335
          %v2455 = vadd.f32 %v2454, %v2336
          %2456 = vadd.xlane.f32.xlu0 %v2455
          %v2457 = vpop.xlane.xlu0 %2456
          %v2458 = vadd.f32 %v2337, %v2338
          %v2459 = vadd.f32 %v2458, %v2339
          %2460 = vadd.xlane.f32.xlu0 %v2459
          %v2461 = vpop.xlane.xlu0 %2460
          %v2462 = vadd.f32 %v2340, %v2341
          %v2463 = vadd.f32 %v2462, %v2342
          %2464 = vadd.xlane.f32.xlu0 %v2463
          %v2465 = vpop.xlane.xlu0 %2464
          %v2466 = vadd.f32 %v2343, %v2344
          %v2467 = vadd.f32 %v2466, %v2345
          %2468 = vadd.xlane.f32.xlu0 %v2467
          %v2469 = vpop.xlane.xlu0 %2468
          %v2470 = vadd.f32 %v2346, %v2347
          %v2471 = vadd.f32 %v2470, %v2348
          %2472 = vadd.xlane.f32.xlu0 %v2471
          %v2473 = vpop.xlane.xlu0 %2472
          %v2474 = vadd.f32 %v2349, %v2350
          %v2475 = vadd.f32 %v2474, %v2351
          %2476 = vadd.xlane.f32.xlu0 %v2475
          %v2477 = vpop.xlane.xlu0 %2476
          %v2478 = vadd.f32 %v2352, %v2353
          %v2479 = vadd.f32 %v2478, %v2354
          %2480 = vadd.xlane.f32.xlu0 %v2479
          %v2481 = vpop.xlane.xlu0 %2480
          %v2482 = vadd.f32 %v2355, %v2356
          %v2483 = vadd.f32 %v2482, %v2357
          %2484 = vadd.xlane.f32.xlu0 %v2483
          %v2485 = vpop.xlane.xlu0 %2484
          %v2486 = vadd.f32 %v358, %v2361
          %v2487 = vadd.f32 %v359, %v2365
          %v2488 = vadd.f32 %v360, %v2369
          %v2489 = vadd.f32 %v361, %v2373
          %v2490 = vadd.f32 %v362, %v2377
          %v2491 = vadd.f32 %v363, %v2381
          %v2492 = vadd.f32 %v364, %v2385
          %v2493 = vadd.f32 %v365, %v2389
          %v2494 = vadd.f32 %v366, %v2393
          %v2495 = vadd.f32 %v367, %v2397
          %v2496 = vadd.f32 %v368, %v2401
          %v2497 = vadd.f32 %v369, %v2405
          %v2498 = vadd.f32 %v370, %v2409
          %v2499 = vadd.f32 %v371, %v2413
          %v2500 = vadd.f32 %v372, %v2417
          %v2501 = vadd.f32 %v373, %v2421
          %v2502 = vadd.f32 %v374, %v2425
          %v2503 = vadd.f32 %v375, %v2429
          %v2504 = vadd.f32 %v376, %v2433
          %v2505 = vadd.f32 %v377, %v2437
          %v2506 = vadd.f32 %v378, %v2441
          %v2507 = vadd.f32 %v379, %v2445
          %v2508 = vadd.f32 %v380, %v2449
          %v2509 = vadd.f32 %v381, %v2453
          %v2510 = vadd.f32 %v382, %v2457
          %v2511 = vadd.f32 %v383, %v2461
          %v2512 = vadd.f32 %v384, %v2465
          %v2513 = vadd.f32 %v385, %v2469
          %v2514 = vadd.f32 %v386, %v2473
          %v2515 = vadd.f32 %v387, %v2477
          %v2516 = vadd.f32 %v388, %v2481
          %v2517 = vadd.f32 %v389, %v2485
          %2518 = vst.msk [vmem:[#allocation2] sm:$0xff] %vm319, %v2486
          %2519 = vst.msk [vmem:[#allocation2 + $0x8] sm:$0xff] %vm319, %v2487
          %2520 = vst.msk [vmem:[#allocation2 + $0x10] sm:$0xff] %vm319, %v2488
          %2521 = vst.msk [vmem:[#allocation2 + $0x18] sm:$0xff] %vm319, %v2489
          %2522 = vst.msk [vmem:[#allocation2 + $0x20] sm:$0xff] %vm319, %v2490
          %2523 = vst.msk [vmem:[#allocation2 + $0x28] sm:$0xff] %vm319, %v2491
          %2524 = vst.msk [vmem:[#allocation2 + $0x30] sm:$0xff] %vm319, %v2492
          %2525 = vst.msk [vmem:[#allocation2 + $0x38] sm:$0xff] %vm319, %v2493
          %2526 = vst.msk [vmem:[#allocation2 + $0x40] sm:$0xff] %vm319, %v2494
          %2527 = vst.msk [vmem:[#allocation2 + $0x48] sm:$0xff] %vm319, %v2495
          %2528 = vst.msk [vmem:[#allocation2 + $0x50] sm:$0xff] %vm319, %v2496
          %2529 = vst.msk [vmem:[#allocation2 + $0x58] sm:$0xff] %vm319, %v2497
          %2530 = vst.msk [vmem:[#allocation2 + $0x60] sm:$0xff] %vm319, %v2498
          %2531 = vst.msk [vmem:[#allocation2 + $0x68] sm:$0xff] %vm319, %v2499
          %2532 = vst.msk [vmem:[#allocation2 + $0x70] sm:$0xff] %vm319, %v2500
          %2533 = vst.msk [vmem:[#allocation2 + $0x78] sm:$0xff] %vm319, %v2501
          %2534 = vst.msk [vmem:[#allocation2 + $0x80] sm:$0xff] %vm319, %v2502
          %2535 = vst.msk [vmem:[#allocation2 + $0x88] sm:$0xff] %vm319, %v2503
          %2536 = vst.msk [vmem:[#allocation2 + $0x90] sm:$0xff] %vm319, %v2504
          %2537 = vst.msk [vmem:[#allocation2 + $0x98] sm:$0xff] %vm319, %v2505
          %2538 = vst.msk [vmem:[#allocation2 + $0xa0] sm:$0xff] %vm319, %v2506
          %2539 = vst.msk [vmem:[#allocation2 + $0xa8] sm:$0xff] %vm319, %v2507
          %2540 = vst.msk [vmem:[#allocation2 + $0xb0] sm:$0xff] %vm319, %v2508
          %2541 = vst.msk [vmem:[#allocation2 + $0xb8] sm:$0xff] %vm319, %v2509
          %2542 = vst.msk [vmem:[#allocation2 + $0xc0] sm:$0xff] %vm319, %v2510
          %2543 = vst.msk [vmem:[#allocation2 + $0xc8] sm:$0xff] %vm319, %v2511
          %2544 = vst.msk [vmem:[#allocation2 + $0xd0] sm:$0xff] %vm319, %v2512
          %2545 = vst.msk [vmem:[#allocation2 + $0xd8] sm:$0xff] %vm319, %v2513
          %2546 = vst.msk [vmem:[#allocation2 + $0xe0] sm:$0xff] %vm319, %v2514
          %2547 = vst.msk [vmem:[#allocation2 + $0xe8] sm:$0xff] %vm319, %v2515
          %2548 = vst.msk [vmem:[#allocation2 + $0xf0] sm:$0xff] %vm319, %v2516
          %2549 = vst.msk [vmem:[#allocation2 + $0xf8] sm:$0xff] %vm319, %v2517
        $region41: #{tpu_custom_call.1} parent=35 // loop_footer
          %s355 = sadd.s32 %s353, 1
        $region42: #{tpu_custom_call.1} parent=35 // loop_footer_branch
          %352 = sbr.rel target = $region38
        $region43: #{tpu_custom_call.1} parent=35 // loop_exit
          _
        // While loop
        $region44: #{tpu_custom_call.1} parent=35 // loop_pre_header
          _
        $region45: #{tpu_custom_call.1} parent=35 // loop_header
          %s2551 = sphi %s254, %s2553
          %p2552 = scmp.ge.s32.totalorder %s2551, 1
        $region46: #{tpu_custom_call.1} parent=35 // loop_header_branch
          %2555 = sbr.rel (%p2552) target = $region50
        $region47: #{tpu_custom_call.1} parent=35 // loop_body
          %v2556 = vld [vmem:[#allocation2] sm:$0xff]
          %v2557 = vld [vmem:[#allocation2 + $0x8] sm:$0xff]
          %v2558 = vld [vmem:[#allocation2 + $0x10] sm:$0xff]
          %v2559 = vld [vmem:[#allocation2 + $0x18] sm:$0xff]
          %v2560 = vld [vmem:[#allocation2 + $0x20] sm:$0xff]
          %v2561 = vld [vmem:[#allocation2 + $0x28] sm:$0xff]
          %v2562 = vld [vmem:[#allocation2 + $0x30] sm:$0xff]
          %v2563 = vld [vmem:[#allocation2 + $0x38] sm:$0xff]
          %v2564 = vld [vmem:[#allocation2 + $0x40] sm:$0xff]
          %v2565 = vld [vmem:[#allocation2 + $0x48] sm:$0xff]
          %v2566 = vld [vmem:[#allocation2 + $0x50] sm:$0xff]
          %v2567 = vld [vmem:[#allocation2 + $0x58] sm:$0xff]
          %v2568 = vld [vmem:[#allocation2 + $0x60] sm:$0xff]
          %v2569 = vld [vmem:[#allocation2 + $0x68] sm:$0xff]
          %v2570 = vld [vmem:[#allocation2 + $0x70] sm:$0xff]
          %v2571 = vld [vmem:[#allocation2 + $0x78] sm:$0xff]
          %v2572 = vld [vmem:[#allocation2 + $0x80] sm:$0xff]
          %v2573 = vld [vmem:[#allocation2 + $0x88] sm:$0xff]
          %v2574 = vld [vmem:[#allocation2 + $0x90] sm:$0xff]
          %v2575 = vld [vmem:[#allocation2 + $0x98] sm:$0xff]
          %v2576 = vld [vmem:[#allocation2 + $0xa0] sm:$0xff]
          %v2577 = vld [vmem:[#allocation2 + $0xa8] sm:$0xff]
          %v2578 = vld [vmem:[#allocation2 + $0xb0] sm:$0xff]
          %v2579 = vld [vmem:[#allocation2 + $0xb8] sm:$0xff]
          %v2580 = vld [vmem:[#allocation2 + $0xc0] sm:$0xff]
          %v2581 = vld [vmem:[#allocation2 + $0xc8] sm:$0xff]
          %v2582 = vld [vmem:[#allocation2 + $0xd0] sm:$0xff]
          %v2583 = vld [vmem:[#allocation2 + $0xd8] sm:$0xff]
          %v2584 = vld [vmem:[#allocation2 + $0xe0] sm:$0xff]
          %v2585 = vld [vmem:[#allocation2 + $0xe8] sm:$0xff]
          %v2586 = vld [vmem:[#allocation2 + $0xf0] sm:$0xff]
          %v2587 = vld [vmem:[#allocation2 + $0xf8] sm:$0xff]
          %s2588 = smul.u32 %s2551, 3
          %s2589 = scalar_lea.vmem %s5, %s2588
          %v2590 = vld [vmem:[%s2589] sm:$0x7]
          %s2591 = scalar_lea.vmem %s6, %s2588
          %v2592 = vld [vmem:[%s2591] sm:$0x7]
          %2594 = vset.pattern.permute.xlu0 0
          %2595 = vperm.xlu0 %2594, %v255
          %v2596 = vpop.permute.xlu0 %2595
          %2599 = vset.pattern.permute.xlu0 0
          %2600 = vperm.xlu0 %2599, %v256
          %v2601 = vpop.permute.xlu0 %2600
          %2604 = vset.pattern.permute.xlu0 0
          %2605 = vperm.xlu0 %2604, %v257
          %v2606 = vpop.permute.xlu0 %2605
          %2609 = vset.pattern.permute.xlu0 0
          %2610 = vperm.xlu0 %2609, %v258
          %v2611 = vpop.permute.xlu0 %2610
          %2614 = vset.pattern.permute.xlu0 0
          %2615 = vperm.xlu0 %2614, %v259
          %v2616 = vpop.permute.xlu0 %2615
          %2619 = vset.pattern.permute.xlu0 0
          %2620 = vperm.xlu0 %2619, %v260
          %v2621 = vpop.permute.xlu0 %2620
          %2624 = vset.pattern.permute.xlu0 0
          %2625 = vperm.xlu0 %2624, %v261
          %v2626 = vpop.permute.xlu0 %2625
          %2629 = vset.pattern.permute.xlu0 0
          %2630 = vperm.xlu0 %2629, %v262
          %v2631 = vpop.permute.xlu0 %2630
          %2634 = vset.pattern.permute.xlu0 0
          %2635 = vperm.xlu0 %2634, %v263
          %v2636 = vpop.permute.xlu0 %2635
          %2639 = vset.pattern.permute.xlu0 0
          %2640 = vperm.xlu0 %2639, %v264
          %v2641 = vpop.permute.xlu0 %2640
          %2644 = vset.pattern.permute.xlu0 0
          %2645 = vperm.xlu0 %2644, %v265
          %v2646 = vpop.permute.xlu0 %2645
          %2649 = vset.pattern.permute.xlu0 0
          %2650 = vperm.xlu0 %2649, %v266
          %v2651 = vpop.permute.xlu0 %2650
          %2654 = vset.pattern.permute.xlu0 0
          %2655 = vperm.xlu0 %2654, %v267
          %v2656 = vpop.permute.xlu0 %2655
          %2659 = vset.pattern.permute.xlu0 0
          %2660 = vperm.xlu0 %2659, %v268
          %v2661 = vpop.permute.xlu0 %2660
          %2664 = vset.pattern.permute.xlu0 0
          %2665 = vperm.xlu0 %2664, %v269
          %v2666 = vpop.permute.xlu0 %2665
          %2669 = vset.pattern.permute.xlu0 0
          %2670 = vperm.xlu0 %2669, %v270
          %v2671 = vpop.permute.xlu0 %2670
          %2674 = vset.pattern.permute.xlu0 0
          %2675 = vperm.xlu0 %2674, %v271
          %v2676 = vpop.permute.xlu0 %2675
          %2679 = vset.pattern.permute.xlu0 0
          %2680 = vperm.xlu0 %2679, %v272
          %v2681 = vpop.permute.xlu0 %2680
          %2684 = vset.pattern.permute.xlu0 0
          %2685 = vperm.xlu0 %2684, %v273
          %v2686 = vpop.permute.xlu0 %2685
          %2689 = vset.pattern.permute.xlu0 0
          %2690 = vperm.xlu0 %2689, %v274
          %v2691 = vpop.permute.xlu0 %2690
          %2694 = vset.pattern.permute.xlu0 0
          %2695 = vperm.xlu0 %2694, %v275
          %v2696 = vpop.permute.xlu0 %2695
          %2699 = vset.pattern.permute.xlu0 0
          %2700 = vperm.xlu0 %2699, %v276
          %v2701 = vpop.permute.xlu0 %2700
          %2704 = vset.pattern.permute.xlu0 0
          %2705 = vperm.xlu0 %2704, %v277
          %v2706 = vpop.permute.xlu0 %2705
          %2709 = vset.pattern.permute.xlu0 0
          %2710 = vperm.xlu0 %2709, %v278
          %v2711 = vpop.permute.xlu0 %2710
          %2714 = vset.pattern.permute.xlu0 0
          %2715 = vperm.xlu0 %2714, %v279
          %v2716 = vpop.permute.xlu0 %2715
          %2719 = vset.pattern.permute.xlu0 0
          %2720 = vperm.xlu0 %2719, %v280
          %v2721 = vpop.permute.xlu0 %2720
          %2724 = vset.pattern.permute.xlu0 0
          %2725 = vperm.xlu0 %2724, %v281
          %v2726 = vpop.permute.xlu0 %2725
          %2729 = vset.pattern.permute.xlu0 0
          %2730 = vperm.xlu0 %2729, %v282
          %v2731 = vpop.permute.xlu0 %2730
          %2734 = vset.pattern.permute.xlu0 0
          %2735 = vperm.xlu0 %2734, %v283
          %v2736 = vpop.permute.xlu0 %2735
          %2739 = vset.pattern.permute.xlu0 0
          %2740 = vperm.xlu0 %2739, %v284
          %v2741 = vpop.permute.xlu0 %2740
          %2744 = vset.pattern.permute.xlu0 0
          %2745 = vperm.xlu0 %2744, %v285
          %v2746 = vpop.permute.xlu0 %2745
          %2749 = vset.pattern.permute.xlu0 0
          %2750 = vperm.xlu0 %2749, %v286
          %v2751 = vpop.permute.xlu0 %2750
          %v2754 = vlaneseq
          %v2755 = vshrl.u32 %v2754, 7
          %v2756 = vsub.s32 0, %v2755
          %v2757 = vrot.slane %v2590, %v2756
          %v2758 = vlaneseq
          %v2759 = vshrl.u32 %v2758, 7
          %v2760 = vsub.s32 1, %v2759
          %v2761 = vrot.slane %v2590, %v2760
          %v2762 = vlaneseq
          %v2763 = vshrl.u32 %v2762, 7
          %v2764 = vsub.s32 2, %v2763
          %v2765 = vrot.slane %v2590, %v2764
          %v2769 = vsub.f32 %v2596, %v2757
          %v2770 = vsub.f32 %v2596, %v2761
          %v2771 = vsub.f32 %v2596, %v2765
          %v2772 = vsub.f32 %v2601, %v2757
          %v2773 = vsub.f32 %v2601, %v2761
          %v2774 = vsub.f32 %v2601, %v2765
          %v2775 = vsub.f32 %v2606, %v2757
          %v2776 = vsub.f32 %v2606, %v2761
          %v2777 = vsub.f32 %v2606, %v2765
          %v2778 = vsub.f32 %v2611, %v2757
          %v2779 = vsub.f32 %v2611, %v2761
          %v2780 = vsub.f32 %v2611, %v2765
          %v2781 = vsub.f32 %v2616, %v2757
          %v2782 = vsub.f32 %v2616, %v2761
          %v2783 = vsub.f32 %v2616, %v2765
          %v2784 = vsub.f32 %v2621, %v2757
          %v2785 = vsub.f32 %v2621, %v2761
          %v2786 = vsub.f32 %v2621, %v2765
          %v2787 = vsub.f32 %v2626, %v2757
          %v2788 = vsub.f32 %v2626, %v2761
          %v2789 = vsub.f32 %v2626, %v2765
          %v2790 = vsub.f32 %v2631, %v2757
          %v2791 = vsub.f32 %v2631, %v2761
          %v2792 = vsub.f32 %v2631, %v2765
          %v2793 = vsub.f32 %v2636, %v2757
          %v2794 = vsub.f32 %v2636, %v2761
          %v2795 = vsub.f32 %v2636, %v2765
          %v2796 = vsub.f32 %v2641, %v2757
          %v2797 = vsub.f32 %v2641, %v2761
          %v2798 = vsub.f32 %v2641, %v2765
          %v2799 = vsub.f32 %v2646, %v2757
          %v2800 = vsub.f32 %v2646, %v2761
          %v2801 = vsub.f32 %v2646, %v2765
          %v2802 = vsub.f32 %v2651, %v2757
          %v2803 = vsub.f32 %v2651, %v2761
          %v2804 = vsub.f32 %v2651, %v2765
          %v2805 = vsub.f32 %v2656, %v2757
          %v2806 = vsub.f32 %v2656, %v2761
          %v2807 = vsub.f32 %v2656, %v2765
          %v2808 = vsub.f32 %v2661, %v2757
          %v2809 = vsub.f32 %v2661, %v2761
          %v2810 = vsub.f32 %v2661, %v2765
          %v2811 = vsub.f32 %v2666, %v2757
          %v2812 = vsub.f32 %v2666, %v2761
          %v2813 = vsub.f32 %v2666, %v2765
          %v2814 = vsub.f32 %v2671, %v2757
          %v2815 = vsub.f32 %v2671, %v2761
          %v2816 = vsub.f32 %v2671, %v2765
          %v2817 = vsub.f32 %v2676, %v2757
          %v2818 = vsub.f32 %v2676, %v2761
          %v2819 = vsub.f32 %v2676, %v2765
          %v2820 = vsub.f32 %v2681, %v2757
          %v2821 = vsub.f32 %v2681, %v2761
          %v2822 = vsub.f32 %v2681, %v2765
          %v2823 = vsub.f32 %v2686, %v2757
          %v2824 = vsub.f32 %v2686, %v2761
          %v2825 = vsub.f32 %v2686, %v2765
          %v2826 = vsub.f32 %v2691, %v2757
          %v2827 = vsub.f32 %v2691, %v2761
          %v2828 = vsub.f32 %v2691, %v2765
          %v2829 = vsub.f32 %v2696, %v2757
          %v2830 = vsub.f32 %v2696, %v2761
          %v2831 = vsub.f32 %v2696, %v2765
          %v2832 = vsub.f32 %v2701, %v2757
          %v2833 = vsub.f32 %v2701, %v2761
          %v2834 = vsub.f32 %v2701, %v2765
          %v2835 = vsub.f32 %v2706, %v2757
          %v2836 = vsub.f32 %v2706, %v2761
          %v2837 = vsub.f32 %v2706, %v2765
          %v2838 = vsub.f32 %v2711, %v2757
          %v2839 = vsub.f32 %v2711, %v2761
          %v2840 = vsub.f32 %v2711, %v2765
          %v2841 = vsub.f32 %v2716, %v2757
          %v2842 = vsub.f32 %v2716, %v2761
          %v2843 = vsub.f32 %v2716, %v2765
          %v2844 = vsub.f32 %v2721, %v2757
          %v2845 = vsub.f32 %v2721, %v2761
          %v2846 = vsub.f32 %v2721, %v2765
          %v2847 = vsub.f32 %v2726, %v2757
          %v2848 = vsub.f32 %v2726, %v2761
          %v2849 = vsub.f32 %v2726, %v2765
          %v2850 = vsub.f32 %v2731, %v2757
          %v2851 = vsub.f32 %v2731, %v2761
          %v2852 = vsub.f32 %v2731, %v2765
          %v2853 = vsub.f32 %v2736, %v2757
          %v2854 = vsub.f32 %v2736, %v2761
          %v2855 = vsub.f32 %v2736, %v2765
          %v2856 = vsub.f32 %v2741, %v2757
          %v2857 = vsub.f32 %v2741, %v2761
          %v2858 = vsub.f32 %v2741, %v2765
          %v2859 = vsub.f32 %v2746, %v2757
          %v2860 = vsub.f32 %v2746, %v2761
          %v2861 = vsub.f32 %v2746, %v2765
          %v2862 = vsub.f32 %v2751, %v2757
          %v2863 = vsub.f32 %v2751, %v2761
          %v2864 = vsub.f32 %v2751, %v2765
          %2866 = vset.pattern.permute.xlu0 0
          %2867 = vperm.xlu0 %2866, %v287
          %v2868 = vpop.permute.xlu0 %2867
          %2871 = vset.pattern.permute.xlu0 0
          %2872 = vperm.xlu0 %2871, %v288
          %v2873 = vpop.permute.xlu0 %2872
          %2876 = vset.pattern.permute.xlu0 0
          %2877 = vperm.xlu0 %2876, %v289
          %v2878 = vpop.permute.xlu0 %2877
          %2881 = vset.pattern.permute.xlu0 0
          %2882 = vperm.xlu0 %2881, %v290
          %v2883 = vpop.permute.xlu0 %2882
          %2886 = vset.pattern.permute.xlu0 0
          %2887 = vperm.xlu0 %2886, %v291
          %v2888 = vpop.permute.xlu0 %2887
          %2891 = vset.pattern.permute.xlu0 0
          %2892 = vperm.xlu0 %2891, %v292
          %v2893 = vpop.permute.xlu0 %2892
          %2896 = vset.pattern.permute.xlu0 0
          %2897 = vperm.xlu0 %2896, %v293
          %v2898 = vpop.permute.xlu0 %2897
          %2901 = vset.pattern.permute.xlu0 0
          %2902 = vperm.xlu0 %2901, %v294
          %v2903 = vpop.permute.xlu0 %2902
          %2906 = vset.pattern.permute.xlu0 0
          %2907 = vperm.xlu0 %2906, %v295
          %v2908 = vpop.permute.xlu0 %2907
          %2911 = vset.pattern.permute.xlu0 0
          %2912 = vperm.xlu0 %2911, %v296
          %v2913 = vpop.permute.xlu0 %2912
          %2916 = vset.pattern.permute.xlu0 0
          %2917 = vperm.xlu0 %2916, %v297
          %v2918 = vpop.permute.xlu0 %2917
          %2921 = vset.pattern.permute.xlu0 0
          %2922 = vperm.xlu0 %2921, %v298
          %v2923 = vpop.permute.xlu0 %2922
          %2926 = vset.pattern.permute.xlu0 0
          %2927 = vperm.xlu0 %2926, %v299
          %v2928 = vpop.permute.xlu0 %2927
          %2931 = vset.pattern.permute.xlu0 0
          %2932 = vperm.xlu0 %2931, %v300
          %v2933 = vpop.permute.xlu0 %2932
          %2936 = vset.pattern.permute.xlu0 0
          %2937 = vperm.xlu0 %2936, %v301
          %v2938 = vpop.permute.xlu0 %2937
          %2941 = vset.pattern.permute.xlu0 0
          %2942 = vperm.xlu0 %2941, %v302
          %v2943 = vpop.permute.xlu0 %2942
          %2946 = vset.pattern.permute.xlu0 0
          %2947 = vperm.xlu0 %2946, %v303
          %v2948 = vpop.permute.xlu0 %2947
          %2951 = vset.pattern.permute.xlu0 0
          %2952 = vperm.xlu0 %2951, %v304
          %v2953 = vpop.permute.xlu0 %2952
          %2956 = vset.pattern.permute.xlu0 0
          %2957 = vperm.xlu0 %2956, %v305
          %v2958 = vpop.permute.xlu0 %2957
          %2961 = vset.pattern.permute.xlu0 0
          %2962 = vperm.xlu0 %2961, %v306
          %v2963 = vpop.permute.xlu0 %2962
          %2966 = vset.pattern.permute.xlu0 0
          %2967 = vperm.xlu0 %2966, %v307
          %v2968 = vpop.permute.xlu0 %2967
          %2971 = vset.pattern.permute.xlu0 0
          %2972 = vperm.xlu0 %2971, %v308
          %v2973 = vpop.permute.xlu0 %2972
          %2976 = vset.pattern.permute.xlu0 0
          %2977 = vperm.xlu0 %2976, %v309
          %v2978 = vpop.permute.xlu0 %2977
          %2981 = vset.pattern.permute.xlu0 0
          %2982 = vperm.xlu0 %2981, %v310
          %v2983 = vpop.permute.xlu0 %2982
          %2986 = vset.pattern.permute.xlu0 0
          %2987 = vperm.xlu0 %2986, %v311
          %v2988 = vpop.permute.xlu0 %2987
          %2991 = vset.pattern.permute.xlu0 0
          %2992 = vperm.xlu0 %2991, %v312
          %v2993 = vpop.permute.xlu0 %2992
          %2996 = vset.pattern.permute.xlu0 0
          %2997 = vperm.xlu0 %2996, %v313
          %v2998 = vpop.permute.xlu0 %2997
          %3001 = vset.pattern.permute.xlu0 0
          %3002 = vperm.xlu0 %3001, %v314
          %v3003 = vpop.permute.xlu0 %3002
          %3006 = vset.pattern.permute.xlu0 0
          %3007 = vperm.xlu0 %3006, %v315
          %v3008 = vpop.permute.xlu0 %3007
          %3011 = vset.pattern.permute.xlu0 0
          %3012 = vperm.xlu0 %3011, %v316
          %v3013 = vpop.permute.xlu0 %3012
          %3016 = vset.pattern.permute.xlu0 0
          %3017 = vperm.xlu0 %3016, %v317
          %v3018 = vpop.permute.xlu0 %3017
          %3021 = vset.pattern.permute.xlu0 0
          %3022 = vperm.xlu0 %3021, %v318
          %v3023 = vpop.permute.xlu0 %3022
          %v3026 = vlaneseq
          %v3027 = vshrl.u32 %v3026, 7
          %v3028 = vsub.s32 0, %v3027
          %v3029 = vrot.slane %v2592, %v3028
          %v3030 = vlaneseq
          %v3031 = vshrl.u32 %v3030, 7
          %v3032 = vsub.s32 1, %v3031
          %v3033 = vrot.slane %v2592, %v3032
          %v3034 = vlaneseq
          %v3035 = vshrl.u32 %v3034, 7
          %v3036 = vsub.s32 2, %v3035
          %v3037 = vrot.slane %v2592, %v3036
          %vm3041 = vcmp.gt.f32.partialorder %v2868, %v3029
          %vm3042 = vcmp.gt.f32.partialorder %v2868, %v3033
          %vm3043 = vcmp.gt.f32.partialorder %v2868, %v3037
          %vm3044 = vcmp.gt.f32.partialorder %v2873, %v3029
          %vm3045 = vcmp.gt.f32.partialorder %v2873, %v3033
          %vm3046 = vcmp.gt.f32.partialorder %v2873, %v3037
          %vm3047 = vcmp.gt.f32.partialorder %v2878, %v3029
          %vm3048 = vcmp.gt.f32.partialorder %v2878, %v3033
          %vm3049 = vcmp.gt.f32.partialorder %v2878, %v3037
          %vm3050 = vcmp.gt.f32.partialorder %v2883, %v3029
          %vm3051 = vcmp.gt.f32.partialorder %v2883, %v3033
          %vm3052 = vcmp.gt.f32.partialorder %v2883, %v3037
          %vm3053 = vcmp.gt.f32.partialorder %v2888, %v3029
          %vm3054 = vcmp.gt.f32.partialorder %v2888, %v3033
          %vm3055 = vcmp.gt.f32.partialorder %v2888, %v3037
          %vm3056 = vcmp.gt.f32.partialorder %v2893, %v3029
          %vm3057 = vcmp.gt.f32.partialorder %v2893, %v3033
          %vm3058 = vcmp.gt.f32.partialorder %v2893, %v3037
          %vm3059 = vcmp.gt.f32.partialorder %v2898, %v3029
          %vm3060 = vcmp.gt.f32.partialorder %v2898, %v3033
          %vm3061 = vcmp.gt.f32.partialorder %v2898, %v3037
          %vm3062 = vcmp.gt.f32.partialorder %v2903, %v3029
          %vm3063 = vcmp.gt.f32.partialorder %v2903, %v3033
          %vm3064 = vcmp.gt.f32.partialorder %v2903, %v3037
          %vm3065 = vcmp.gt.f32.partialorder %v2908, %v3029
          %vm3066 = vcmp.gt.f32.partialorder %v2908, %v3033
          %vm3067 = vcmp.gt.f32.partialorder %v2908, %v3037
          %vm3068 = vcmp.gt.f32.partialorder %v2913, %v3029
          %vm3069 = vcmp.gt.f32.partialorder %v2913, %v3033
          %vm3070 = vcmp.gt.f32.partialorder %v2913, %v3037
          %vm3071 = vcmp.gt.f32.partialorder %v2918, %v3029
          %vm3072 = vcmp.gt.f32.partialorder %v2918, %v3033
          %vm3073 = vcmp.gt.f32.partialorder %v2918, %v3037
          %vm3074 = vcmp.gt.f32.partialorder %v2923, %v3029
          %vm3075 = vcmp.gt.f32.partialorder %v2923, %v3033
          %vm3076 = vcmp.gt.f32.partialorder %v2923, %v3037
          %vm3077 = vcmp.gt.f32.partialorder %v2928, %v3029
          %vm3078 = vcmp.gt.f32.partialorder %v2928, %v3033
          %vm3079 = vcmp.gt.f32.partialorder %v2928, %v3037
          %vm3080 = vcmp.gt.f32.partialorder %v2933, %v3029
          %vm3081 = vcmp.gt.f32.partialorder %v2933, %v3033
          %vm3082 = vcmp.gt.f32.partialorder %v2933, %v3037
          %vm3083 = vcmp.gt.f32.partialorder %v2938, %v3029
          %vm3084 = vcmp.gt.f32.partialorder %v2938, %v3033
          %vm3085 = vcmp.gt.f32.partialorder %v2938, %v3037
          %vm3086 = vcmp.gt.f32.partialorder %v2943, %v3029
          %vm3087 = vcmp.gt.f32.partialorder %v2943, %v3033
          %vm3088 = vcmp.gt.f32.partialorder %v2943, %v3037
          %vm3089 = vcmp.gt.f32.partialorder %v2948, %v3029
          %vm3090 = vcmp.gt.f32.partialorder %v2948, %v3033
          %vm3091 = vcmp.gt.f32.partialorder %v2948, %v3037
          %vm3092 = vcmp.gt.f32.partialorder %v2953, %v3029
          %vm3093 = vcmp.gt.f32.partialorder %v2953, %v3033
          %vm3094 = vcmp.gt.f32.partialorder %v2953, %v3037
          %vm3095 = vcmp.gt.f32.partialorder %v2958, %v3029
          %vm3096 = vcmp.gt.f32.partialorder %v2958, %v3033
          %vm3097 = vcmp.gt.f32.partialorder %v2958, %v3037
          %vm3098 = vcmp.gt.f32.partialorder %v2963, %v3029
          %vm3099 = vcmp.gt.f32.partialorder %v2963, %v3033
          %vm3100 = vcmp.gt.f32.partialorder %v2963, %v3037
          %vm3101 = vcmp.gt.f32.partialorder %v2968, %v3029
          %vm3102 = vcmp.gt.f32.partialorder %v2968, %v3033
          %vm3103 = vcmp.gt.f32.partialorder %v2968, %v3037
          %vm3104 = vcmp.gt.f32.partialorder %v2973, %v3029
          %vm3105 = vcmp.gt.f32.partialorder %v2973, %v3033
          %vm3106 = vcmp.gt.f32.partialorder %v2973, %v3037
          %vm3107 = vcmp.gt.f32.partialorder %v2978, %v3029
          %vm3108 = vcmp.gt.f32.partialorder %v2978, %v3033
          %vm3109 = vcmp.gt.f32.partialorder %v2978, %v3037
          %vm3110 = vcmp.gt.f32.partialorder %v2983, %v3029
          %vm3111 = vcmp.gt.f32.partialorder %v2983, %v3033
          %vm3112 = vcmp.gt.f32.partialorder %v2983, %v3037
          %vm3113 = vcmp.gt.f32.partialorder %v2988, %v3029
          %vm3114 = vcmp.gt.f32.partialorder %v2988, %v3033
          %vm3115 = vcmp.gt.f32.partialorder %v2988, %v3037
          %vm3116 = vcmp.gt.f32.partialorder %v2993, %v3029
          %vm3117 = vcmp.gt.f32.partialorder %v2993, %v3033
          %vm3118 = vcmp.gt.f32.partialorder %v2993, %v3037
          %vm3119 = vcmp.gt.f32.partialorder %v2998, %v3029
          %vm3120 = vcmp.gt.f32.partialorder %v2998, %v3033
          %vm3121 = vcmp.gt.f32.partialorder %v2998, %v3037
          %vm3122 = vcmp.gt.f32.partialorder %v3003, %v3029
          %vm3123 = vcmp.gt.f32.partialorder %v3003, %v3033
          %vm3124 = vcmp.gt.f32.partialorder %v3003, %v3037
          %vm3125 = vcmp.gt.f32.partialorder %v3008, %v3029
          %vm3126 = vcmp.gt.f32.partialorder %v3008, %v3033
          %vm3127 = vcmp.gt.f32.partialorder %v3008, %v3037
          %vm3128 = vcmp.gt.f32.partialorder %v3013, %v3029
          %vm3129 = vcmp.gt.f32.partialorder %v3013, %v3033
          %vm3130 = vcmp.gt.f32.partialorder %v3013, %v3037
          %vm3131 = vcmp.gt.f32.partialorder %v3018, %v3029
          %vm3132 = vcmp.gt.f32.partialorder %v3018, %v3033
          %vm3133 = vcmp.gt.f32.partialorder %v3018, %v3037
          %vm3134 = vcmp.gt.f32.partialorder %v3023, %v3029
          %vm3135 = vcmp.gt.f32.partialorder %v3023, %v3033
          %vm3136 = vcmp.gt.f32.partialorder %v3023, %v3037
          %v3137 = vsel %vm3041, %v2769, 0.0
          %v3138 = vsel %vm3042, %v2770, 0.0
          %v3139 = vsel %vm3043, %v2771, 0.0
          %v3140 = vsel %vm3044, %v2772, 0.0
          %v3141 = vsel %vm3045, %v2773, 0.0
          %v3142 = vsel %vm3046, %v2774, 0.0
          %v3143 = vsel %vm3047, %v2775, 0.0
          %v3144 = vsel %vm3048, %v2776, 0.0
          %v3145 = vsel %vm3049, %v2777, 0.0
          %v3146 = vsel %vm3050, %v2778, 0.0
          %v3147 = vsel %vm3051, %v2779, 0.0
          %v3148 = vsel %vm3052, %v2780, 0.0
          %v3149 = vsel %vm3053, %v2781, 0.0
          %v3150 = vsel %vm3054, %v2782, 0.0
          %v3151 = vsel %vm3055, %v2783, 0.0
          %v3152 = vsel %vm3056, %v2784, 0.0
          %v3153 = vsel %vm3057, %v2785, 0.0
          %v3154 = vsel %vm3058, %v2786, 0.0
          %v3155 = vsel %vm3059, %v2787, 0.0
          %v3156 = vsel %vm3060, %v2788, 0.0
          %v3157 = vsel %vm3061, %v2789, 0.0
          %v3158 = vsel %vm3062, %v2790, 0.0
          %v3159 = vsel %vm3063, %v2791, 0.0
          %v3160 = vsel %vm3064, %v2792, 0.0
          %v3161 = vsel %vm3065, %v2793, 0.0
          %v3162 = vsel %vm3066, %v2794, 0.0
          %v3163 = vsel %vm3067, %v2795, 0.0
          %v3164 = vsel %vm3068, %v2796, 0.0
          %v3165 = vsel %vm3069, %v2797, 0.0
          %v3166 = vsel %vm3070, %v2798, 0.0
          %v3167 = vsel %vm3071, %v2799, 0.0
          %v3168 = vsel %vm3072, %v2800, 0.0
          %v3169 = vsel %vm3073, %v2801, 0.0
          %v3170 = vsel %vm3074, %v2802, 0.0
          %v3171 = vsel %vm3075, %v2803, 0.0
          %v3172 = vsel %vm3076, %v2804, 0.0
          %v3173 = vsel %vm3077, %v2805, 0.0
          %v3174 = vsel %vm3078, %v2806, 0.0
          %v3175 = vsel %vm3079, %v2807, 0.0
          %v3176 = vsel %vm3080, %v2808, 0.0
          %v3177 = vsel %vm3081, %v2809, 0.0
          %v3178 = vsel %vm3082, %v2810, 0.0
          %v3179 = vsel %vm3083, %v2811, 0.0
          %v3180 = vsel %vm3084, %v2812, 0.0
          %v3181 = vsel %vm3085, %v2813, 0.0
          %v3182 = vsel %vm3086, %v2814, 0.0
          %v3183 = vsel %vm3087, %v2815, 0.0
          %v3184 = vsel %vm3088, %v2816, 0.0
          %v3185 = vsel %vm3089, %v2817, 0.0
          %v3186 = vsel %vm3090, %v2818, 0.0
          %v3187 = vsel %vm3091, %v2819, 0.0
          %v3188 = vsel %vm3092, %v2820, 0.0
          %v3189 = vsel %vm3093, %v2821, 0.0
          %v3190 = vsel %vm3094, %v2822, 0.0
          %v3191 = vsel %vm3095, %v2823, 0.0
          %v3192 = vsel %vm3096, %v2824, 0.0
          %v3193 = vsel %vm3097, %v2825, 0.0
          %v3194 = vsel %vm3098, %v2826, 0.0
          %v3195 = vsel %vm3099, %v2827, 0.0
          %v3196 = vsel %vm3100, %v2828, 0.0
          %v3197 = vsel %vm3101, %v2829, 0.0
          %v3198 = vsel %vm3102, %v2830, 0.0
          %v3199 = vsel %vm3103, %v2831, 0.0
          %v3200 = vsel %vm3104, %v2832, 0.0
          %v3201 = vsel %vm3105, %v2833, 0.0
          %v3202 = vsel %vm3106, %v2834, 0.0
          %v3203 = vsel %vm3107, %v2835, 0.0
          %v3204 = vsel %vm3108, %v2836, 0.0
          %v3205 = vsel %vm3109, %v2837, 0.0
          %v3206 = vsel %vm3110, %v2838, 0.0
          %v3207 = vsel %vm3111, %v2839, 0.0
          %v3208 = vsel %vm3112, %v2840, 0.0
          %v3209 = vsel %vm3113, %v2841, 0.0
          %v3210 = vsel %vm3114, %v2842, 0.0
          %v3211 = vsel %vm3115, %v2843, 0.0
          %v3212 = vsel %vm3116, %v2844, 0.0
          %v3213 = vsel %vm3117, %v2845, 0.0
          %v3214 = vsel %vm3118, %v2846, 0.0
          %v3215 = vsel %vm3119, %v2847, 0.0
          %v3216 = vsel %vm3120, %v2848, 0.0
          %v3217 = vsel %vm3121, %v2849, 0.0
          %v3218 = vsel %vm3122, %v2850, 0.0
          %v3219 = vsel %vm3123, %v2851, 0.0
          %v3220 = vsel %vm3124, %v2852, 0.0
          %v3221 = vsel %vm3125, %v2853, 0.0
          %v3222 = vsel %vm3126, %v2854, 0.0
          %v3223 = vsel %vm3127, %v2855, 0.0
          %v3224 = vsel %vm3128, %v2856, 0.0
          %v3225 = vsel %vm3129, %v2857, 0.0
          %v3226 = vsel %vm3130, %v2858, 0.0
          %v3227 = vsel %vm3131, %v2859, 0.0
          %v3228 = vsel %vm3132, %v2860, 0.0
          %v3229 = vsel %vm3133, %v2861, 0.0
          %v3230 = vsel %vm3134, %v2862, 0.0
          %v3231 = vsel %vm3135, %v2863, 0.0
          %v3232 = vsel %vm3136, %v2864, 0.0
          %v3233 = vmax.f32 %v2769, 0.0
          %v3234 = vmax.f32 %v2770, 0.0
          %v3235 = vmax.f32 %v2771, 0.0
          %v3236 = vmax.f32 %v2772, 0.0
          %v3237 = vmax.f32 %v2773, 0.0
          %v3238 = vmax.f32 %v2774, 0.0
          %v3239 = vmax.f32 %v2775, 0.0
          %v3240 = vmax.f32 %v2776, 0.0
          %v3241 = vmax.f32 %v2777, 0.0
          %v3242 = vmax.f32 %v2778, 0.0
          %v3243 = vmax.f32 %v2779, 0.0
          %v3244 = vmax.f32 %v2780, 0.0
          %v3245 = vmax.f32 %v2781, 0.0
          %v3246 = vmax.f32 %v2782, 0.0
          %v3247 = vmax.f32 %v2783, 0.0
          %v3248 = vmax.f32 %v2784, 0.0
          %v3249 = vmax.f32 %v2785, 0.0
          %v3250 = vmax.f32 %v2786, 0.0
          %v3251 = vmax.f32 %v2787, 0.0
          %v3252 = vmax.f32 %v2788, 0.0
          %v3253 = vmax.f32 %v2789, 0.0
          %v3254 = vmax.f32 %v2790, 0.0
          %v3255 = vmax.f32 %v2791, 0.0
          %v3256 = vmax.f32 %v2792, 0.0
          %v3257 = vmax.f32 %v2793, 0.0
          %v3258 = vmax.f32 %v2794, 0.0
          %v3259 = vmax.f32 %v2795, 0.0
          %v3260 = vmax.f32 %v2796, 0.0
          %v3261 = vmax.f32 %v2797, 0.0
          %v3262 = vmax.f32 %v2798, 0.0
          %v3263 = vmax.f32 %v2799, 0.0
          %v3264 = vmax.f32 %v2800, 0.0
          %v3265 = vmax.f32 %v2801, 0.0
          %v3266 = vmax.f32 %v2802, 0.0
          %v3267 = vmax.f32 %v2803, 0.0
          %v3268 = vmax.f32 %v2804, 0.0
          %v3269 = vmax.f32 %v2805, 0.0
          %v3270 = vmax.f32 %v2806, 0.0
          %v3271 = vmax.f32 %v2807, 0.0
          %v3272 = vmax.f32 %v2808, 0.0
          %v3273 = vmax.f32 %v2809, 0.0
          %v3274 = vmax.f32 %v2810, 0.0
          %v3275 = vmax.f32 %v2811, 0.0
          %v3276 = vmax.f32 %v2812, 0.0
          %v3277 = vmax.f32 %v2813, 0.0
          %v3278 = vmax.f32 %v2814, 0.0
          %v3279 = vmax.f32 %v2815, 0.0
          %v3280 = vmax.f32 %v2816, 0.0
          %v3281 = vmax.f32 %v2817, 0.0
          %v3282 = vmax.f32 %v2818, 0.0
          %v3283 = vmax.f32 %v2819, 0.0
          %v3284 = vmax.f32 %v2820, 0.0
          %v3285 = vmax.f32 %v2821, 0.0
          %v3286 = vmax.f32 %v2822, 0.0
          %v3287 = vmax.f32 %v2823, 0.0
          %v3288 = vmax.f32 %v2824, 0.0
          %v3289 = vmax.f32 %v2825, 0.0
          %v3290 = vmax.f32 %v2826, 0.0
          %v3291 = vmax.f32 %v2827, 0.0
          %v3292 = vmax.f32 %v2828, 0.0
          %v3293 = vmax.f32 %v2829, 0.0
          %v3294 = vmax.f32 %v2830, 0.0
          %v3295 = vmax.f32 %v2831, 0.0
          %v3296 = vmax.f32 %v2832, 0.0
          %v3297 = vmax.f32 %v2833, 0.0
          %v3298 = vmax.f32 %v2834, 0.0
          %v3299 = vmax.f32 %v2835, 0.0
          %v3300 = vmax.f32 %v2836, 0.0
          %v3301 = vmax.f32 %v2837, 0.0
          %v3302 = vmax.f32 %v2838, 0.0
          %v3303 = vmax.f32 %v2839, 0.0
          %v3304 = vmax.f32 %v2840, 0.0
          %v3305 = vmax.f32 %v2841, 0.0
          %v3306 = vmax.f32 %v2842, 0.0
          %v3307 = vmax.f32 %v2843, 0.0
          %v3308 = vmax.f32 %v2844, 0.0
          %v3309 = vmax.f32 %v2845, 0.0
          %v3310 = vmax.f32 %v2846, 0.0
          %v3311 = vmax.f32 %v2847, 0.0
          %v3312 = vmax.f32 %v2848, 0.0
          %v3313 = vmax.f32 %v2849, 0.0
          %v3314 = vmax.f32 %v2850, 0.0
          %v3315 = vmax.f32 %v2851, 0.0
          %v3316 = vmax.f32 %v2852, 0.0
          %v3317 = vmax.f32 %v2853, 0.0
          %v3318 = vmax.f32 %v2854, 0.0
          %v3319 = vmax.f32 %v2855, 0.0
          %v3320 = vmax.f32 %v2856, 0.0
          %v3321 = vmax.f32 %v2857, 0.0
          %v3322 = vmax.f32 %v2858, 0.0
          %v3323 = vmax.f32 %v2859, 0.0
          %v3324 = vmax.f32 %v2860, 0.0
          %v3325 = vmax.f32 %v2861, 0.0
          %v3326 = vmax.f32 %v2862, 0.0
          %v3327 = vmax.f32 %v2863, 0.0
          %v3328 = vmax.f32 %v2864, 0.0
          %v3329 = vsub.f32 %v3233, %v3137
          %v3330 = vsub.f32 %v3234, %v3138
          %v3331 = vsub.f32 %v3235, %v3139
          %v3332 = vsub.f32 %v3236, %v3140
          %v3333 = vsub.f32 %v3237, %v3141
          %v3334 = vsub.f32 %v3238, %v3142
          %v3335 = vsub.f32 %v3239, %v3143
          %v3336 = vsub.f32 %v3240, %v3144
          %v3337 = vsub.f32 %v3241, %v3145
          %v3338 = vsub.f32 %v3242, %v3146
          %v3339 = vsub.f32 %v3243, %v3147
          %v3340 = vsub.f32 %v3244, %v3148
          %v3341 = vsub.f32 %v3245, %v3149
          %v3342 = vsub.f32 %v3246, %v3150
          %v3343 = vsub.f32 %v3247, %v3151
          %v3344 = vsub.f32 %v3248, %v3152
          %v3345 = vsub.f32 %v3249, %v3153
          %v3346 = vsub.f32 %v3250, %v3154
          %v3347 = vsub.f32 %v3251, %v3155
          %v3348 = vsub.f32 %v3252, %v3156
          %v3349 = vsub.f32 %v3253, %v3157
          %v3350 = vsub.f32 %v3254, %v3158
          %v3351 = vsub.f32 %v3255, %v3159
          %v3352 = vsub.f32 %v3256, %v3160
          %v3353 = vsub.f32 %v3257, %v3161
          %v3354 = vsub.f32 %v3258, %v3162
          %v3355 = vsub.f32 %v3259, %v3163
          %v3356 = vsub.f32 %v3260, %v3164
          %v3357 = vsub.f32 %v3261, %v3165
          %v3358 = vsub.f32 %v3262, %v3166
          %v3359 = vsub.f32 %v3263, %v3167
          %v3360 = vsub.f32 %v3264, %v3168
          %v3361 = vsub.f32 %v3265, %v3169
          %v3362 = vsub.f32 %v3266, %v3170
          %v3363 = vsub.f32 %v3267, %v3171
          %v3364 = vsub.f32 %v3268, %v3172
          %v3365 = vsub.f32 %v3269, %v3173
          %v3366 = vsub.f32 %v3270, %v3174
          %v3367 = vsub.f32 %v3271, %v3175
          %v3368 = vsub.f32 %v3272, %v3176
          %v3369 = vsub.f32 %v3273, %v3177
          %v3370 = vsub.f32 %v3274, %v3178
          %v3371 = vsub.f32 %v3275, %v3179
          %v3372 = vsub.f32 %v3276, %v3180
          %v3373 = vsub.f32 %v3277, %v3181
          %v3374 = vsub.f32 %v3278, %v3182
          %v3375 = vsub.f32 %v3279, %v3183
          %v3376 = vsub.f32 %v3280, %v3184
          %v3377 = vsub.f32 %v3281, %v3185
          %v3378 = vsub.f32 %v3282, %v3186
          %v3379 = vsub.f32 %v3283, %v3187
          %v3380 = vsub.f32 %v3284, %v3188
          %v3381 = vsub.f32 %v3285, %v3189
          %v3382 = vsub.f32 %v3286, %v3190
          %v3383 = vsub.f32 %v3287, %v3191
          %v3384 = vsub.f32 %v3288, %v3192
          %v3385 = vsub.f32 %v3289, %v3193
          %v3386 = vsub.f32 %v3290, %v3194
          %v3387 = vsub.f32 %v3291, %v3195
          %v3388 = vsub.f32 %v3292, %v3196
          %v3389 = vsub.f32 %v3293, %v3197
          %v3390 = vsub.f32 %v3294, %v3198
          %v3391 = vsub.f32 %v3295, %v3199
          %v3392 = vsub.f32 %v3296, %v3200
          %v3393 = vsub.f32 %v3297, %v3201
          %v3394 = vsub.f32 %v3298, %v3202
          %v3395 = vsub.f32 %v3299, %v3203
          %v3396 = vsub.f32 %v3300, %v3204
          %v3397 = vsub.f32 %v3301, %v3205
          %v3398 = vsub.f32 %v3302, %v3206
          %v3399 = vsub.f32 %v3303, %v3207
          %v3400 = vsub.f32 %v3304, %v3208
          %v3401 = vsub.f32 %v3305, %v3209
          %v3402 = vsub.f32 %v3306, %v3210
          %v3403 = vsub.f32 %v3307, %v3211
          %v3404 = vsub.f32 %v3308, %v3212
          %v3405 = vsub.f32 %v3309, %v3213
          %v3406 = vsub.f32 %v3310, %v3214
          %v3407 = vsub.f32 %v3311, %v3215
          %v3408 = vsub.f32 %v3312, %v3216
          %v3409 = vsub.f32 %v3313, %v3217
          %v3410 = vsub.f32 %v3314, %v3218
          %v3411 = vsub.f32 %v3315, %v3219
          %v3412 = vsub.f32 %v3316, %v3220
          %v3413 = vsub.f32 %v3317, %v3221
          %v3414 = vsub.f32 %v3318, %v3222
          %v3415 = vsub.f32 %v3319, %v3223
          %v3416 = vsub.f32 %v3320, %v3224
          %v3417 = vsub.f32 %v3321, %v3225
          %v3418 = vsub.f32 %v3322, %v3226
          %v3419 = vsub.f32 %v3323, %v3227
          %v3420 = vsub.f32 %v3324, %v3228
          %v3421 = vsub.f32 %v3325, %v3229
          %v3422 = vsub.f32 %v3326, %v3230
          %v3423 = vsub.f32 %v3327, %v3231
          %v3424 = vsub.f32 %v3328, %v3232
          %v3425 = vand.u32 2147483647, %v2769
          %v3426 = vand.u32 2147483647, %v2770
          %v3427 = vand.u32 2147483647, %v2771
          %v3428 = vand.u32 2147483647, %v2772
          %v3429 = vand.u32 2147483647, %v2773
          %v3430 = vand.u32 2147483647, %v2774
          %v3431 = vand.u32 2147483647, %v2775
          %v3432 = vand.u32 2147483647, %v2776
          %v3433 = vand.u32 2147483647, %v2777
          %v3434 = vand.u32 2147483647, %v2778
          %v3435 = vand.u32 2147483647, %v2779
          %v3436 = vand.u32 2147483647, %v2780
          %v3437 = vand.u32 2147483647, %v2781
          %v3438 = vand.u32 2147483647, %v2782
          %v3439 = vand.u32 2147483647, %v2783
          %v3440 = vand.u32 2147483647, %v2784
          %v3441 = vand.u32 2147483647, %v2785
          %v3442 = vand.u32 2147483647, %v2786
          %v3443 = vand.u32 2147483647, %v2787
          %v3444 = vand.u32 2147483647, %v2788
          %v3445 = vand.u32 2147483647, %v2789
          %v3446 = vand.u32 2147483647, %v2790
          %v3447 = vand.u32 2147483647, %v2791
          %v3448 = vand.u32 2147483647, %v2792
          %v3449 = vand.u32 2147483647, %v2793
          %v3450 = vand.u32 2147483647, %v2794
          %v3451 = vand.u32 2147483647, %v2795
          %v3452 = vand.u32 2147483647, %v2796
          %v3453 = vand.u32 2147483647, %v2797
          %v3454 = vand.u32 2147483647, %v2798
          %v3455 = vand.u32 2147483647, %v2799
          %v3456 = vand.u32 2147483647, %v2800
          %v3457 = vand.u32 2147483647, %v2801
          %v3458 = vand.u32 2147483647, %v2802
          %v3459 = vand.u32 2147483647, %v2803
          %v3460 = vand.u32 2147483647, %v2804
          %v3461 = vand.u32 2147483647, %v2805
          %v3462 = vand.u32 2147483647, %v2806
          %v3463 = vand.u32 2147483647, %v2807
          %v3464 = vand.u32 2147483647, %v2808
          %v3465 = vand.u32 2147483647, %v2809
          %v3466 = vand.u32 2147483647, %v2810
          %v3467 = vand.u32 2147483647, %v2811
          %v3468 = vand.u32 2147483647, %v2812
          %v3469 = vand.u32 2147483647, %v2813
          %v3470 = vand.u32 2147483647, %v2814
          %v3471 = vand.u32 2147483647, %v2815
          %v3472 = vand.u32 2147483647, %v2816
          %v3473 = vand.u32 2147483647, %v2817
          %v3474 = vand.u32 2147483647, %v2818
          %v3475 = vand.u32 2147483647, %v2819
          %v3476 = vand.u32 2147483647, %v2820
          %v3477 = vand.u32 2147483647, %v2821
          %v3478 = vand.u32 2147483647, %v2822
          %v3479 = vand.u32 2147483647, %v2823
          %v3480 = vand.u32 2147483647, %v2824
          %v3481 = vand.u32 2147483647, %v2825
          %v3482 = vand.u32 2147483647, %v2826
          %v3483 = vand.u32 2147483647, %v2827
          %v3484 = vand.u32 2147483647, %v2828
          %v3485 = vand.u32 2147483647, %v2829
          %v3486 = vand.u32 2147483647, %v2830
          %v3487 = vand.u32 2147483647, %v2831
          %v3488 = vand.u32 2147483647, %v2832
          %v3489 = vand.u32 2147483647, %v2833
          %v3490 = vand.u32 2147483647, %v2834
          %v3491 = vand.u32 2147483647, %v2835
          %v3492 = vand.u32 2147483647, %v2836
          %v3493 = vand.u32 2147483647, %v2837
          %v3494 = vand.u32 2147483647, %v2838
          %v3495 = vand.u32 2147483647, %v2839
          %v3496 = vand.u32 2147483647, %v2840
          %v3497 = vand.u32 2147483647, %v2841
          %v3498 = vand.u32 2147483647, %v2842
          %v3499 = vand.u32 2147483647, %v2843
          %v3500 = vand.u32 2147483647, %v2844
          %v3501 = vand.u32 2147483647, %v2845
          %v3502 = vand.u32 2147483647, %v2846
          %v3503 = vand.u32 2147483647, %v2847
          %v3504 = vand.u32 2147483647, %v2848
          %v3505 = vand.u32 2147483647, %v2849
          %v3506 = vand.u32 2147483647, %v2850
          %v3507 = vand.u32 2147483647, %v2851
          %v3508 = vand.u32 2147483647, %v2852
          %v3509 = vand.u32 2147483647, %v2853
          %v3510 = vand.u32 2147483647, %v2854
          %v3511 = vand.u32 2147483647, %v2855
          %v3512 = vand.u32 2147483647, %v2856
          %v3513 = vand.u32 2147483647, %v2857
          %v3514 = vand.u32 2147483647, %v2858
          %v3515 = vand.u32 2147483647, %v2859
          %v3516 = vand.u32 2147483647, %v2860
          %v3517 = vand.u32 2147483647, %v2861
          %v3518 = vand.u32 2147483647, %v2862
          %v3519 = vand.u32 2147483647, %v2863
          %v3520 = vand.u32 2147483647, %v2864
          %v3521 = vsub.f32 0.0, %v3425
          %v3522 = vsub.f32 0.0, %v3426
          %v3523 = vsub.f32 0.0, %v3427
          %v3524 = vsub.f32 0.0, %v3428
          %v3525 = vsub.f32 0.0, %v3429
          %v3526 = vsub.f32 0.0, %v3430
          %v3527 = vsub.f32 0.0, %v3431
          %v3528 = vsub.f32 0.0, %v3432
          %v3529 = vsub.f32 0.0, %v3433
          %v3530 = vsub.f32 0.0, %v3434
          %v3531 = vsub.f32 0.0, %v3435
          %v3532 = vsub.f32 0.0, %v3436
          %v3533 = vsub.f32 0.0, %v3437
          %v3534 = vsub.f32 0.0, %v3438
          %v3535 = vsub.f32 0.0, %v3439
          %v3536 = vsub.f32 0.0, %v3440
          %v3537 = vsub.f32 0.0, %v3441
          %v3538 = vsub.f32 0.0, %v3442
          %v3539 = vsub.f32 0.0, %v3443
          %v3540 = vsub.f32 0.0, %v3444
          %v3541 = vsub.f32 0.0, %v3445
          %v3542 = vsub.f32 0.0, %v3446
          %v3543 = vsub.f32 0.0, %v3447
          %v3544 = vsub.f32 0.0, %v3448
          %v3545 = vsub.f32 0.0, %v3449
          %v3546 = vsub.f32 0.0, %v3450
          %v3547 = vsub.f32 0.0, %v3451
          %v3548 = vsub.f32 0.0, %v3452
          %v3549 = vsub.f32 0.0, %v3453
          %v3550 = vsub.f32 0.0, %v3454
          %v3551 = vsub.f32 0.0, %v3455
          %v3552 = vsub.f32 0.0, %v3456
          %v3553 = vsub.f32 0.0, %v3457
          %v3554 = vsub.f32 0.0, %v3458
          %v3555 = vsub.f32 0.0, %v3459
          %v3556 = vsub.f32 0.0, %v3460
          %v3557 = vsub.f32 0.0, %v3461
          %v3558 = vsub.f32 0.0, %v3462
          %v3559 = vsub.f32 0.0, %v3463
          %v3560 = vsub.f32 0.0, %v3464
          %v3561 = vsub.f32 0.0, %v3465
          %v3562 = vsub.f32 0.0, %v3466
          %v3563 = vsub.f32 0.0, %v3467
          %v3564 = vsub.f32 0.0, %v3468
          %v3565 = vsub.f32 0.0, %v3469
          %v3566 = vsub.f32 0.0, %v3470
          %v3567 = vsub.f32 0.0, %v3471
          %v3568 = vsub.f32 0.0, %v3472
          %v3569 = vsub.f32 0.0, %v3473
          %v3570 = vsub.f32 0.0, %v3474
          %v3571 = vsub.f32 0.0, %v3475
          %v3572 = vsub.f32 0.0, %v3476
          %v3573 = vsub.f32 0.0, %v3477
          %v3574 = vsub.f32 0.0, %v3478
          %v3575 = vsub.f32 0.0, %v3479
          %v3576 = vsub.f32 0.0, %v3480
          %v3577 = vsub.f32 0.0, %v3481
          %v3578 = vsub.f32 0.0, %v3482
          %v3579 = vsub.f32 0.0, %v3483
          %v3580 = vsub.f32 0.0, %v3484
          %v3581 = vsub.f32 0.0, %v3485
          %v3582 = vsub.f32 0.0, %v3486
          %v3583 = vsub.f32 0.0, %v3487
          %v3584 = vsub.f32 0.0, %v3488
          %v3585 = vsub.f32 0.0, %v3489
          %v3586 = vsub.f32 0.0, %v3490
          %v3587 = vsub.f32 0.0, %v3491
          %v3588 = vsub.f32 0.0, %v3492
          %v3589 = vsub.f32 0.0, %v3493
          %v3590 = vsub.f32 0.0, %v3494
          %v3591 = vsub.f32 0.0, %v3495
          %v3592 = vsub.f32 0.0, %v3496
          %v3593 = vsub.f32 0.0, %v3497
          %v3594 = vsub.f32 0.0, %v3498
          %v3595 = vsub.f32 0.0, %v3499
          %v3596 = vsub.f32 0.0, %v3500
          %v3597 = vsub.f32 0.0, %v3501
          %v3598 = vsub.f32 0.0, %v3502
          %v3599 = vsub.f32 0.0, %v3503
          %v3600 = vsub.f32 0.0, %v3504
          %v3601 = vsub.f32 0.0, %v3505
          %v3602 = vsub.f32 0.0, %v3506
          %v3603 = vsub.f32 0.0, %v3507
          %v3604 = vsub.f32 0.0, %v3508
          %v3605 = vsub.f32 0.0, %v3509
          %v3606 = vsub.f32 0.0, %v3510
          %v3607 = vsub.f32 0.0, %v3511
          %v3608 = vsub.f32 0.0, %v3512
          %v3609 = vsub.f32 0.0, %v3513
          %v3610 = vsub.f32 0.0, %v3514
          %v3611 = vsub.f32 0.0, %v3515
          %v3612 = vsub.f32 0.0, %v3516
          %v3613 = vsub.f32 0.0, %v3517
          %v3614 = vsub.f32 0.0, %v3518
          %v3615 = vsub.f32 0.0, %v3519
          %v3616 = vsub.f32 0.0, %v3520
          %v3617 = vmul.f32 %v3521, 1.442695
          %v3618 = vpow.pop %v3617
          %v3619 = vmul.f32 %v3522, 1.442695
          %v3620 = vpow.pop %v3619
          %v3621 = vmul.f32 %v3523, 1.442695
          %v3622 = vpow.pop %v3621
          %v3623 = vmul.f32 %v3524, 1.442695
          %v3624 = vpow.pop %v3623
          %v3625 = vmul.f32 %v3525, 1.442695
          %v3626 = vpow.pop %v3625
          %v3627 = vmul.f32 %v3526, 1.442695
          %v3628 = vpow.pop %v3627
          %v3629 = vmul.f32 %v3527, 1.442695
          %v3630 = vpow.pop %v3629
          %v3631 = vmul.f32 %v3528, 1.442695
          %v3632 = vpow.pop %v3631
          %v3633 = vmul.f32 %v3529, 1.442695
          %v3634 = vpow.pop %v3633
          %v3635 = vmul.f32 %v3530, 1.442695
          %v3636 = vpow.pop %v3635
          %v3637 = vmul.f32 %v3531, 1.442695
          %v3638 = vpow.pop %v3637
          %v3639 = vmul.f32 %v3532, 1.442695
          %v3640 = vpow.pop %v3639
          %v3641 = vmul.f32 %v3533, 1.442695
          %v3642 = vpow.pop %v3641
          %v3643 = vmul.f32 %v3534, 1.442695
          %v3644 = vpow.pop %v3643
          %v3645 = vmul.f32 %v3535, 1.442695
          %v3646 = vpow.pop %v3645
          %v3647 = vmul.f32 %v3536, 1.442695
          %v3648 = vpow.pop %v3647
          %v3649 = vmul.f32 %v3537, 1.442695
          %v3650 = vpow.pop %v3649
          %v3651 = vmul.f32 %v3538, 1.442695
          %v3652 = vpow.pop %v3651
          %v3653 = vmul.f32 %v3539, 1.442695
          %v3654 = vpow.pop %v3653
          %v3655 = vmul.f32 %v3540, 1.442695
          %v3656 = vpow.pop %v3655
          %v3657 = vmul.f32 %v3541, 1.442695
          %v3658 = vpow.pop %v3657
          %v3659 = vmul.f32 %v3542, 1.442695
          %v3660 = vpow.pop %v3659
          %v3661 = vmul.f32 %v3543, 1.442695
          %v3662 = vpow.pop %v3661
          %v3663 = vmul.f32 %v3544, 1.442695
          %v3664 = vpow.pop %v3663
          %v3665 = vmul.f32 %v3545, 1.442695
          %v3666 = vpow.pop %v3665
          %v3667 = vmul.f32 %v3546, 1.442695
          %v3668 = vpow.pop %v3667
          %v3669 = vmul.f32 %v3547, 1.442695
          %v3670 = vpow.pop %v3669
          %v3671 = vmul.f32 %v3548, 1.442695
          %v3672 = vpow.pop %v3671
          %v3673 = vmul.f32 %v3549, 1.442695
          %v3674 = vpow.pop %v3673
          %v3675 = vmul.f32 %v3550, 1.442695
          %v3676 = vpow.pop %v3675
          %v3677 = vmul.f32 %v3551, 1.442695
          %v3678 = vpow.pop %v3677
          %v3679 = vmul.f32 %v3552, 1.442695
          %v3680 = vpow.pop %v3679
          %v3681 = vmul.f32 %v3553, 1.442695
          %v3682 = vpow.pop %v3681
          %v3683 = vmul.f32 %v3554, 1.442695
          %v3684 = vpow.pop %v3683
          %v3685 = vmul.f32 %v3555, 1.442695
          %v3686 = vpow.pop %v3685
          %v3687 = vmul.f32 %v3556, 1.442695
          %v3688 = vpow.pop %v3687
          %v3689 = vmul.f32 %v3557, 1.442695
          %v3690 = vpow.pop %v3689
          %v3691 = vmul.f32 %v3558, 1.442695
          %v3692 = vpow.pop %v3691
          %v3693 = vmul.f32 %v3559, 1.442695
          %v3694 = vpow.pop %v3693
          %v3695 = vmul.f32 %v3560, 1.442695
          %v3696 = vpow.pop %v3695
          %v3697 = vmul.f32 %v3561, 1.442695
          %v3698 = vpow.pop %v3697
          %v3699 = vmul.f32 %v3562, 1.442695
          %v3700 = vpow.pop %v3699
          %v3701 = vmul.f32 %v3563, 1.442695
          %v3702 = vpow.pop %v3701
          %v3703 = vmul.f32 %v3564, 1.442695
          %v3704 = vpow.pop %v3703
          %v3705 = vmul.f32 %v3565, 1.442695
          %v3706 = vpow.pop %v3705
          %v3707 = vmul.f32 %v3566, 1.442695
          %v3708 = vpow.pop %v3707
          %v3709 = vmul.f32 %v3567, 1.442695
          %v3710 = vpow.pop %v3709
          %v3711 = vmul.f32 %v3568, 1.442695
          %v3712 = vpow.pop %v3711
          %v3713 = vmul.f32 %v3569, 1.442695
          %v3714 = vpow.pop %v3713
          %v3715 = vmul.f32 %v3570, 1.442695
          %v3716 = vpow.pop %v3715
          %v3717 = vmul.f32 %v3571, 1.442695
          %v3718 = vpow.pop %v3717
          %v3719 = vmul.f32 %v3572, 1.442695
          %v3720 = vpow.pop %v3719
          %v3721 = vmul.f32 %v3573, 1.442695
          %v3722 = vpow.pop %v3721
          %v3723 = vmul.f32 %v3574, 1.442695
          %v3724 = vpow.pop %v3723
          %v3725 = vmul.f32 %v3575, 1.442695
          %v3726 = vpow.pop %v3725
          %v3727 = vmul.f32 %v3576, 1.442695
          %v3728 = vpow.pop %v3727
          %v3729 = vmul.f32 %v3577, 1.442695
          %v3730 = vpow.pop %v3729
          %v3731 = vmul.f32 %v3578, 1.442695
          %v3732 = vpow.pop %v3731
          %v3733 = vmul.f32 %v3579, 1.442695
          %v3734 = vpow.pop %v3733
          %v3735 = vmul.f32 %v3580, 1.442695
          %v3736 = vpow.pop %v3735
          %v3737 = vmul.f32 %v3581, 1.442695
          %v3738 = vpow.pop %v3737
          %v3739 = vmul.f32 %v3582, 1.442695
          %v3740 = vpow.pop %v3739
          %v3741 = vmul.f32 %v3583, 1.442695
          %v3742 = vpow.pop %v3741
          %v3743 = vmul.f32 %v3584, 1.442695
          %v3744 = vpow.pop %v3743
          %v3745 = vmul.f32 %v3585, 1.442695
          %v3746 = vpow.pop %v3745
          %v3747 = vmul.f32 %v3586, 1.442695
          %v3748 = vpow.pop %v3747
          %v3749 = vmul.f32 %v3587, 1.442695
          %v3750 = vpow.pop %v3749
          %v3751 = vmul.f32 %v3588, 1.442695
          %v3752 = vpow.pop %v3751
          %v3753 = vmul.f32 %v3589, 1.442695
          %v3754 = vpow.pop %v3753
          %v3755 = vmul.f32 %v3590, 1.442695
          %v3756 = vpow.pop %v3755
          %v3757 = vmul.f32 %v3591, 1.442695
          %v3758 = vpow.pop %v3757
          %v3759 = vmul.f32 %v3592, 1.442695
          %v3760 = vpow.pop %v3759
          %v3761 = vmul.f32 %v3593, 1.442695
          %v3762 = vpow.pop %v3761
          %v3763 = vmul.f32 %v3594, 1.442695
          %v3764 = vpow.pop %v3763
          %v3765 = vmul.f32 %v3595, 1.442695
          %v3766 = vpow.pop %v3765
          %v3767 = vmul.f32 %v3596, 1.442695
          %v3768 = vpow.pop %v3767
          %v3769 = vmul.f32 %v3597, 1.442695
          %v3770 = vpow.pop %v3769
          %v3771 = vmul.f32 %v3598, 1.442695
          %v3772 = vpow.pop %v3771
          %v3773 = vmul.f32 %v3599, 1.442695
          %v3774 = vpow.pop %v3773
          %v3775 = vmul.f32 %v3600, 1.442695
          %v3776 = vpow.pop %v3775
          %v3777 = vmul.f32 %v3601, 1.442695
          %v3778 = vpow.pop %v3777
          %v3779 = vmul.f32 %v3602, 1.442695
          %v3780 = vpow.pop %v3779
          %v3781 = vmul.f32 %v3603, 1.442695
          %v3782 = vpow.pop %v3781
          %v3783 = vmul.f32 %v3604, 1.442695
          %v3784 = vpow.pop %v3783
          %v3785 = vmul.f32 %v3605, 1.442695
          %v3786 = vpow.pop %v3785
          %v3787 = vmul.f32 %v3606, 1.442695
          %v3788 = vpow.pop %v3787
          %v3789 = vmul.f32 %v3607, 1.442695
          %v3790 = vpow.pop %v3789
          %v3791 = vmul.f32 %v3608, 1.442695
          %v3792 = vpow.pop %v3791
          %v3793 = vmul.f32 %v3609, 1.442695
          %v3794 = vpow.pop %v3793
          %v3795 = vmul.f32 %v3610, 1.442695
          %v3796 = vpow.pop %v3795
          %v3797 = vmul.f32 %v3611, 1.442695
          %v3798 = vpow.pop %v3797
          %v3799 = vmul.f32 %v3612, 1.442695
          %v3800 = vpow.pop %v3799
          %v3801 = vmul.f32 %v3613, 1.442695
          %v3802 = vpow.pop %v3801
          %v3803 = vmul.f32 %v3614, 1.442695
          %v3804 = vpow.pop %v3803
          %v3805 = vmul.f32 %v3615, 1.442695
          %v3806 = vpow.pop %v3805
          %v3807 = vmul.f32 %v3616, 1.442695
          %v3808 = vpow.pop %v3807
          %v3809 = vadd.f32 %v3618, 1.0
          %v3810 = vadd.f32 %v3620, 1.0
          %v3811 = vadd.f32 %v3622, 1.0
          %v3812 = vadd.f32 %v3624, 1.0
          %v3813 = vadd.f32 %v3626, 1.0
          %v3814 = vadd.f32 %v3628, 1.0
          %v3815 = vadd.f32 %v3630, 1.0
          %v3816 = vadd.f32 %v3632, 1.0
          %v3817 = vadd.f32 %v3634, 1.0
          %v3818 = vadd.f32 %v3636, 1.0
          %v3819 = vadd.f32 %v3638, 1.0
          %v3820 = vadd.f32 %v3640, 1.0
          %v3821 = vadd.f32 %v3642, 1.0
          %v3822 = vadd.f32 %v3644, 1.0
          %v3823 = vadd.f32 %v3646, 1.0
          %v3824 = vadd.f32 %v3648, 1.0
          %v3825 = vadd.f32 %v3650, 1.0
          %v3826 = vadd.f32 %v3652, 1.0
          %v3827 = vadd.f32 %v3654, 1.0
          %v3828 = vadd.f32 %v3656, 1.0
          %v3829 = vadd.f32 %v3658, 1.0
          %v3830 = vadd.f32 %v3660, 1.0
          %v3831 = vadd.f32 %v3662, 1.0
          %v3832 = vadd.f32 %v3664, 1.0
          %v3833 = vadd.f32 %v3666, 1.0
          %v3834 = vadd.f32 %v3668, 1.0
          %v3835 = vadd.f32 %v3670, 1.0
          %v3836 = vadd.f32 %v3672, 1.0
          %v3837 = vadd.f32 %v3674, 1.0
          %v3838 = vadd.f32 %v3676, 1.0
          %v3839 = vadd.f32 %v3678, 1.0
          %v3840 = vadd.f32 %v3680, 1.0
          %v3841 = vadd.f32 %v3682, 1.0
          %v3842 = vadd.f32 %v3684, 1.0
          %v3843 = vadd.f32 %v3686, 1.0
          %v3844 = vadd.f32 %v3688, 1.0
          %v3845 = vadd.f32 %v3690, 1.0
          %v3846 = vadd.f32 %v3692, 1.0
          %v3847 = vadd.f32 %v3694, 1.0
          %v3848 = vadd.f32 %v3696, 1.0
          %v3849 = vadd.f32 %v3698, 1.0
          %v3850 = vadd.f32 %v3700, 1.0
          %v3851 = vadd.f32 %v3702, 1.0
          %v3852 = vadd.f32 %v3704, 1.0
          %v3853 = vadd.f32 %v3706, 1.0
          %v3854 = vadd.f32 %v3708, 1.0
          %v3855 = vadd.f32 %v3710, 1.0
          %v3856 = vadd.f32 %v3712, 1.0
          %v3857 = vadd.f32 %v3714, 1.0
          %v3858 = vadd.f32 %v3716, 1.0
          %v3859 = vadd.f32 %v3718, 1.0
          %v3860 = vadd.f32 %v3720, 1.0
          %v3861 = vadd.f32 %v3722, 1.0
          %v3862 = vadd.f32 %v3724, 1.0
          %v3863 = vadd.f32 %v3726, 1.0
          %v3864 = vadd.f32 %v3728, 1.0
          %v3865 = vadd.f32 %v3730, 1.0
          %v3866 = vadd.f32 %v3732, 1.0
          %v3867 = vadd.f32 %v3734, 1.0
          %v3868 = vadd.f32 %v3736, 1.0
          %v3869 = vadd.f32 %v3738, 1.0
          %v3870 = vadd.f32 %v3740, 1.0
          %v3871 = vadd.f32 %v3742, 1.0
          %v3872 = vadd.f32 %v3744, 1.0
          %v3873 = vadd.f32 %v3746, 1.0
          %v3874 = vadd.f32 %v3748, 1.0
          %v3875 = vadd.f32 %v3750, 1.0
          %v3876 = vadd.f32 %v3752, 1.0
          %v3877 = vadd.f32 %v3754, 1.0
          %v3878 = vadd.f32 %v3756, 1.0
          %v3879 = vadd.f32 %v3758, 1.0
          %v3880 = vadd.f32 %v3760, 1.0
          %v3881 = vadd.f32 %v3762, 1.0
          %v3882 = vadd.f32 %v3764, 1.0
          %v3883 = vadd.f32 %v3766, 1.0
          %v3884 = vadd.f32 %v3768, 1.0
          %v3885 = vadd.f32 %v3770, 1.0
          %v3886 = vadd.f32 %v3772, 1.0
          %v3887 = vadd.f32 %v3774, 1.0
          %v3888 = vadd.f32 %v3776, 1.0
          %v3889 = vadd.f32 %v3778, 1.0
          %v3890 = vadd.f32 %v3780, 1.0
          %v3891 = vadd.f32 %v3782, 1.0
          %v3892 = vadd.f32 %v3784, 1.0
          %v3893 = vadd.f32 %v3786, 1.0
          %v3894 = vadd.f32 %v3788, 1.0
          %v3895 = vadd.f32 %v3790, 1.0
          %v3896 = vadd.f32 %v3792, 1.0
          %v3897 = vadd.f32 %v3794, 1.0
          %v3898 = vadd.f32 %v3796, 1.0
          %v3899 = vadd.f32 %v3798, 1.0
          %v3900 = vadd.f32 %v3800, 1.0
          %v3901 = vadd.f32 %v3802, 1.0
          %v3902 = vadd.f32 %v3804, 1.0
          %v3903 = vadd.f32 %v3806, 1.0
          %v3904 = vadd.f32 %v3808, 1.0
          %v3905 = vlog2.pop %v3809
          %v3906 = vmul.f32 %v3905, 0.6931472
          %v3907 = vlog2.pop %v3810
          %v3908 = vmul.f32 %v3907, 0.6931472
          %v3909 = vlog2.pop %v3811
          %v3910 = vmul.f32 %v3909, 0.6931472
          %v3911 = vlog2.pop %v3812
          %v3912 = vmul.f32 %v3911, 0.6931472
          %v3913 = vlog2.pop %v3813
          %v3914 = vmul.f32 %v3913, 0.6931472
          %v3915 = vlog2.pop %v3814
          %v3916 = vmul.f32 %v3915, 0.6931472
          %v3917 = vlog2.pop %v3815
          %v3918 = vmul.f32 %v3917, 0.6931472
          %v3919 = vlog2.pop %v3816
          %v3920 = vmul.f32 %v3919, 0.6931472
          %v3921 = vlog2.pop %v3817
          %v3922 = vmul.f32 %v3921, 0.6931472
          %v3923 = vlog2.pop %v3818
          %v3924 = vmul.f32 %v3923, 0.6931472
          %v3925 = vlog2.pop %v3819
          %v3926 = vmul.f32 %v3925, 0.6931472
          %v3927 = vlog2.pop %v3820
          %v3928 = vmul.f32 %v3927, 0.6931472
          %v3929 = vlog2.pop %v3821
          %v3930 = vmul.f32 %v3929, 0.6931472
          %v3931 = vlog2.pop %v3822
          %v3932 = vmul.f32 %v3931, 0.6931472
          %v3933 = vlog2.pop %v3823
          %v3934 = vmul.f32 %v3933, 0.6931472
          %v3935 = vlog2.pop %v3824
          %v3936 = vmul.f32 %v3935, 0.6931472
          %v3937 = vlog2.pop %v3825
          %v3938 = vmul.f32 %v3937, 0.6931472
          %v3939 = vlog2.pop %v3826
          %v3940 = vmul.f32 %v3939, 0.6931472
          %v3941 = vlog2.pop %v3827
          %v3942 = vmul.f32 %v3941, 0.6931472
          %v3943 = vlog2.pop %v3828
          %v3944 = vmul.f32 %v3943, 0.6931472
          %v3945 = vlog2.pop %v3829
          %v3946 = vmul.f32 %v3945, 0.6931472
          %v3947 = vlog2.pop %v3830
          %v3948 = vmul.f32 %v3947, 0.6931472
          %v3949 = vlog2.pop %v3831
          %v3950 = vmul.f32 %v3949, 0.6931472
          %v3951 = vlog2.pop %v3832
          %v3952 = vmul.f32 %v3951, 0.6931472
          %v3953 = vlog2.pop %v3833
          %v3954 = vmul.f32 %v3953, 0.6931472
          %v3955 = vlog2.pop %v3834
          %v3956 = vmul.f32 %v3955, 0.6931472
          %v3957 = vlog2.pop %v3835
          %v3958 = vmul.f32 %v3957, 0.6931472
          %v3959 = vlog2.pop %v3836
          %v3960 = vmul.f32 %v3959, 0.6931472
          %v3961 = vlog2.pop %v3837
          %v3962 = vmul.f32 %v3961, 0.6931472
          %v3963 = vlog2.pop %v3838
          %v3964 = vmul.f32 %v3963, 0.6931472
          %v3965 = vlog2.pop %v3839
          %v3966 = vmul.f32 %v3965, 0.6931472
          %v3967 = vlog2.pop %v3840
          %v3968 = vmul.f32 %v3967, 0.6931472
          %v3969 = vlog2.pop %v3841
          %v3970 = vmul.f32 %v3969, 0.6931472
          %v3971 = vlog2.pop %v3842
          %v3972 = vmul.f32 %v3971, 0.6931472
          %v3973 = vlog2.pop %v3843
          %v3974 = vmul.f32 %v3973, 0.6931472
          %v3975 = vlog2.pop %v3844
          %v3976 = vmul.f32 %v3975, 0.6931472
          %v3977 = vlog2.pop %v3845
          %v3978 = vmul.f32 %v3977, 0.6931472
          %v3979 = vlog2.pop %v3846
          %v3980 = vmul.f32 %v3979, 0.6931472
          %v3981 = vlog2.pop %v3847
          %v3982 = vmul.f32 %v3981, 0.6931472
          %v3983 = vlog2.pop %v3848
          %v3984 = vmul.f32 %v3983, 0.6931472
          %v3985 = vlog2.pop %v3849
          %v3986 = vmul.f32 %v3985, 0.6931472
          %v3987 = vlog2.pop %v3850
          %v3988 = vmul.f32 %v3987, 0.6931472
          %v3989 = vlog2.pop %v3851
          %v3990 = vmul.f32 %v3989, 0.6931472
          %v3991 = vlog2.pop %v3852
          %v3992 = vmul.f32 %v3991, 0.6931472
          %v3993 = vlog2.pop %v3853
          %v3994 = vmul.f32 %v3993, 0.6931472
          %v3995 = vlog2.pop %v3854
          %v3996 = vmul.f32 %v3995, 0.6931472
          %v3997 = vlog2.pop %v3855
          %v3998 = vmul.f32 %v3997, 0.6931472
          %v3999 = vlog2.pop %v3856
          %v4000 = vmul.f32 %v3999, 0.6931472
          %v4001 = vlog2.pop %v3857
          %v4002 = vmul.f32 %v4001, 0.6931472
          %v4003 = vlog2.pop %v3858
          %v4004 = vmul.f32 %v4003, 0.6931472
          %v4005 = vlog2.pop %v3859
          %v4006 = vmul.f32 %v4005, 0.6931472
          %v4007 = vlog2.pop %v3860
          %v4008 = vmul.f32 %v4007, 0.6931472
          %v4009 = vlog2.pop %v3861
          %v4010 = vmul.f32 %v4009, 0.6931472
          %v4011 = vlog2.pop %v3862
          %v4012 = vmul.f32 %v4011, 0.6931472
          %v4013 = vlog2.pop %v3863
          %v4014 = vmul.f32 %v4013, 0.6931472
          %v4015 = vlog2.pop %v3864
          %v4016 = vmul.f32 %v4015, 0.6931472
          %v4017 = vlog2.pop %v3865
          %v4018 = vmul.f32 %v4017, 0.6931472
          %v4019 = vlog2.pop %v3866
          %v4020 = vmul.f32 %v4019, 0.6931472
          %v4021 = vlog2.pop %v3867
          %v4022 = vmul.f32 %v4021, 0.6931472
          %v4023 = vlog2.pop %v3868
          %v4024 = vmul.f32 %v4023, 0.6931472
          %v4025 = vlog2.pop %v3869
          %v4026 = vmul.f32 %v4025, 0.6931472
          %v4027 = vlog2.pop %v3870
          %v4028 = vmul.f32 %v4027, 0.6931472
          %v4029 = vlog2.pop %v3871
          %v4030 = vmul.f32 %v4029, 0.6931472
          %v4031 = vlog2.pop %v3872
          %v4032 = vmul.f32 %v4031, 0.6931472
          %v4033 = vlog2.pop %v3873
          %v4034 = vmul.f32 %v4033, 0.6931472
          %v4035 = vlog2.pop %v3874
          %v4036 = vmul.f32 %v4035, 0.6931472
          %v4037 = vlog2.pop %v3875
          %v4038 = vmul.f32 %v4037, 0.6931472
          %v4039 = vlog2.pop %v3876
          %v4040 = vmul.f32 %v4039, 0.6931472
          %v4041 = vlog2.pop %v3877
          %v4042 = vmul.f32 %v4041, 0.6931472
          %v4043 = vlog2.pop %v3878
          %v4044 = vmul.f32 %v4043, 0.6931472
          %v4045 = vlog2.pop %v3879
          %v4046 = vmul.f32 %v4045, 0.6931472
          %v4047 = vlog2.pop %v3880
          %v4048 = vmul.f32 %v4047, 0.6931472
          %v4049 = vlog2.pop %v3881
          %v4050 = vmul.f32 %v4049, 0.6931472
          %v4051 = vlog2.pop %v3882
          %v4052 = vmul.f32 %v4051, 0.6931472
          %v4053 = vlog2.pop %v3883
          %v4054 = vmul.f32 %v4053, 0.6931472
          %v4055 = vlog2.pop %v3884
          %v4056 = vmul.f32 %v4055, 0.6931472
          %v4057 = vlog2.pop %v3885
          %v4058 = vmul.f32 %v4057, 0.6931472
          %v4059 = vlog2.pop %v3886
          %v4060 = vmul.f32 %v4059, 0.6931472
          %v4061 = vlog2.pop %v3887
          %v4062 = vmul.f32 %v4061, 0.6931472
          %v4063 = vlog2.pop %v3888
          %v4064 = vmul.f32 %v4063, 0.6931472
          %v4065 = vlog2.pop %v3889
          %v4066 = vmul.f32 %v4065, 0.6931472
          %v4067 = vlog2.pop %v3890
          %v4068 = vmul.f32 %v4067, 0.6931472
          %v4069 = vlog2.pop %v3891
          %v4070 = vmul.f32 %v4069, 0.6931472
          %v4071 = vlog2.pop %v3892
          %v4072 = vmul.f32 %v4071, 0.6931472
          %v4073 = vlog2.pop %v3893
          %v4074 = vmul.f32 %v4073, 0.6931472
          %v4075 = vlog2.pop %v3894
          %v4076 = vmul.f32 %v4075, 0.6931472
          %v4077 = vlog2.pop %v3895
          %v4078 = vmul.f32 %v4077, 0.6931472
          %v4079 = vlog2.pop %v3896
          %v4080 = vmul.f32 %v4079, 0.6931472
          %v4081 = vlog2.pop %v3897
          %v4082 = vmul.f32 %v4081, 0.6931472
          %v4083 = vlog2.pop %v3898
          %v4084 = vmul.f32 %v4083, 0.6931472
          %v4085 = vlog2.pop %v3899
          %v4086 = vmul.f32 %v4085, 0.6931472
          %v4087 = vlog2.pop %v3900
          %v4088 = vmul.f32 %v4087, 0.6931472
          %v4089 = vlog2.pop %v3901
          %v4090 = vmul.f32 %v4089, 0.6931472
          %v4091 = vlog2.pop %v3902
          %v4092 = vmul.f32 %v4091, 0.6931472
          %v4093 = vlog2.pop %v3903
          %v4094 = vmul.f32 %v4093, 0.6931472
          %v4095 = vlog2.pop %v3904
          %v4096 = vmul.f32 %v4095, 0.6931472
          %v4097 = vadd.f32 %v3329, %v3906
          %v4098 = vadd.f32 %v3330, %v3908
          %v4099 = vadd.f32 %v3331, %v3910
          %v4100 = vadd.f32 %v3332, %v3912
          %v4101 = vadd.f32 %v3333, %v3914
          %v4102 = vadd.f32 %v3334, %v3916
          %v4103 = vadd.f32 %v3335, %v3918
          %v4104 = vadd.f32 %v3336, %v3920
          %v4105 = vadd.f32 %v3337, %v3922
          %v4106 = vadd.f32 %v3338, %v3924
          %v4107 = vadd.f32 %v3339, %v3926
          %v4108 = vadd.f32 %v3340, %v3928
          %v4109 = vadd.f32 %v3341, %v3930
          %v4110 = vadd.f32 %v3342, %v3932
          %v4111 = vadd.f32 %v3343, %v3934
          %v4112 = vadd.f32 %v3344, %v3936
          %v4113 = vadd.f32 %v3345, %v3938
          %v4114 = vadd.f32 %v3346, %v3940
          %v4115 = vadd.f32 %v3347, %v3942
          %v4116 = vadd.f32 %v3348, %v3944
          %v4117 = vadd.f32 %v3349, %v3946
          %v4118 = vadd.f32 %v3350, %v3948
          %v4119 = vadd.f32 %v3351, %v3950
          %v4120 = vadd.f32 %v3352, %v3952
          %v4121 = vadd.f32 %v3353, %v3954
          %v4122 = vadd.f32 %v3354, %v3956
          %v4123 = vadd.f32 %v3355, %v3958
          %v4124 = vadd.f32 %v3356, %v3960
          %v4125 = vadd.f32 %v3357, %v3962
          %v4126 = vadd.f32 %v3358, %v3964
          %v4127 = vadd.f32 %v3359, %v3966
          %v4128 = vadd.f32 %v3360, %v3968
          %v4129 = vadd.f32 %v3361, %v3970
          %v4130 = vadd.f32 %v3362, %v3972
          %v4131 = vadd.f32 %v3363, %v3974
          %v4132 = vadd.f32 %v3364, %v3976
          %v4133 = vadd.f32 %v3365, %v3978
          %v4134 = vadd.f32 %v3366, %v3980
          %v4135 = vadd.f32 %v3367, %v3982
          %v4136 = vadd.f32 %v3368, %v3984
          %v4137 = vadd.f32 %v3369, %v3986
          %v4138 = vadd.f32 %v3370, %v3988
          %v4139 = vadd.f32 %v3371, %v3990
          %v4140 = vadd.f32 %v3372, %v3992
          %v4141 = vadd.f32 %v3373, %v3994
          %v4142 = vadd.f32 %v3374, %v3996
          %v4143 = vadd.f32 %v3375, %v3998
          %v4144 = vadd.f32 %v3376, %v4000
          %v4145 = vadd.f32 %v3377, %v4002
          %v4146 = vadd.f32 %v3378, %v4004
          %v4147 = vadd.f32 %v3379, %v4006
          %v4148 = vadd.f32 %v3380, %v4008
          %v4149 = vadd.f32 %v3381, %v4010
          %v4150 = vadd.f32 %v3382, %v4012
          %v4151 = vadd.f32 %v3383, %v4014
          %v4152 = vadd.f32 %v3384, %v4016
          %v4153 = vadd.f32 %v3385, %v4018
          %v4154 = vadd.f32 %v3386, %v4020
          %v4155 = vadd.f32 %v3387, %v4022
          %v4156 = vadd.f32 %v3388, %v4024
          %v4157 = vadd.f32 %v3389, %v4026
          %v4158 = vadd.f32 %v3390, %v4028
          %v4159 = vadd.f32 %v3391, %v4030
          %v4160 = vadd.f32 %v3392, %v4032
          %v4161 = vadd.f32 %v3393, %v4034
          %v4162 = vadd.f32 %v3394, %v4036
          %v4163 = vadd.f32 %v3395, %v4038
          %v4164 = vadd.f32 %v3396, %v4040
          %v4165 = vadd.f32 %v3397, %v4042
          %v4166 = vadd.f32 %v3398, %v4044
          %v4167 = vadd.f32 %v3399, %v4046
          %v4168 = vadd.f32 %v3400, %v4048
          %v4169 = vadd.f32 %v3401, %v4050
          %v4170 = vadd.f32 %v3402, %v4052
          %v4171 = vadd.f32 %v3403, %v4054
          %v4172 = vadd.f32 %v3404, %v4056
          %v4173 = vadd.f32 %v3405, %v4058
          %v4174 = vadd.f32 %v3406, %v4060
          %v4175 = vadd.f32 %v3407, %v4062
          %v4176 = vadd.f32 %v3408, %v4064
          %v4177 = vadd.f32 %v3409, %v4066
          %v4178 = vadd.f32 %v3410, %v4068
          %v4179 = vadd.f32 %v3411, %v4070
          %v4180 = vadd.f32 %v3412, %v4072
          %v4181 = vadd.f32 %v3413, %v4074
          %v4182 = vadd.f32 %v3414, %v4076
          %v4183 = vadd.f32 %v3415, %v4078
          %v4184 = vadd.f32 %v3416, %v4080
          %v4185 = vadd.f32 %v3417, %v4082
          %v4186 = vadd.f32 %v3418, %v4084
          %v4187 = vadd.f32 %v3419, %v4086
          %v4188 = vadd.f32 %v3420, %v4088
          %v4189 = vadd.f32 %v3421, %v4090
          %v4190 = vadd.f32 %v3422, %v4092
          %v4191 = vadd.f32 %v3423, %v4094
          %v4192 = vadd.f32 %v3424, %v4096
          %v4193 = vmin.f32 %v4097, 100.0
          %v4194 = vmin.f32 %v4098, 100.0
          %v4195 = vmin.f32 %v4099, 100.0
          %v4196 = vmin.f32 %v4100, 100.0
          %v4197 = vmin.f32 %v4101, 100.0
          %v4198 = vmin.f32 %v4102, 100.0
          %v4199 = vmin.f32 %v4103, 100.0
          %v4200 = vmin.f32 %v4104, 100.0
          %v4201 = vmin.f32 %v4105, 100.0
          %v4202 = vmin.f32 %v4106, 100.0
          %v4203 = vmin.f32 %v4107, 100.0
          %v4204 = vmin.f32 %v4108, 100.0
          %v4205 = vmin.f32 %v4109, 100.0
          %v4206 = vmin.f32 %v4110, 100.0
          %v4207 = vmin.f32 %v4111, 100.0
          %v4208 = vmin.f32 %v4112, 100.0
          %v4209 = vmin.f32 %v4113, 100.0
          %v4210 = vmin.f32 %v4114, 100.0
          %v4211 = vmin.f32 %v4115, 100.0
          %v4212 = vmin.f32 %v4116, 100.0
          %v4213 = vmin.f32 %v4117, 100.0
          %v4214 = vmin.f32 %v4118, 100.0
          %v4215 = vmin.f32 %v4119, 100.0
          %v4216 = vmin.f32 %v4120, 100.0
          %v4217 = vmin.f32 %v4121, 100.0
          %v4218 = vmin.f32 %v4122, 100.0
          %v4219 = vmin.f32 %v4123, 100.0
          %v4220 = vmin.f32 %v4124, 100.0
          %v4221 = vmin.f32 %v4125, 100.0
          %v4222 = vmin.f32 %v4126, 100.0
          %v4223 = vmin.f32 %v4127, 100.0
          %v4224 = vmin.f32 %v4128, 100.0
          %v4225 = vmin.f32 %v4129, 100.0
          %v4226 = vmin.f32 %v4130, 100.0
          %v4227 = vmin.f32 %v4131, 100.0
          %v4228 = vmin.f32 %v4132, 100.0
          %v4229 = vmin.f32 %v4133, 100.0
          %v4230 = vmin.f32 %v4134, 100.0
          %v4231 = vmin.f32 %v4135, 100.0
          %v4232 = vmin.f32 %v4136, 100.0
          %v4233 = vmin.f32 %v4137, 100.0
          %v4234 = vmin.f32 %v4138, 100.0
          %v4235 = vmin.f32 %v4139, 100.0
          %v4236 = vmin.f32 %v4140, 100.0
          %v4237 = vmin.f32 %v4141, 100.0
          %v4238 = vmin.f32 %v4142, 100.0
          %v4239 = vmin.f32 %v4143, 100.0
          %v4240 = vmin.f32 %v4144, 100.0
          %v4241 = vmin.f32 %v4145, 100.0
          %v4242 = vmin.f32 %v4146, 100.0
          %v4243 = vmin.f32 %v4147, 100.0
          %v4244 = vmin.f32 %v4148, 100.0
          %v4245 = vmin.f32 %v4149, 100.0
          %v4246 = vmin.f32 %v4150, 100.0
          %v4247 = vmin.f32 %v4151, 100.0
          %v4248 = vmin.f32 %v4152, 100.0
          %v4249 = vmin.f32 %v4153, 100.0
          %v4250 = vmin.f32 %v4154, 100.0
          %v4251 = vmin.f32 %v4155, 100.0
          %v4252 = vmin.f32 %v4156, 100.0
          %v4253 = vmin.f32 %v4157, 100.0
          %v4254 = vmin.f32 %v4158, 100.0
          %v4255 = vmin.f32 %v4159, 100.0
          %v4256 = vmin.f32 %v4160, 100.0
          %v4257 = vmin.f32 %v4161, 100.0
          %v4258 = vmin.f32 %v4162, 100.0
          %v4259 = vmin.f32 %v4163, 100.0
          %v4260 = vmin.f32 %v4164, 100.0
          %v4261 = vmin.f32 %v4165, 100.0
          %v4262 = vmin.f32 %v4166, 100.0
          %v4263 = vmin.f32 %v4167, 100.0
          %v4264 = vmin.f32 %v4168, 100.0
          %v4265 = vmin.f32 %v4169, 100.0
          %v4266 = vmin.f32 %v4170, 100.0
          %v4267 = vmin.f32 %v4171, 100.0
          %v4268 = vmin.f32 %v4172, 100.0
          %v4269 = vmin.f32 %v4173, 100.0
          %v4270 = vmin.f32 %v4174, 100.0
          %v4271 = vmin.f32 %v4175, 100.0
          %v4272 = vmin.f32 %v4176, 100.0
          %v4273 = vmin.f32 %v4177, 100.0
          %v4274 = vmin.f32 %v4178, 100.0
          %v4275 = vmin.f32 %v4179, 100.0
          %v4276 = vmin.f32 %v4180, 100.0
          %v4277 = vmin.f32 %v4181, 100.0
          %v4278 = vmin.f32 %v4182, 100.0
          %v4279 = vmin.f32 %v4183, 100.0
          %v4280 = vmin.f32 %v4184, 100.0
          %v4281 = vmin.f32 %v4185, 100.0
          %v4282 = vmin.f32 %v4186, 100.0
          %v4283 = vmin.f32 %v4187, 100.0
          %v4284 = vmin.f32 %v4188, 100.0
          %v4285 = vmin.f32 %v4189, 100.0
          %v4286 = vmin.f32 %v4190, 100.0
          %v4287 = vmin.f32 %v4191, 100.0
          %v4288 = vmin.f32 %v4192, 100.0
          %v4289 = vadd.f32 %v4193, %v4194
          %v4290 = vadd.f32 %v4289, %v4195
          %4291 = vadd.xlane.f32.xlu0 %v4290
          %v4292 = vpop.xlane.xlu0 %4291
          %v4293 = vadd.f32 %v4196, %v4197
          %v4294 = vadd.f32 %v4293, %v4198
          %4295 = vadd.xlane.f32.xlu0 %v4294
          %v4296 = vpop.xlane.xlu0 %4295
          %v4297 = vadd.f32 %v4199, %v4200
          %v4298 = vadd.f32 %v4297, %v4201
          %4299 = vadd.xlane.f32.xlu0 %v4298
          %v4300 = vpop.xlane.xlu0 %4299
          %v4301 = vadd.f32 %v4202, %v4203
          %v4302 = vadd.f32 %v4301, %v4204
          %4303 = vadd.xlane.f32.xlu0 %v4302
          %v4304 = vpop.xlane.xlu0 %4303
          %v4305 = vadd.f32 %v4205, %v4206
          %v4306 = vadd.f32 %v4305, %v4207
          %4307 = vadd.xlane.f32.xlu0 %v4306
          %v4308 = vpop.xlane.xlu0 %4307
          %v4309 = vadd.f32 %v4208, %v4209
          %v4310 = vadd.f32 %v4309, %v4210
          %4311 = vadd.xlane.f32.xlu0 %v4310
          %v4312 = vpop.xlane.xlu0 %4311
          %v4313 = vadd.f32 %v4211, %v4212
          %v4314 = vadd.f32 %v4313, %v4213
          %4315 = vadd.xlane.f32.xlu0 %v4314
          %v4316 = vpop.xlane.xlu0 %4315
          %v4317 = vadd.f32 %v4214, %v4215
          %v4318 = vadd.f32 %v4317, %v4216
          %4319 = vadd.xlane.f32.xlu0 %v4318
          %v4320 = vpop.xlane.xlu0 %4319
          %v4321 = vadd.f32 %v4217, %v4218
          %v4322 = vadd.f32 %v4321, %v4219
          %4323 = vadd.xlane.f32.xlu0 %v4322
          %v4324 = vpop.xlane.xlu0 %4323
          %v4325 = vadd.f32 %v4220, %v4221
          %v4326 = vadd.f32 %v4325, %v4222
          %4327 = vadd.xlane.f32.xlu0 %v4326
          %v4328 = vpop.xlane.xlu0 %4327
          %v4329 = vadd.f32 %v4223, %v4224
          %v4330 = vadd.f32 %v4329, %v4225
          %4331 = vadd.xlane.f32.xlu0 %v4330
          %v4332 = vpop.xlane.xlu0 %4331
          %v4333 = vadd.f32 %v4226, %v4227
          %v4334 = vadd.f32 %v4333, %v4228
          %4335 = vadd.xlane.f32.xlu0 %v4334
          %v4336 = vpop.xlane.xlu0 %4335
          %v4337 = vadd.f32 %v4229, %v4230
          %v4338 = vadd.f32 %v4337, %v4231
          %4339 = vadd.xlane.f32.xlu0 %v4338
          %v4340 = vpop.xlane.xlu0 %4339
          %v4341 = vadd.f32 %v4232, %v4233
          %v4342 = vadd.f32 %v4341, %v4234
          %4343 = vadd.xlane.f32.xlu0 %v4342
          %v4344 = vpop.xlane.xlu0 %4343
          %v4345 = vadd.f32 %v4235, %v4236
          %v4346 = vadd.f32 %v4345, %v4237
          %4347 = vadd.xlane.f32.xlu0 %v4346
          %v4348 = vpop.xlane.xlu0 %4347
          %v4349 = vadd.f32 %v4238, %v4239
          %v4350 = vadd.f32 %v4349, %v4240
          %4351 = vadd.xlane.f32.xlu0 %v4350
          %v4352 = vpop.xlane.xlu0 %4351
          %v4353 = vadd.f32 %v4241, %v4242
          %v4354 = vadd.f32 %v4353, %v4243
          %4355 = vadd.xlane.f32.xlu0 %v4354
          %v4356 = vpop.xlane.xlu0 %4355
          %v4357 = vadd.f32 %v4244, %v4245
          %v4358 = vadd.f32 %v4357, %v4246
          %4359 = vadd.xlane.f32.xlu0 %v4358
          %v4360 = vpop.xlane.xlu0 %4359
          %v4361 = vadd.f32 %v4247, %v4248
          %v4362 = vadd.f32 %v4361, %v4249
          %4363 = vadd.xlane.f32.xlu0 %v4362
          %v4364 = vpop.xlane.xlu0 %4363
          %v4365 = vadd.f32 %v4250, %v4251
          %v4366 = vadd.f32 %v4365, %v4252
          %4367 = vadd.xlane.f32.xlu0 %v4366
          %v4368 = vpop.xlane.xlu0 %4367
          %v4369 = vadd.f32 %v4253, %v4254
          %v4370 = vadd.f32 %v4369, %v4255
          %4371 = vadd.xlane.f32.xlu0 %v4370
          %v4372 = vpop.xlane.xlu0 %4371
          %v4373 = vadd.f32 %v4256, %v4257
          %v4374 = vadd.f32 %v4373, %v4258
          %4375 = vadd.xlane.f32.xlu0 %v4374
          %v4376 = vpop.xlane.xlu0 %4375
          %v4377 = vadd.f32 %v4259, %v4260
          %v4378 = vadd.f32 %v4377, %v4261
          %4379 = vadd.xlane.f32.xlu0 %v4378
          %v4380 = vpop.xlane.xlu0 %4379
          %v4381 = vadd.f32 %v4262, %v4263
          %v4382 = vadd.f32 %v4381, %v4264
          %4383 = vadd.xlane.f32.xlu0 %v4382
          %v4384 = vpop.xlane.xlu0 %4383
          %v4385 = vadd.f32 %v4265, %v4266
          %v4386 = vadd.f32 %v4385, %v4267
          %4387 = vadd.xlane.f32.xlu0 %v4386
          %v4388 = vpop.xlane.xlu0 %4387
          %v4389 = vadd.f32 %v4268, %v4269
          %v4390 = vadd.f32 %v4389, %v4270
          %4391 = vadd.xlane.f32.xlu0 %v4390
          %v4392 = vpop.xlane.xlu0 %4391
          %v4393 = vadd.f32 %v4271, %v4272
          %v4394 = vadd.f32 %v4393, %v4273
          %4395 = vadd.xlane.f32.xlu0 %v4394
          %v4396 = vpop.xlane.xlu0 %4395
          %v4397 = vadd.f32 %v4274, %v4275
          %v4398 = vadd.f32 %v4397, %v4276
          %4399 = vadd.xlane.f32.xlu0 %v4398
          %v4400 = vpop.xlane.xlu0 %4399
          %v4401 = vadd.f32 %v4277, %v4278
          %v4402 = vadd.f32 %v4401, %v4279
          %4403 = vadd.xlane.f32.xlu0 %v4402
          %v4404 = vpop.xlane.xlu0 %4403
          %v4405 = vadd.f32 %v4280, %v4281
          %v4406 = vadd.f32 %v4405, %v4282
          %4407 = vadd.xlane.f32.xlu0 %v4406
          %v4408 = vpop.xlane.xlu0 %4407
          %v4409 = vadd.f32 %v4283, %v4284
          %v4410 = vadd.f32 %v4409, %v4285
          %4411 = vadd.xlane.f32.xlu0 %v4410
          %v4412 = vpop.xlane.xlu0 %4411
          %v4413 = vadd.f32 %v4286, %v4287
          %v4414 = vadd.f32 %v4413, %v4288
          %4415 = vadd.xlane.f32.xlu0 %v4414
          %v4416 = vpop.xlane.xlu0 %4415
          %v4417 = vadd.f32 %v2556, %v4292
          %v4418 = vadd.f32 %v2557, %v4296
          %v4419 = vadd.f32 %v2558, %v4300
          %v4420 = vadd.f32 %v2559, %v4304
          %v4421 = vadd.f32 %v2560, %v4308
          %v4422 = vadd.f32 %v2561, %v4312
          %v4423 = vadd.f32 %v2562, %v4316
          %v4424 = vadd.f32 %v2563, %v4320
          %v4425 = vadd.f32 %v2564, %v4324
          %v4426 = vadd.f32 %v2565, %v4328
          %v4427 = vadd.f32 %v2566, %v4332
          %v4428 = vadd.f32 %v2567, %v4336
          %v4429 = vadd.f32 %v2568, %v4340
          %v4430 = vadd.f32 %v2569, %v4344
          %v4431 = vadd.f32 %v2570, %v4348
          %v4432 = vadd.f32 %v2571, %v4352
          %v4433 = vadd.f32 %v2572, %v4356
          %v4434 = vadd.f32 %v2573, %v4360
          %v4435 = vadd.f32 %v2574, %v4364
          %v4436 = vadd.f32 %v2575, %v4368
          %v4437 = vadd.f32 %v2576, %v4372
          %v4438 = vadd.f32 %v2577, %v4376
          %v4439 = vadd.f32 %v2578, %v4380
          %v4440 = vadd.f32 %v2579, %v4384
          %v4441 = vadd.f32 %v2580, %v4388
          %v4442 = vadd.f32 %v2581, %v4392
          %v4443 = vadd.f32 %v2582, %v4396
          %v4444 = vadd.f32 %v2583, %v4400
          %v4445 = vadd.f32 %v2584, %v4404
          %v4446 = vadd.f32 %v2585, %v4408
          %v4447 = vadd.f32 %v2586, %v4412
          %v4448 = vadd.f32 %v2587, %v4416
          %4449 = vst.msk [vmem:[#allocation2] sm:$0xff] %vm319, %v4417
          %4450 = vst.msk [vmem:[#allocation2 + $0x8] sm:$0xff] %vm319, %v4418
          %4451 = vst.msk [vmem:[#allocation2 + $0x10] sm:$0xff] %vm319, %v4419
          %4452 = vst.msk [vmem:[#allocation2 + $0x18] sm:$0xff] %vm319, %v4420
          %4453 = vst.msk [vmem:[#allocation2 + $0x20] sm:$0xff] %vm319, %v4421
          %4454 = vst.msk [vmem:[#allocation2 + $0x28] sm:$0xff] %vm319, %v4422
          %4455 = vst.msk [vmem:[#allocation2 + $0x30] sm:$0xff] %vm319, %v4423
          %4456 = vst.msk [vmem:[#allocation2 + $0x38] sm:$0xff] %vm319, %v4424
          %4457 = vst.msk [vmem:[#allocation2 + $0x40] sm:$0xff] %vm319, %v4425
          %4458 = vst.msk [vmem:[#allocation2 + $0x48] sm:$0xff] %vm319, %v4426
          %4459 = vst.msk [vmem:[#allocation2 + $0x50] sm:$0xff] %vm319, %v4427
          %4460 = vst.msk [vmem:[#allocation2 + $0x58] sm:$0xff] %vm319, %v4428
          %4461 = vst.msk [vmem:[#allocation2 + $0x60] sm:$0xff] %vm319, %v4429
          %4462 = vst.msk [vmem:[#allocation2 + $0x68] sm:$0xff] %vm319, %v4430
          %4463 = vst.msk [vmem:[#allocation2 + $0x70] sm:$0xff] %vm319, %v4431
          %4464 = vst.msk [vmem:[#allocation2 + $0x78] sm:$0xff] %vm319, %v4432
          %4465 = vst.msk [vmem:[#allocation2 + $0x80] sm:$0xff] %vm319, %v4433
          %4466 = vst.msk [vmem:[#allocation2 + $0x88] sm:$0xff] %vm319, %v4434
          %4467 = vst.msk [vmem:[#allocation2 + $0x90] sm:$0xff] %vm319, %v4435
          %4468 = vst.msk [vmem:[#allocation2 + $0x98] sm:$0xff] %vm319, %v4436
          %4469 = vst.msk [vmem:[#allocation2 + $0xa0] sm:$0xff] %vm319, %v4437
          %4470 = vst.msk [vmem:[#allocation2 + $0xa8] sm:$0xff] %vm319, %v4438
          %4471 = vst.msk [vmem:[#allocation2 + $0xb0] sm:$0xff] %vm319, %v4439
          %4472 = vst.msk [vmem:[#allocation2 + $0xb8] sm:$0xff] %vm319, %v4440
          %4473 = vst.msk [vmem:[#allocation2 + $0xc0] sm:$0xff] %vm319, %v4441
          %4474 = vst.msk [vmem:[#allocation2 + $0xc8] sm:$0xff] %vm319, %v4442
          %4475 = vst.msk [vmem:[#allocation2 + $0xd0] sm:$0xff] %vm319, %v4443
          %4476 = vst.msk [vmem:[#allocation2 + $0xd8] sm:$0xff] %vm319, %v4444
          %4477 = vst.msk [vmem:[#allocation2 + $0xe0] sm:$0xff] %vm319, %v4445
          %4478 = vst.msk [vmem:[#allocation2 + $0xe8] sm:$0xff] %vm319, %v4446
          %4479 = vst.msk [vmem:[#allocation2 + $0xf0] sm:$0xff] %vm319, %v4447
          %4480 = vst.msk [vmem:[#allocation2 + $0xf8] sm:$0xff] %vm319, %v4448
        $region48: #{tpu_custom_call.1} parent=35 // loop_footer
          %s2553 = sadd.s32 %s2551, 1
        $region49: #{tpu_custom_call.1} parent=35 // loop_footer_branch
          %2550 = sbr.rel target = $region45
        $region50: #{tpu_custom_call.1} parent=35 // loop_exit
          _
        %v4481 = vld [vmem:[#allocation2] sm:$0xff]
        %v4482 = vld [vmem:[#allocation2 + $0x8] sm:$0xff]
        %v4483 = vld [vmem:[#allocation2 + $0x10] sm:$0xff]
        %v4484 = vld [vmem:[#allocation2 + $0x18] sm:$0xff]
        %v4485 = vld [vmem:[#allocation2 + $0x20] sm:$0xff]
        %v4486 = vld [vmem:[#allocation2 + $0x28] sm:$0xff]
        %v4487 = vld [vmem:[#allocation2 + $0x30] sm:$0xff]
        %v4488 = vld [vmem:[#allocation2 + $0x38] sm:$0xff]
        %v4489 = vld [vmem:[#allocation2 + $0x40] sm:$0xff]
        %v4490 = vld [vmem:[#allocation2 + $0x48] sm:$0xff]
        %v4491 = vld [vmem:[#allocation2 + $0x50] sm:$0xff]
        %v4492 = vld [vmem:[#allocation2 + $0x58] sm:$0xff]
        %v4493 = vld [vmem:[#allocation2 + $0x60] sm:$0xff]
        %v4494 = vld [vmem:[#allocation2 + $0x68] sm:$0xff]
        %v4495 = vld [vmem:[#allocation2 + $0x70] sm:$0xff]
        %v4496 = vld [vmem:[#allocation2 + $0x78] sm:$0xff]
        %v4497 = vld [vmem:[#allocation2 + $0x80] sm:$0xff]
        %v4498 = vld [vmem:[#allocation2 + $0x88] sm:$0xff]
        %v4499 = vld [vmem:[#allocation2 + $0x90] sm:$0xff]
        %v4500 = vld [vmem:[#allocation2 + $0x98] sm:$0xff]
        %v4501 = vld [vmem:[#allocation2 + $0xa0] sm:$0xff]
        %v4502 = vld [vmem:[#allocation2 + $0xa8] sm:$0xff]
        %v4503 = vld [vmem:[#allocation2 + $0xb0] sm:$0xff]
        %v4504 = vld [vmem:[#allocation2 + $0xb8] sm:$0xff]
        %v4505 = vld [vmem:[#allocation2 + $0xc0] sm:$0xff]
        %v4506 = vld [vmem:[#allocation2 + $0xc8] sm:$0xff]
        %v4507 = vld [vmem:[#allocation2 + $0xd0] sm:$0xff]
        %v4508 = vld [vmem:[#allocation2 + $0xd8] sm:$0xff]
        %v4509 = vld [vmem:[#allocation2 + $0xe0] sm:$0xff]
        %v4510 = vld [vmem:[#allocation2 + $0xe8] sm:$0xff]
        %v4511 = vld [vmem:[#allocation2 + $0xf0] sm:$0xff]
        %v4512 = vld [vmem:[#allocation2 + $0xf8] sm:$0xff]
        %v4513 = vsel %vm319, %v4481, 0.0
        %v4514 = vsel %vm319, %v4482, 0.0
        %v4515 = vadd.f32 %v4513, %v4514
        %v4516 = vsel %vm319, %v4483, 0.0
        %v4517 = vadd.f32 %v4515, %v4516
        %v4518 = vsel %vm319, %v4484, 0.0
        %v4519 = vadd.f32 %v4517, %v4518
        %v4520 = vsel %vm319, %v4485, 0.0
        %v4521 = vadd.f32 %v4519, %v4520
        %v4522 = vsel %vm319, %v4486, 0.0
        %v4523 = vadd.f32 %v4521, %v4522
        %v4524 = vsel %vm319, %v4487, 0.0
        %v4525 = vadd.f32 %v4523, %v4524
        %v4526 = vsel %vm319, %v4488, 0.0
        %v4527 = vadd.f32 %v4525, %v4526
        %v4528 = vsel %vm319, %v4489, 0.0
        %v4529 = vadd.f32 %v4527, %v4528
        %v4530 = vsel %vm319, %v4490, 0.0
        %v4531 = vadd.f32 %v4529, %v4530
        %v4532 = vsel %vm319, %v4491, 0.0
        %v4533 = vadd.f32 %v4531, %v4532
        %v4534 = vsel %vm319, %v4492, 0.0
        %v4535 = vadd.f32 %v4533, %v4534
        %v4536 = vsel %vm319, %v4493, 0.0
        %v4537 = vadd.f32 %v4535, %v4536
        %v4538 = vsel %vm319, %v4494, 0.0
        %v4539 = vadd.f32 %v4537, %v4538
        %v4540 = vsel %vm319, %v4495, 0.0
        %v4541 = vadd.f32 %v4539, %v4540
        %v4542 = vsel %vm319, %v4496, 0.0
        %v4543 = vadd.f32 %v4541, %v4542
        %v4544 = vsel %vm319, %v4497, 0.0
        %v4545 = vadd.f32 %v4543, %v4544
        %v4546 = vsel %vm319, %v4498, 0.0
        %v4547 = vadd.f32 %v4545, %v4546
        %v4548 = vsel %vm319, %v4499, 0.0
        %v4549 = vadd.f32 %v4547, %v4548
        %v4550 = vsel %vm319, %v4500, 0.0
        %v4551 = vadd.f32 %v4549, %v4550
        %v4552 = vsel %vm319, %v4501, 0.0
        %v4553 = vadd.f32 %v4551, %v4552
        %v4554 = vsel %vm319, %v4502, 0.0
        %v4555 = vadd.f32 %v4553, %v4554
        %v4556 = vsel %vm319, %v4503, 0.0
        %v4557 = vadd.f32 %v4555, %v4556
        %v4558 = vsel %vm319, %v4504, 0.0
        %v4559 = vadd.f32 %v4557, %v4558
        %v4560 = vsel %vm319, %v4505, 0.0
        %v4561 = vadd.f32 %v4559, %v4560
        %v4562 = vsel %vm319, %v4506, 0.0
        %v4563 = vadd.f32 %v4561, %v4562
        %v4564 = vsel %vm319, %v4507, 0.0
        %v4565 = vadd.f32 %v4563, %v4564
        %v4566 = vsel %vm319, %v4508, 0.0
        %v4567 = vadd.f32 %v4565, %v4566
        %v4568 = vsel %vm319, %v4509, 0.0
        %v4569 = vadd.f32 %v4567, %v4568
        %v4570 = vsel %vm319, %v4510, 0.0
        %v4571 = vadd.f32 %v4569, %v4570
        %v4572 = vsel %vm319, %v4511, 0.0
        %v4573 = vadd.f32 %v4571, %v4572
        %v4574 = vsel %vm319, %v4512, 0.0
        %v4575 = vadd.f32 %v4573, %v4574
        %4576 = vadd.xlane.f32.xlu0 %v4575
        %v4577 = vpop.xlane.xlu0 %4576
        %v4578 = vrot.slane %v4577, 4
        %v4579 = vadd.f32 %v4577, %v4578
        %v4580 = vrot.slane %v4579, 2
        %v4581 = vadd.f32 %v4579, %v4580
        %v4582 = vrot.slane %v4581, 1
        %v4583 = vadd.f32 %v4581, %v4582
        %s4584 = vtos %v4583
        %v4585 = vstv %s4584
        %4586 = vst [vmem:[%s234] sm:$0xff] %v4585
        %s4587 = sand.u32 %s141, 1
        %s4588 = scalar_lea.sflag [#allocation8], %s4587
        %s4589 = sand.u32 %s141, 1
        %s4590 = smul.addr %s4589, 8
        %s4591 = scalar_lea.vmem [#allocation7], %s4590
        // Predicated region
        $region51: #{tpu_custom_call.1} parent=35 // pred_check
          %p4592 = pneg %p151
        $region52: #{tpu_custom_call.1} parent=35 // pred_check_branch
          %4594 = sbr.rel (%p4592) target = $region54
        $region53: #{tpu_custom_call.1} parent=35 // pred_region
          %s4596 = ssub.s32 128, 128
          %4597 = vsyncadd %s4588, %s4596
          %s4598 = smul.addr %s35, 128
          %s4599 = scalar_lea.hbm %s7, %s4598
          %s4601 = sshll.u32 %s4591, 4
          %s4602 = int_to_ptr.vmem [resolvable:$true] %s4601
          %4604 = dma.vmem_to_hbm [thread:$0]  %s4602, 128, %s4599, %s4588
        $region54: #{tpu_custom_call.1} parent=35 // pred_fallthru
          _
      $region36: #{tpu_custom_call.1} parent=5 // pred_fallthru
        _
      %p4605 = scmp.le.s32.totalorder 2, %s30
      // Predicated region
      $region55: #{tpu_custom_call.1} parent=5 // pred_check
        %p4606 = pneg %p4605
      $region56: #{tpu_custom_call.1} parent=5 // pred_check_branch
        %4608 = sbr.rel (%p4606) target = $region58
      $region57: #{tpu_custom_call.1} parent=5 // pred_region
        %s4609 = ssub.s32 %s30, 2
        // Predicated region
        $region59: #{tpu_custom_call.1} parent=57 // pred_check
          %p4610 = pneg %p157
        $region60: #{tpu_custom_call.1} parent=57 // pred_check_branch
          %4612 = sbr.rel (%p4610) target = $region62
        $region61: #{tpu_custom_call.1} parent=57 // pred_region
          %s4613 = sand.u32 %s142, 1
          %s4614 = scalar_lea.sflag [#allocation8], %s4613
          %s4615 = sand.u32 %s142, 1
          %s4616 = smul.addr %s4615, 8
          %s4617 = scalar_lea.vmem [#allocation7], %s4616
          %4618 = dma.done %s4614, 128
        $region62: #{tpu_custom_call.1} parent=57 // pred_fallthru
          _
      $region58: #{tpu_custom_call.1} parent=5 // pred_fallthru
        _
    $region6: #{tpu_custom_call.1} parent=1 // loop_footer
      %s34 = sadd.s32 1, %s30
    $region7: #{tpu_custom_call.1} parent=1 // loop_footer_branch
      %29 = sbr.rel target = $region3
    $region8: #{tpu_custom_call.1} parent=1 // loop_exit
      _
    %4619 = vsyncpa [#allocation8], 1
    %s4620 = scalar_lea.sflag [#allocation8], 1
    %4621 = vsyncpa %s4620, 1

</llo_original>
